<compile_context>
chip_gen: v7x
topology: tpu7x:2x2x1
jax: 0.10.0
libtpu: 0.0.40
codegen_flags: <defaults>
</compile_context>

<pallas_src>
import functools

import jax
import jax.numpy as jnp
from jax.experimental import pallas as pl
from jax.experimental.pallas import tpu as pltpu

BN_EPS = 1e-5


# ---------------------------------------------------------------------------
# One fused kernel for the whole forward pass.
# ---------------------------------------------------------------------------
def _fused_cnn_kernel(*refs, N, H, W, layer_cfg, use_metric):
    nconv = len(layer_cfg)
    n_head = 2 if use_metric else 6
    x_ref = refs[0]
    conv_refs = refs[1:1 + 2 * nconv]
    head_refs = refs[1 + 2 * nconv:1 + 2 * nconv + n_head]
    out_ref = refs[1 + 2 * nconv + n_head]

    act = x_ref[...]                               # (N, H, W, Cin) f32 (NHWC)
    curH, curW = H, W
    for li, (cin, cout, KH, KW) in enumerate(layer_cfg):
        w_ref = conv_refs[2 * li]                  # (KH*KW*cin, cout) f32 (BN folded)
        b_ref = conv_refs[2 * li + 1]              # (1, cout) f32 (BN folded)
        ph, pw = (KH - 1) // 2, (KW - 1) // 2
        # 'same' zero padding built as pure vector ops (no ref scatter stores).
        xp = act
        if ph:
            zh = jnp.zeros((N, ph, curW, cin), jnp.float32)
            xp = jnp.concatenate([zh, xp, zh], axis=1)
        if pw:
            zw = jnp.zeros((N, curH + 2 * ph, pw, cin), jnp.float32)
            xp = jnp.concatenate([zw, xp, zw], axis=2)
        # im2col: one (N*H*W, KH*KW*cin) patch -> a single MXU matmul.
        cols = [xp[:, kh:kh + curH, kw:kw + curW, :]
                for kh in range(KH) for kw in range(KW)]
        patch = jnp.concatenate(cols, axis=-1).reshape(
            N * curH * curW, KH * KW * cin)
        r = jnp.dot(patch, w_ref[...], preferred_element_type=jnp.float32)
        r = jnp.maximum(r + b_ref[...], 0.0)                    # bias+BN, ReLU
        # MaxPool2d((1, 2)): adjacent rows along flattened (n,h,w) are W-pairs.
        r = jnp.max(r.reshape(N * curH * (curW // 2), 2, cout), axis=1)
        curW //= 2
        act = r.reshape(N, curH, curW, cout)
        # TODO(synk): Dropout(0.5) is identity in eval mode; training-mode
        # dropout / batch-statistics BatchNorm are not implemented.

    C_last = layer_cfg[-1][1]
    if use_metric:
        # Flatten + BatchNorm1d (eval affine) emitted in NHWC layout; the
        # wrapper permutes to the PyTorch (C, H, W) flatten order.
        s_ref, t_ref = head_refs                   # (curH, curW, C_last) each
        out_ref[...] = (act * s_ref[...][None] + t_ref[...][None]
                        ).astype(out_ref.dtype)
    else:
        # Dense head.  The PyTorch c-major flatten order is absorbed into the
        # pre-permuted w1 slab, so Linear1 is a short sum over spatial
        # positions of (N, C) @ (C, 512) matmuls -- no in-kernel transpose.
        w1_ref, b1_ref, w2_ref, b2_ref, w3_ref, b3_ref = head_refs
        HW = curH * curW
        r3 = act.reshape(N, HW, C_last)
        h1 = jnp.zeros((N, b1_ref.shape[1]), jnp.float32)
        for j in range(HW):                        # tiny static loop (H*W4)
            h1 = h1 + jnp.dot(r3[:, j, :], w1_ref[j],
                              preferred_element_type=jnp.float32)
        h1 = jnp.maximum(h1 + b1_ref[...], 0.0)
        h2 = jnp.maximum(
            jnp.dot(h1, w2_ref[...], preferred_element_type=jnp.float32)
            + b2_ref[...], 0.0)
        logits = (jnp.dot(h2, w3_ref[...], preferred_element_type=jnp.float32)
                  + b3_ref[...])
        m = jnp.max(logits, axis=1, keepdims=True)
        e = jnp.exp(logits - m)
        out_ref[...] = (e / jnp.sum(e, axis=1, keepdims=True)
                        ).astype(out_ref.dtype)


# ---------------------------------------------------------------------------
# Wrapper: parameter folding + single pallas_call.
# ---------------------------------------------------------------------------
def _fold_conv_bn(pc):
    """Fold eval-mode BatchNorm2d into the conv; HWIO -> im2col (KH*KW*Cin, Cout)."""
    scale = pc["gamma"] * jax.lax.rsqrt(pc["var"] + BN_EPS)
    shift = pc["beta"] - pc["mean"] * scale
    KH, KW, Cin, Cout = pc["w"].shape
    w = (pc["w"] * scale[None, None, None, :]).reshape(KH * KW * Cin, Cout)
    b = pc["b"] * scale + shift
    return w.astype(jnp.float32), b.reshape(1, Cout).astype(jnp.float32)


@functools.partial(jax.jit, static_argnames=("use_metric",))
def cnn_forward(params, x_nchw, use_metric):
    x = jnp.transpose(x_nchw, (0, 2, 3, 1)).astype(jnp.float32)   # NCHW -> NHWC
    N, H, W, _ = x.shape

    layer_cfg, conv_inputs = [], []
    curW = W
    for name in ("enc1", "enc2", "enc3", "enc4"):
        pc = params[name]
        KH, KW, cin, cout = pc["w"].shape
        layer_cfg.append((cin, cout, KH, KW))
        wf, bf = _fold_conv_bn(pc)
        conv_inputs += [wf, bf]
        curW //= 2
    W4, C_last = curW, layer_cfg[-1][1]
    feat = C_last * H * W4

    # Flatten BatchNorm1d (eval) affine, in PyTorch (c, h, w) flatten order.
    s = params["bn1d_gamma"] * jax.lax.rsqrt(params["bn1d_var"] + BN_EPS)
    t = params["bn1d_beta"] - params["bn1d_mean"] * s

    if use_metric:
        s_hwc = jnp.transpose(s.reshape(C_last, H, W4), (1, 2, 0))
        t_hwc = jnp.transpose(t.reshape(C_last, H, W4), (1, 2, 0))
        head_inputs = [s_hwc.astype(jnp.float32), t_hwc.astype(jnp.float32)]
        out_shape = jax.ShapeDtypeStruct((N, H, W4, C_last), jnp.float32)
    else:
        # Fold BN1d into Linear1 and pre-permute w1 to (H*W4, C, 512) so the
        # kernel never materializes the PyTorch-order flat vector.
        w1t = params["w1"].T                        # (feat, 512)
        w1f = s[:, None] * w1t
        b1f = params["b1"] + t @ w1t
        w1r = jnp.transpose(w1f.reshape(C_last, H, W4, w1t.shape[1]),
                            (1, 2, 0, 3)).reshape(H * W4, C_last, w1t.shape[1])
        head_inputs = [
            w1r.astype(jnp.float32), b1f.reshape(1, -1).astype(jnp.float32),
            params["w2"].T.astype(jnp.float32),
            params["b2"].reshape(1, -1).astype(jnp.float32),
            params["w3"].T.astype(jnp.float32),
            params["b3"].reshape(1, -1).astype(jnp.float32),
        ]
        out_shape = jax.ShapeDtypeStruct((N, params["w3"].shape[0]), jnp.float32)

    kern = functools.partial(_fused_cnn_kernel, N=N, H=H, W=W,
                             layer_cfg=tuple(layer_cfg), use_metric=use_metric)
    out = pl.pallas_call(
        kern,
        out_shape=out_shape,
        compiler_params=pltpu.CompilerParams(vmem_limit_bytes=64 << 20),
    )(x, *conv_inputs, *head_inputs)

    if use_metric:
        # NHWC block -> PyTorch NCHW flatten order.
        out = jnp.transpose(out, (0, 3, 1, 2)).reshape(N, feat)
    return out


# ---------------------------------------------------------------------------
# Parameter init (deterministic, synthetic).
# ---------------------------------------------------------------------------
def init_params(key, in_size, feat_size, out_size):
    ks = iter(jax.random.split(key, 16))
    p = {}

    def conv_params(cin, cout, kh, kw):
        w = jax.random.normal(next(ks), (cout, cin, kh, kw), jnp.float32) * 0.1
        b = jax.random.normal(next(ks), (cout,), jnp.float32) * 0.1
        bn = dict(gamma=jnp.ones((cout,), jnp.float32),
                  beta=jnp.zeros((cout,), jnp.float32),
                  mean=jnp.zeros((cout,), jnp.float32),
                  var=jnp.ones((cout,), jnp.float32))
        # OIHW -> HWIO
        return dict(w=jnp.transpose(w, (2, 3, 1, 0)), b=b, **bn)

    p["enc1"] = conv_params(in_size, 16, 3, 5)
    p["enc2"] = conv_params(16, 32, 3, 3)
    p["enc3"] = conv_params(32, 64, 3, 3)
    p["enc4"] = conv_params(64, 128, 3, 3)

    p["bn1d_gamma"] = jnp.ones((feat_size,), jnp.float32)
    p["bn1d_beta"] = jnp.zeros((feat_size,), jnp.float32)
    p["bn1d_mean"] = jnp.zeros((feat_size,), jnp.float32)
    p["bn1d_var"] = jnp.ones((feat_size,), jnp.float32)

    p["w1"] = jax.random.normal(next(ks), (512, feat_size), jnp.float32) * 0.05
    p["b1"] = jax.random.normal(next(ks), (512,), jnp.float32) * 0.05
    p["w2"] = jax.random.normal(next(ks), (100, 512), jnp.float32) * 0.05
    p["b2"] = jax.random.normal(next(ks), (100,), jnp.float32) * 0.05
    p["w3"] = jax.random.normal(next(ks), (out_size, 100), jnp.float32) * 0.05
    p["b3"] = jax.random.normal(next(ks), (out_size,), jnp.float32) * 0.05
    return p


if __name__ == "__main__":
    # Small shapes: batch=2, in_size=4 channels, H=4, W=16.
    # Four MaxPool((1,2)) halvings: W 16 -> 8 -> 4 -> 2 -> 1,
    # so feat_size = 128 * 4 * 1 = 512; out_size = 10.
    N, Cin, H, W = 2, 4, 4, 16
    feat_size, out_size = 128 * H * (W // 16), 10
    assert feat_size == 512

    key = jax.random.PRNGKey(0)
    pkey, xkey = jax.random.split(key)
    params = init_params(pkey, Cin, feat_size, out_size)
    x = jax.random.normal(xkey, (N, Cin, H, W), jnp.float32)

    out = cnn_forward(params, x, use_metric=False)
    out = jax.block_until_ready(out)
    assert out.shape == (N, out_size)
    assert bool(jnp.all(jnp.isfinite(out)))
    # softmax rows sum to 1
    assert bool(jnp.allclose(jnp.sum(out, axis=1), 1.0, atol=1e-5))

    out_metric = jax.block_until_ready(cnn_forward(params, x, use_metric=True))
    assert out_metric.shape == (N, feat_size)
    assert bool(jnp.all(jnp.isfinite(out_metric)))

    print("KERNEL_OK")
</pallas_src>

<mosaic_0001>
module attributes {stable_mosaic.version = 11 : i64} {
  func.func @_fused_cnn_kernel(%arg0: memref<2x4x16x4xf32, #tpu.memory_space<vmem>>, %arg1: memref<60x16xf32, #tpu.memory_space<vmem>>, %arg2: memref<1x16xf32, #tpu.memory_space<vmem>>, %arg3: memref<144x32xf32, #tpu.memory_space<vmem>>, %arg4: memref<1x32xf32, #tpu.memory_space<vmem>>, %arg5: memref<288x64xf32, #tpu.memory_space<vmem>>, %arg6: memref<1x64xf32, #tpu.memory_space<vmem>>, %arg7: memref<576x128xf32, #tpu.memory_space<vmem>>, %arg8: memref<1x128xf32, #tpu.memory_space<vmem>>, %arg9: memref<4x128x512xf32, #tpu.memory_space<vmem>>, %arg10: memref<1x512xf32, #tpu.memory_space<vmem>>, %arg11: memref<512x100xf32, #tpu.memory_space<vmem>>, %arg12: memref<1x100xf32, #tpu.memory_space<vmem>>, %arg13: memref<100x10xf32, #tpu.memory_space<vmem>>, %arg14: memref<1x10xf32, #tpu.memory_space<vmem>>, %arg15: memref<2x10xf32, #tpu.memory_space<vmem>>) attributes {dimension_semantics = [], scalar_prefetch = 0 : i64, scratch_operands = 0 : i64, tpu.core_type = #tpu.core_type<tc>} {
    %c0 = arith.constant 0 : index
    %c0_0 = arith.constant 0 : index
    %c0_1 = arith.constant 0 : index
    %c0_2 = arith.constant 0 : index
    %0 = vector.load %arg0[%c0, %c0_0, %c0_1, %c0_2] : memref<2x4x16x4xf32, #tpu.memory_space<vmem>>, vector<2x4x16x4xf32>
    %cst = arith.constant 0.000000e+00 : f32
    %1 = vector.broadcast %cst : f32 to vector<2x1x16x4xf32>
    %2 = tpu.concatenate %1, %0, %1 in 1 : vector<2x1x16x4xf32>, vector<2x4x16x4xf32>, vector<2x1x16x4xf32> -> vector<2x6x16x4xf32>
    %cst_3 = arith.constant 0.000000e+00 : f32
    %3 = vector.broadcast %cst_3 : f32 to vector<2x6x2x4xf32>
    %4 = tpu.concatenate %3, %2, %3 in 2 : vector<2x6x2x4xf32>, vector<2x6x16x4xf32>, vector<2x6x2x4xf32> -> vector<2x6x20x4xf32>
    %5 = vector.extract_strided_slice %4 {offsets = [0, 0, 0, 0], sizes = [2, 4, 16, 4], strides = [1, 1, 1, 1]} : vector<2x6x20x4xf32> to vector<2x4x16x4xf32>
    %6 = vector.extract_strided_slice %4 {offsets = [0, 0, 1, 0], sizes = [2, 4, 16, 4], strides = [1, 1, 1, 1]} : vector<2x6x20x4xf32> to vector<2x4x16x4xf32>
    %7 = vector.extract_strided_slice %4 {offsets = [0, 0, 2, 0], sizes = [2, 4, 16, 4], strides = [1, 1, 1, 1]} : vector<2x6x20x4xf32> to vector<2x4x16x4xf32>
    %8 = vector.extract_strided_slice %4 {offsets = [0, 0, 3, 0], sizes = [2, 4, 16, 4], strides = [1, 1, 1, 1]} : vector<2x6x20x4xf32> to vector<2x4x16x4xf32>
    %9 = vector.extract_strided_slice %4 {offsets = [0, 0, 4, 0], sizes = [2, 4, 16, 4], strides = [1, 1, 1, 1]} : vector<2x6x20x4xf32> to vector<2x4x16x4xf32>
    %10 = vector.extract_strided_slice %4 {offsets = [0, 1, 0, 0], sizes = [2, 4, 16, 4], strides = [1, 1, 1, 1]} : vector<2x6x20x4xf32> to vector<2x4x16x4xf32>
    %11 = vector.extract_strided_slice %4 {offsets = [0, 1, 1, 0], sizes = [2, 4, 16, 4], strides = [1, 1, 1, 1]} : vector<2x6x20x4xf32> to vector<2x4x16x4xf32>
    %12 = vector.extract_strided_slice %4 {offsets = [0, 1, 2, 0], sizes = [2, 4, 16, 4], strides = [1, 1, 1, 1]} : vector<2x6x20x4xf32> to vector<2x4x16x4xf32>
    %13 = vector.extract_strided_slice %4 {offsets = [0, 1, 3, 0], sizes = [2, 4, 16, 4], strides = [1, 1, 1, 1]} : vector<2x6x20x4xf32> to vector<2x4x16x4xf32>
    %14 = vector.extract_strided_slice %4 {offsets = [0, 1, 4, 0], sizes = [2, 4, 16, 4], strides = [1, 1, 1, 1]} : vector<2x6x20x4xf32> to vector<2x4x16x4xf32>
    %15 = vector.extract_strided_slice %4 {offsets = [0, 2, 0, 0], sizes = [2, 4, 16, 4], strides = [1, 1, 1, 1]} : vector<2x6x20x4xf32> to vector<2x4x16x4xf32>
    %16 = vector.extract_strided_slice %4 {offsets = [0, 2, 1, 0], sizes = [2, 4, 16, 4], strides = [1, 1, 1, 1]} : vector<2x6x20x4xf32> to vector<2x4x16x4xf32>
    %17 = vector.extract_strided_slice %4 {offsets = [0, 2, 2, 0], sizes = [2, 4, 16, 4], strides = [1, 1, 1, 1]} : vector<2x6x20x4xf32> to vector<2x4x16x4xf32>
    %18 = vector.extract_strided_slice %4 {offsets = [0, 2, 3, 0], sizes = [2, 4, 16, 4], strides = [1, 1, 1, 1]} : vector<2x6x20x4xf32> to vector<2x4x16x4xf32>
    %19 = vector.extract_strided_slice %4 {offsets = [0, 2, 4, 0], sizes = [2, 4, 16, 4], strides = [1, 1, 1, 1]} : vector<2x6x20x4xf32> to vector<2x4x16x4xf32>
    %20 = tpu.concatenate %5, %6, %7, %8, %9, %10, %11, %12, %13, %14, %15, %16, %17, %18, %19 in 3 : vector<2x4x16x4xf32>, vector<2x4x16x4xf32>, vector<2x4x16x4xf32>, vector<2x4x16x4xf32>, vector<2x4x16x4xf32>, vector<2x4x16x4xf32>, vector<2x4x16x4xf32>, vector<2x4x16x4xf32>, vector<2x4x16x4xf32>, vector<2x4x16x4xf32>, vector<2x4x16x4xf32>, vector<2x4x16x4xf32>, vector<2x4x16x4xf32>, vector<2x4x16x4xf32>, vector<2x4x16x4xf32> -> vector<2x4x16x60xf32>
    %21 = vector.shape_cast %20 : vector<2x4x16x60xf32> to vector<128x60xf32>
    %c0_4 = arith.constant 0 : index
    %c0_5 = arith.constant 0 : index
    %22 = vector.load %arg1[%c0_4, %c0_5] : memref<60x16xf32, #tpu.memory_space<vmem>>, vector<60x16xf32>
    %cst_6 = arith.constant dense<0.000000e+00> : vector<128x16xf32>
    %23 = tpu.matmul %21, %22, %cst_6 {dimension_numbers = #tpu.dot_dimension_numbers<[1], [0], [0], [1], [0, 0, 1, 1], [], []>} : vector<128x60xf32>, vector<60x16xf32>, vector<128x16xf32> -> vector<128x16xf32>
    %c0_7 = arith.constant 0 : index
    %c0_8 = arith.constant 0 : index
    %24 = vector.load %arg2[%c0_7, %c0_8] : memref<1x16xf32, #tpu.memory_space<vmem>>, vector<1x16xf32>
    %25 = vector.broadcast %24 : vector<1x16xf32> to vector<128x16xf32>
    %26 = arith.addf %23, %25 : vector<128x16xf32>
    %cst_9 = arith.constant 0.000000e+00 : f32
    %27 = vector.broadcast %cst_9 : f32 to vector<128x16xf32>
    %28 = arith.maximumf %26, %27 : vector<128x16xf32>
    %29 = vector.shape_cast %28 : vector<128x16xf32> to vector<64x2x16xf32>
    %cst_10 = arith.constant dense<0xFF800000> : vector<64x16xf32>
    %30 = vector.multi_reduction <maximumf>, %29, %cst_10 [1] : vector<64x2x16xf32> to vector<64x16xf32>
    %31 = vector.shape_cast %30 : vector<64x16xf32> to vector<2x4x8x16xf32>
    %cst_11 = arith.constant 0.000000e+00 : f32
    %32 = vector.broadcast %cst_11 : f32 to vector<2x1x8x16xf32>
    %33 = tpu.concatenate %32, %31, %32 in 1 : vector<2x1x8x16xf32>, vector<2x4x8x16xf32>, vector<2x1x8x16xf32> -> vector<2x6x8x16xf32>
    %cst_12 = arith.constant 0.000000e+00 : f32
    %34 = vector.broadcast %cst_12 : f32 to vector<2x6x1x16xf32>
    %35 = tpu.concatenate %34, %33, %34 in 2 : vector<2x6x1x16xf32>, vector<2x6x8x16xf32>, vector<2x6x1x16xf32> -> vector<2x6x10x16xf32>
    %36 = vector.extract_strided_slice %35 {offsets = [0, 0, 0, 0], sizes = [2, 4, 8, 16], strides = [1, 1, 1, 1]} : vector<2x6x10x16xf32> to vector<2x4x8x16xf32>
    %37 = vector.extract_strided_slice %35 {offsets = [0, 0, 1, 0], sizes = [2, 4, 8, 16], strides = [1, 1, 1, 1]} : vector<2x6x10x16xf32> to vector<2x4x8x16xf32>
    %38 = vector.extract_strided_slice %35 {offsets = [0, 0, 2, 0], sizes = [2, 4, 8, 16], strides = [1, 1, 1, 1]} : vector<2x6x10x16xf32> to vector<2x4x8x16xf32>
    %39 = vector.extract_strided_slice %35 {offsets = [0, 1, 0, 0], sizes = [2, 4, 8, 16], strides = [1, 1, 1, 1]} : vector<2x6x10x16xf32> to vector<2x4x8x16xf32>
    %40 = vector.extract_strided_slice %35 {offsets = [0, 1, 1, 0], sizes = [2, 4, 8, 16], strides = [1, 1, 1, 1]} : vector<2x6x10x16xf32> to vector<2x4x8x16xf32>
    %41 = vector.extract_strided_slice %35 {offsets = [0, 1, 2, 0], sizes = [2, 4, 8, 16], strides = [1, 1, 1, 1]} : vector<2x6x10x16xf32> to vector<2x4x8x16xf32>
    %42 = vector.extract_strided_slice %35 {offsets = [0, 2, 0, 0], sizes = [2, 4, 8, 16], strides = [1, 1, 1, 1]} : vector<2x6x10x16xf32> to vector<2x4x8x16xf32>
    %43 = vector.extract_strided_slice %35 {offsets = [0, 2, 1, 0], sizes = [2, 4, 8, 16], strides = [1, 1, 1, 1]} : vector<2x6x10x16xf32> to vector<2x4x8x16xf32>
    %44 = vector.extract_strided_slice %35 {offsets = [0, 2, 2, 0], sizes = [2, 4, 8, 16], strides = [1, 1, 1, 1]} : vector<2x6x10x16xf32> to vector<2x4x8x16xf32>
    %45 = tpu.concatenate %36, %37, %38, %39, %40, %41, %42, %43, %44 in 3 : vector<2x4x8x16xf32>, vector<2x4x8x16xf32>, vector<2x4x8x16xf32>, vector<2x4x8x16xf32>, vector<2x4x8x16xf32>, vector<2x4x8x16xf32>, vector<2x4x8x16xf32>, vector<2x4x8x16xf32>, vector<2x4x8x16xf32> -> vector<2x4x8x144xf32>
    %46 = vector.shape_cast %45 : vector<2x4x8x144xf32> to vector<64x144xf32>
    %c0_13 = arith.constant 0 : index
    %c0_14 = arith.constant 0 : index
    %47 = vector.load %arg3[%c0_13, %c0_14] : memref<144x32xf32, #tpu.memory_space<vmem>>, vector<144x32xf32>
    %cst_15 = arith.constant dense<0.000000e+00> : vector<64x32xf32>
    %48 = tpu.matmul %46, %47, %cst_15 {dimension_numbers = #tpu.dot_dimension_numbers<[1], [0], [0], [1], [0, 0, 1, 1], [], []>} : vector<64x144xf32>, vector<144x32xf32>, vector<64x32xf32> -> vector<64x32xf32>
    %c0_16 = arith.constant 0 : index
    %c0_17 = arith.constant 0 : index
    %49 = vector.load %arg4[%c0_16, %c0_17] : memref<1x32xf32, #tpu.memory_space<vmem>>, vector<1x32xf32>
    %50 = vector.broadcast %49 : vector<1x32xf32> to vector<64x32xf32>
    %51 = arith.addf %48, %50 : vector<64x32xf32>
    %cst_18 = arith.constant 0.000000e+00 : f32
    %52 = vector.broadcast %cst_18 : f32 to vector<64x32xf32>
    %53 = arith.maximumf %51, %52 : vector<64x32xf32>
    %54 = vector.shape_cast %53 : vector<64x32xf32> to vector<32x2x32xf32>
    %cst_19 = arith.constant dense<0xFF800000> : vector<32x32xf32>
    %55 = vector.multi_reduction <maximumf>, %54, %cst_19 [1] : vector<32x2x32xf32> to vector<32x32xf32>
    %56 = vector.shape_cast %55 : vector<32x32xf32> to vector<2x4x4x32xf32>
    %cst_20 = arith.constant 0.000000e+00 : f32
    %57 = vector.broadcast %cst_20 : f32 to vector<2x1x4x32xf32>
    %58 = tpu.concatenate %57, %56, %57 in 1 : vector<2x1x4x32xf32>, vector<2x4x4x32xf32>, vector<2x1x4x32xf32> -> vector<2x6x4x32xf32>
    %cst_21 = arith.constant 0.000000e+00 : f32
    %59 = vector.broadcast %cst_21 : f32 to vector<2x6x1x32xf32>
    %60 = tpu.concatenate %59, %58, %59 in 2 : vector<2x6x1x32xf32>, vector<2x6x4x32xf32>, vector<2x6x1x32xf32> -> vector<2x6x6x32xf32>
    %61 = vector.extract_strided_slice %60 {offsets = [0, 0, 0, 0], sizes = [2, 4, 4, 32], strides = [1, 1, 1, 1]} : vector<2x6x6x32xf32> to vector<2x4x4x32xf32>
    %62 = vector.extract_strided_slice %60 {offsets = [0, 0, 1, 0], sizes = [2, 4, 4, 32], strides = [1, 1, 1, 1]} : vector<2x6x6x32xf32> to vector<2x4x4x32xf32>
    %63 = vector.extract_strided_slice %60 {offsets = [0, 0, 2, 0], sizes = [2, 4, 4, 32], strides = [1, 1, 1, 1]} : vector<2x6x6x32xf32> to vector<2x4x4x32xf32>
    %64 = vector.extract_strided_slice %60 {offsets = [0, 1, 0, 0], sizes = [2, 4, 4, 32], strides = [1, 1, 1, 1]} : vector<2x6x6x32xf32> to vector<2x4x4x32xf32>
    %65 = vector.extract_strided_slice %60 {offsets = [0, 1, 1, 0], sizes = [2, 4, 4, 32], strides = [1, 1, 1, 1]} : vector<2x6x6x32xf32> to vector<2x4x4x32xf32>
    %66 = vector.extract_strided_slice %60 {offsets = [0, 1, 2, 0], sizes = [2, 4, 4, 32], strides = [1, 1, 1, 1]} : vector<2x6x6x32xf32> to vector<2x4x4x32xf32>
    %67 = vector.extract_strided_slice %60 {offsets = [0, 2, 0, 0], sizes = [2, 4, 4, 32], strides = [1, 1, 1, 1]} : vector<2x6x6x32xf32> to vector<2x4x4x32xf32>
    %68 = vector.extract_strided_slice %60 {offsets = [0, 2, 1, 0], sizes = [2, 4, 4, 32], strides = [1, 1, 1, 1]} : vector<2x6x6x32xf32> to vector<2x4x4x32xf32>
    %69 = vector.extract_strided_slice %60 {offsets = [0, 2, 2, 0], sizes = [2, 4, 4, 32], strides = [1, 1, 1, 1]} : vector<2x6x6x32xf32> to vector<2x4x4x32xf32>
    %70 = tpu.concatenate %61, %62, %63, %64, %65, %66, %67, %68, %69 in 3 : vector<2x4x4x32xf32>, vector<2x4x4x32xf32>, vector<2x4x4x32xf32>, vector<2x4x4x32xf32>, vector<2x4x4x32xf32>, vector<2x4x4x32xf32>, vector<2x4x4x32xf32>, vector<2x4x4x32xf32>, vector<2x4x4x32xf32> -> vector<2x4x4x288xf32>
    %71 = vector.shape_cast %70 : vector<2x4x4x288xf32> to vector<32x288xf32>
    %c0_22 = arith.constant 0 : index
    %c0_23 = arith.constant 0 : index
    %72 = vector.load %arg5[%c0_22, %c0_23] : memref<288x64xf32, #tpu.memory_space<vmem>>, vector<288x64xf32>
    %cst_24 = arith.constant dense<0.000000e+00> : vector<32x64xf32>
    %73 = tpu.matmul %71, %72, %cst_24 {dimension_numbers = #tpu.dot_dimension_numbers<[1], [0], [0], [1], [0, 0, 1, 1], [], []>} : vector<32x288xf32>, vector<288x64xf32>, vector<32x64xf32> -> vector<32x64xf32>
    %c0_25 = arith.constant 0 : index
    %c0_26 = arith.constant 0 : index
    %74 = vector.load %arg6[%c0_25, %c0_26] : memref<1x64xf32, #tpu.memory_space<vmem>>, vector<1x64xf32>
    %75 = vector.broadcast %74 : vector<1x64xf32> to vector<32x64xf32>
    %76 = arith.addf %73, %75 : vector<32x64xf32>
    %cst_27 = arith.constant 0.000000e+00 : f32
    %77 = vector.broadcast %cst_27 : f32 to vector<32x64xf32>
    %78 = arith.maximumf %76, %77 : vector<32x64xf32>
    %79 = vector.shape_cast %78 : vector<32x64xf32> to vector<16x2x64xf32>
    %cst_28 = arith.constant dense<0xFF800000> : vector<16x64xf32>
    %80 = vector.multi_reduction <maximumf>, %79, %cst_28 [1] : vector<16x2x64xf32> to vector<16x64xf32>
    %81 = vector.shape_cast %80 : vector<16x64xf32> to vector<2x4x2x64xf32>
    %cst_29 = arith.constant 0.000000e+00 : f32
    %82 = vector.broadcast %cst_29 : f32 to vector<2x1x2x64xf32>
    %83 = tpu.concatenate %82, %81, %82 in 1 : vector<2x1x2x64xf32>, vector<2x4x2x64xf32>, vector<2x1x2x64xf32> -> vector<2x6x2x64xf32>
    %cst_30 = arith.constant 0.000000e+00 : f32
    %84 = vector.broadcast %cst_30 : f32 to vector<2x6x1x64xf32>
    %85 = tpu.concatenate %84, %83, %84 in 2 : vector<2x6x1x64xf32>, vector<2x6x2x64xf32>, vector<2x6x1x64xf32> -> vector<2x6x4x64xf32>
    %86 = vector.extract_strided_slice %85 {offsets = [0, 0, 0, 0], sizes = [2, 4, 2, 64], strides = [1, 1, 1, 1]} : vector<2x6x4x64xf32> to vector<2x4x2x64xf32>
    %87 = vector.extract_strided_slice %85 {offsets = [0, 0, 1, 0], sizes = [2, 4, 2, 64], strides = [1, 1, 1, 1]} : vector<2x6x4x64xf32> to vector<2x4x2x64xf32>
    %88 = vector.extract_strided_slice %85 {offsets = [0, 0, 2, 0], sizes = [2, 4, 2, 64], strides = [1, 1, 1, 1]} : vector<2x6x4x64xf32> to vector<2x4x2x64xf32>
    %89 = vector.extract_strided_slice %85 {offsets = [0, 1, 0, 0], sizes = [2, 4, 2, 64], strides = [1, 1, 1, 1]} : vector<2x6x4x64xf32> to vector<2x4x2x64xf32>
    %90 = vector.extract_strided_slice %85 {offsets = [0, 1, 1, 0], sizes = [2, 4, 2, 64], strides = [1, 1, 1, 1]} : vector<2x6x4x64xf32> to vector<2x4x2x64xf32>
    %91 = vector.extract_strided_slice %85 {offsets = [0, 1, 2, 0], sizes = [2, 4, 2, 64], strides = [1, 1, 1, 1]} : vector<2x6x4x64xf32> to vector<2x4x2x64xf32>
    %92 = vector.extract_strided_slice %85 {offsets = [0, 2, 0, 0], sizes = [2, 4, 2, 64], strides = [1, 1, 1, 1]} : vector<2x6x4x64xf32> to vector<2x4x2x64xf32>
    %93 = vector.extract_strided_slice %85 {offsets = [0, 2, 1, 0], sizes = [2, 4, 2, 64], strides = [1, 1, 1, 1]} : vector<2x6x4x64xf32> to vector<2x4x2x64xf32>
    %94 = vector.extract_strided_slice %85 {offsets = [0, 2, 2, 0], sizes = [2, 4, 2, 64], strides = [1, 1, 1, 1]} : vector<2x6x4x64xf32> to vector<2x4x2x64xf32>
    %95 = tpu.concatenate %86, %87, %88, %89, %90, %91, %92, %93, %94 in 3 : vector<2x4x2x64xf32>, vector<2x4x2x64xf32>, vector<2x4x2x64xf32>, vector<2x4x2x64xf32>, vector<2x4x2x64xf32>, vector<2x4x2x64xf32>, vector<2x4x2x64xf32>, vector<2x4x2x64xf32>, vector<2x4x2x64xf32> -> vector<2x4x2x576xf32>
    %96 = vector.shape_cast %95 : vector<2x4x2x576xf32> to vector<16x576xf32>
    %c0_31 = arith.constant 0 : index
    %c0_32 = arith.constant 0 : index
    %97 = vector.load %arg7[%c0_31, %c0_32] : memref<576x128xf32, #tpu.memory_space<vmem>>, vector<576x128xf32>
    %cst_33 = arith.constant dense<0.000000e+00> : vector<16x128xf32>
    %98 = tpu.matmul %96, %97, %cst_33 {dimension_numbers = #tpu.dot_dimension_numbers<[1], [0], [0], [1], [0, 0, 1, 1], [], []>} : vector<16x576xf32>, vector<576x128xf32>, vector<16x128xf32> -> vector<16x128xf32>
    %c0_34 = arith.constant 0 : index
    %c0_35 = arith.constant 0 : index
    %99 = vector.load %arg8[%c0_34, %c0_35] : memref<1x128xf32, #tpu.memory_space<vmem>>, vector<1x128xf32>
    %100 = vector.broadcast %99 : vector<1x128xf32> to vector<16x128xf32>
    %101 = arith.addf %98, %100 : vector<16x128xf32>
    %cst_36 = arith.constant 0.000000e+00 : f32
    %102 = vector.broadcast %cst_36 : f32 to vector<16x128xf32>
    %103 = arith.maximumf %101, %102 : vector<16x128xf32>
    %104 = vector.shape_cast %103 : vector<16x128xf32> to vector<8x2x128xf32>
    %cst_37 = arith.constant dense<0xFF800000> : vector<8x128xf32>
    %105 = vector.multi_reduction <maximumf>, %104, %cst_37 [1] : vector<8x2x128xf32> to vector<8x128xf32>
    %106 = vector.shape_cast %105 : vector<8x128xf32> to vector<2x4x1x128xf32>
    %107 = vector.shape_cast %106 : vector<2x4x1x128xf32> to vector<2x4x128xf32>
    %cst_38 = arith.constant 0.000000e+00 : f32
    %108 = vector.broadcast %cst_38 : f32 to vector<2x512xf32>
    %109 = vector.extract_strided_slice %107 {offsets = [0, 0, 0], sizes = [2, 1, 128], strides = [1, 1, 1]} : vector<2x4x128xf32> to vector<2x1x128xf32>
    %110 = vector.shape_cast %109 : vector<2x1x128xf32> to vector<2x128xf32>
    %c0_39 = arith.constant 0 : index
    %c0_40 = arith.constant 0 : index
    %c0_41 = arith.constant 0 : index
    %111 = vector.load %arg9[%c0_39, %c0_40, %c0_41] : memref<4x128x512xf32, #tpu.memory_space<vmem>>, vector<1x128x512xf32>
    %112 = vector.shape_cast %111 : vector<1x128x512xf32> to vector<128x512xf32>
    %cst_42 = arith.constant dense<0.000000e+00> : vector<2x512xf32>
    %113 = tpu.matmul %110, %112, %cst_42 {dimension_numbers = #tpu.dot_dimension_numbers<[1], [0], [0], [1], [0, 0, 1, 1], [], []>} : vector<2x128xf32>, vector<128x512xf32>, vector<2x512xf32> -> vector<2x512xf32>
    %114 = arith.addf %108, %113 : vector<2x512xf32>
    %115 = vector.extract_strided_slice %107 {offsets = [0, 1, 0], sizes = [2, 1, 128], strides = [1, 1, 1]} : vector<2x4x128xf32> to vector<2x1x128xf32>
    %116 = vector.shape_cast %115 : vector<2x1x128xf32> to vector<2x128xf32>
    %c1 = arith.constant 1 : index
    %c0_43 = arith.constant 0 : index
    %c0_44 = arith.constant 0 : index
    %117 = vector.load %arg9[%c1, %c0_43, %c0_44] : memref<4x128x512xf32, #tpu.memory_space<vmem>>, vector<1x128x512xf32>
    %118 = vector.shape_cast %117 : vector<1x128x512xf32> to vector<128x512xf32>
    %cst_45 = arith.constant dense<0.000000e+00> : vector<2x512xf32>
    %119 = tpu.matmul %116, %118, %cst_45 {dimension_numbers = #tpu.dot_dimension_numbers<[1], [0], [0], [1], [0, 0, 1, 1], [], []>} : vector<2x128xf32>, vector<128x512xf32>, vector<2x512xf32> -> vector<2x512xf32>
    %120 = arith.addf %114, %119 : vector<2x512xf32>
    %121 = vector.extract_strided_slice %107 {offsets = [0, 2, 0], sizes = [2, 1, 128], strides = [1, 1, 1]} : vector<2x4x128xf32> to vector<2x1x128xf32>
    %122 = vector.shape_cast %121 : vector<2x1x128xf32> to vector<2x128xf32>
    %c2 = arith.constant 2 : index
    %c0_46 = arith.constant 0 : index
    %c0_47 = arith.constant 0 : index
    %123 = vector.load %arg9[%c2, %c0_46, %c0_47] : memref<4x128x512xf32, #tpu.memory_space<vmem>>, vector<1x128x512xf32>
    %124 = vector.shape_cast %123 : vector<1x128x512xf32> to vector<128x512xf32>
    %cst_48 = arith.constant dense<0.000000e+00> : vector<2x512xf32>
    %125 = tpu.matmul %122, %124, %cst_48 {dimension_numbers = #tpu.dot_dimension_numbers<[1], [0], [0], [1], [0, 0, 1, 1], [], []>} : vector<2x128xf32>, vector<128x512xf32>, vector<2x512xf32> -> vector<2x512xf32>
    %126 = arith.addf %120, %125 : vector<2x512xf32>
    %127 = vector.extract_strided_slice %107 {offsets = [0, 3, 0], sizes = [2, 1, 128], strides = [1, 1, 1]} : vector<2x4x128xf32> to vector<2x1x128xf32>
    %128 = vector.shape_cast %127 : vector<2x1x128xf32> to vector<2x128xf32>
    %c3 = arith.constant 3 : index
    %c0_49 = arith.constant 0 : index
    %c0_50 = arith.constant 0 : index
    %129 = vector.load %arg9[%c3, %c0_49, %c0_50] : memref<4x128x512xf32, #tpu.memory_space<vmem>>, vector<1x128x512xf32>
    %130 = vector.shape_cast %129 : vector<1x128x512xf32> to vector<128x512xf32>
    %cst_51 = arith.constant dense<0.000000e+00> : vector<2x512xf32>
    %131 = tpu.matmul %128, %130, %cst_51 {dimension_numbers = #tpu.dot_dimension_numbers<[1], [0], [0], [1], [0, 0, 1, 1], [], []>} : vector<2x128xf32>, vector<128x512xf32>, vector<2x512xf32> -> vector<2x512xf32>
    %132 = arith.addf %126, %131 : vector<2x512xf32>
    %c0_52 = arith.constant 0 : index
    %c0_53 = arith.constant 0 : index
    %133 = vector.load %arg10[%c0_52, %c0_53] : memref<1x512xf32, #tpu.memory_space<vmem>>, vector<1x512xf32>
    %134 = vector.broadcast %133 : vector<1x512xf32> to vector<2x512xf32>
    %135 = arith.addf %132, %134 : vector<2x512xf32>
    %cst_54 = arith.constant 0.000000e+00 : f32
    %136 = vector.broadcast %cst_54 : f32 to vector<2x512xf32>
    %137 = arith.maximumf %135, %136 : vector<2x512xf32>
    %c0_55 = arith.constant 0 : index
    %c0_56 = arith.constant 0 : index
    %138 = vector.load %arg11[%c0_55, %c0_56] : memref<512x100xf32, #tpu.memory_space<vmem>>, vector<512x100xf32>
    %cst_57 = arith.constant dense<0.000000e+00> : vector<2x100xf32>
    %139 = tpu.matmul %137, %138, %cst_57 {dimension_numbers = #tpu.dot_dimension_numbers<[1], [0], [0], [1], [0, 0, 1, 1], [], []>} : vector<2x512xf32>, vector<512x100xf32>, vector<2x100xf32> -> vector<2x100xf32>
    %c0_58 = arith.constant 0 : index
    %c0_59 = arith.constant 0 : index
    %140 = vector.load %arg12[%c0_58, %c0_59] : memref<1x100xf32, #tpu.memory_space<vmem>>, vector<1x100xf32>
    %141 = vector.broadcast %140 : vector<1x100xf32> to vector<2x100xf32>
    %142 = arith.addf %139, %141 : vector<2x100xf32>
    %cst_60 = arith.constant 0.000000e+00 : f32
    %143 = vector.broadcast %cst_60 : f32 to vector<2x100xf32>
    %144 = arith.maximumf %142, %143 : vector<2x100xf32>
    %c0_61 = arith.constant 0 : index
    %c0_62 = arith.constant 0 : index
    %145 = vector.load %arg13[%c0_61, %c0_62] : memref<100x10xf32, #tpu.memory_space<vmem>>, vector<100x10xf32>
    %cst_63 = arith.constant dense<0.000000e+00> : vector<2x10xf32>
    %146 = tpu.matmul %144, %145, %cst_63 {dimension_numbers = #tpu.dot_dimension_numbers<[1], [0], [0], [1], [0, 0, 1, 1], [], []>} : vector<2x100xf32>, vector<100x10xf32>, vector<2x10xf32> -> vector<2x10xf32>
    %c0_64 = arith.constant 0 : index
    %c0_65 = arith.constant 0 : index
    %147 = vector.load %arg14[%c0_64, %c0_65] : memref<1x10xf32, #tpu.memory_space<vmem>>, vector<1x10xf32>
    %148 = vector.broadcast %147 : vector<1x10xf32> to vector<2x10xf32>
    %149 = arith.addf %146, %148 : vector<2x10xf32>
    %cst_66 = arith.constant dense<0xFF800000> : vector<2xf32>
    %150 = vector.multi_reduction <maximumf>, %149, %cst_66 [1] : vector<2x10xf32> to vector<2xf32>
    %151 = vector.shape_cast %150 : vector<2xf32> to vector<2x1xf32>
    %152 = vector.broadcast %151 : vector<2x1xf32> to vector<2x10xf32>
    %153 = arith.subf %149, %152 : vector<2x10xf32>
    %154 = math.exp %153 : vector<2x10xf32>
    %cst_67 = arith.constant dense<0.000000e+00> : vector<2xf32>
    %155 = vector.multi_reduction <add>, %154, %cst_67 [1] : vector<2x10xf32> to vector<2xf32>
    %156 = vector.shape_cast %155 : vector<2xf32> to vector<2x1xf32>
    %157 = vector.broadcast %156 : vector<2x1xf32> to vector<2x10xf32>
    %158 = arith.divf %154, %157 : vector<2x10xf32>
    %c0_68 = arith.constant 0 : index
    %c0_69 = arith.constant 0 : index
    %159 = vector.load %arg15[%c0_68, %c0_69] : memref<2x10xf32, #tpu.memory_space<vmem>>, vector<2x10xf32>
    tpu.vector_store %arg15[%c0_68, %c0_69], %158 {strides = array<i32>} : memref<2x10xf32, #tpu.memory_space<vmem>>, vector<2x10xf32>,
    return
  }
}

</mosaic_0001>

<llo_original>
// kernel: cnn_forward.1
$region0: #{cnn_forward.1}
  #allocation0 [shape = 'u32[]', space=smem, size = 0x4, offset = 0x4, fixed_abs, tag = 'smem constant byte address 0x4 - core index']
  #allocation1 [shape = 'u32[144,128]{1,0:T(1,128)}', space=vmem, size = 0x12000, scoped, tag = 'internal scratch']
  %s0 = inlined_call_operand.hbm [shape: f32[2,4,16,4], index: 0, kind: input, shape index: {}]
  %s1 = inlined_call_operand.hbm [shape: f32[60,16], index: 1, kind: input, shape index: {}]
  %s2 = inlined_call_operand.hbm [shape: f32[1,16], index: 2, kind: input, shape index: {}]
  %s3 = inlined_call_operand.hbm [shape: f32[144,32], index: 3, kind: input, shape index: {}]
  %s4 = inlined_call_operand.hbm [shape: f32[1,32], index: 4, kind: input, shape index: {}]
  %s5 = inlined_call_operand.hbm [shape: f32[288,64], index: 5, kind: input, shape index: {}]
  %s6 = inlined_call_operand.hbm [shape: f32[1,64], index: 6, kind: input, shape index: {}]
  %s7 = inlined_call_operand.hbm [shape: f32[576,128], index: 7, kind: input, shape index: {}]
  %s8 = inlined_call_operand.hbm [shape: f32[1,128], index: 8, kind: input, shape index: {}]
  %s9 = inlined_call_operand.hbm [shape: f32[4,128,512], index: 9, kind: input, shape index: {}]
  %s10 = inlined_call_operand.hbm [shape: f32[1,512], index: 10, kind: input, shape index: {}]
  %s11 = inlined_call_operand.hbm [shape: f32[512,100], index: 11, kind: input, shape index: {}]
  %s12 = inlined_call_operand.hbm [shape: f32[1,100], index: 12, kind: input, shape index: {}]
  %s13 = inlined_call_operand.hbm [shape: f32[100,10], index: 13, kind: input, shape index: {}]
  %s14 = inlined_call_operand.hbm [shape: f32[1,10], index: 14, kind: input, shape index: {}]
  %s15 = inlined_call_operand.hbm [shape: f32[2,10], index: 15, kind: output, shape index: {}]
  %s16 = sld [smem:[#allocation0]]
  $region130: #{cnn_forward.1} parent=0
    _
  %s18 = ssub.s32 1, %s16
  %s19 = scalar_select 0, %s18, %s16
  $region1: #{cnn_forward.1} parent=0
    #allocation2 [shape = 'u8[65536]{0}', space=vmem, size = 0x10000, scoped, tag = 'input window, operand 0, single buffered']
    #allocation3 [shape = 's32[1]{0}', space=sflag, size = 0x4, scoped, tag = 'scoped memory for cnn_forward.1']
    #allocation4 [shape = 's32[1]{0}', space=sflag, size = 0x4, scoped, tag = 'scoped memory for cnn_forward.1']
    #allocation5 [shape = 'u8[32768]{0}', space=vmem, size = 0x8000, scoped, tag = 'input window, operand 1, single buffered']
    #allocation6 [shape = 's32[1]{0}', space=sflag, size = 0x4, scoped, tag = 'scoped memory for cnn_forward.1']
    #allocation7 [shape = 'u8[512]{0}', space=vmem, size = 0x400, scoped, tag = 'input window, operand 2, single buffered']
    #allocation8 [shape = 'u8[73728]{0}', space=vmem, size = 0x12000, scoped, tag = 'input window, operand 3, single buffered']
    #allocation9 [shape = 's32[1]{0}', space=sflag, size = 0x4, scoped, tag = 'scoped memory for cnn_forward.1']
    #allocation10 [shape = 'u8[512]{0}', space=vmem, size = 0x400, scoped, tag = 'input window, operand 4, single buffered']
    #allocation11 [shape = 'u8[147456]{0}', space=vmem, size = 0x24000, scoped, tag = 'input window, operand 5, single buffered']
    #allocation12 [shape = 's32[1]{0}', space=sflag, size = 0x4, scoped, tag = 'scoped memory for cnn_forward.1']
    #allocation13 [shape = 'u8[512]{0}', space=vmem, size = 0x400, scoped, tag = 'input window, operand 6, single buffered']
    #allocation14 [shape = 'u8[294912]{0}', space=vmem, size = 0x48000, scoped, tag = 'input window, operand 7, single buffered']
    #allocation15 [shape = 's32[1]{0}', space=sflag, size = 0x4, scoped, tag = 'scoped memory for cnn_forward.1']
    #allocation16 [shape = 'u8[512]{0}', space=vmem, size = 0x400, scoped, tag = 'input window, operand 8, single buffered']
    #allocation17 [shape = 'u8[1048576]{0}', space=vmem, size = 0x100000, scoped, tag = 'input window, operand 9, single buffered']
    #allocation18 [shape = 's32[1]{0}', space=sflag, size = 0x4, scoped, tag = 'scoped memory for cnn_forward.1']
    #allocation19 [shape = 'u8[2048]{0}', space=vmem, size = 0x800, scoped, tag = 'input window, operand 10, single buffered']
    #allocation20 [shape = 'u8[262144]{0}', space=vmem, size = 0x40000, scoped, tag = 'input window, operand 11, single buffered']
    #allocation21 [shape = 's32[1]{0}', space=sflag, size = 0x4, scoped, tag = 'scoped memory for cnn_forward.1']
    #allocation22 [shape = 'u8[512]{0}', space=vmem, size = 0x400, scoped, tag = 'input window, operand 12, single buffered']
    #allocation23 [shape = 'u8[53248]{0}', space=vmem, size = 0xd000, scoped, tag = 'input window, operand 13, single buffered']
    #allocation24 [shape = 's32[1]{0}', space=sflag, size = 0x4, scoped, tag = 'scoped memory for cnn_forward.1']
    #allocation25 [shape = 'u8[512]{0}', space=vmem, size = 0x400, scoped, tag = 'input window, operand 14, single buffered']
    #allocation26 [shape = 'u8[1024]{0}', space=vmem, size = 0x400, scoped, tag = 'output window, operand 0, single buffered']
    %20 = vsyncpa [#allocation3], 0
    %21 = vsyncpa [#allocation6], 0
    %22 = vsyncpa [#allocation9], 0
    %23 = vsyncpa [#allocation12], 0
    %24 = vsyncpa [#allocation15], 0
    %25 = vsyncpa [#allocation18], 0
    %26 = vsyncpa [#allocation21], 0
    %27 = vsyncpa [#allocation24], 0
    %28 = vsyncpa [#allocation4], 0
    // Predicated region
    $region2: #{cnn_forward.1} parent=1 // pred_check
      _
    $region3: #{cnn_forward.1} parent=1 // pred_check_branch
      %30 = sbr.rel (0) target = $region5
    $region4: #{cnn_forward.1} parent=1 // pred_region
      %s32 = ssub.s32 2048, 2048
      %33 = vsyncadd [#allocation3], %s32
      %s34 = sshll.u32 [#allocation2], 4
      %s35 = int_to_ptr.vmem [resolvable:$true] %s34
      %40 = dma.hbm_to_vmem [thread:$0]  %s0, 2048, %s35, [#allocation3], 128, 128, 8
    $region5: #{cnn_forward.1} parent=1 // pred_fallthru
      _
    // Predicated region
    $region6: #{cnn_forward.1} parent=1 // pred_check
      _
    $region7: #{cnn_forward.1} parent=1 // pred_check_branch
      %42 = sbr.rel (0) target = $region9
    $region8: #{cnn_forward.1} parent=1 // pred_region
      %s44 = ssub.s32 1024, 1024
      %45 = vsyncadd [#allocation6], %s44
      %s46 = sshll.u32 [#allocation5], 4
      %s47 = int_to_ptr.vmem [resolvable:$true] %s46
      %52 = dma.hbm_to_vmem [thread:$0]  %s1, 1024, %s47, [#allocation6], 128, 128, 8
    $region9: #{cnn_forward.1} parent=1 // pred_fallthru
      _
    // Predicated region
    $region10: #{cnn_forward.1} parent=1 // pred_check
      _
    $region11: #{cnn_forward.1} parent=1 // pred_check_branch
      %54 = sbr.rel (0) target = $region13
    $region12: #{cnn_forward.1} parent=1 // pred_region
      %s56 = ssub.s32 16, 16
      %57 = vsyncadd [#allocation6], %s56
      %s59 = sshll.u32 [#allocation7], 4
      %s60 = int_to_ptr.vmem [resolvable:$true] %s59
      %62 = dma.hbm_to_vmem [thread:$0]  %s2, 16, %s60, [#allocation6]
    $region13: #{cnn_forward.1} parent=1 // pred_fallthru
      _
    // Predicated region
    $region14: #{cnn_forward.1} parent=1 // pred_check
      _
    $region15: #{cnn_forward.1} parent=1 // pred_check_branch
      %64 = sbr.rel (0) target = $region17
    $region16: #{cnn_forward.1} parent=1 // pred_region
      %s66 = ssub.s32 2304, 2304
      %67 = vsyncadd [#allocation9], %s66
      %s68 = sshll.u32 [#allocation8], 4
      %s69 = int_to_ptr.vmem [resolvable:$true] %s68
      %74 = dma.hbm_to_vmem [thread:$0]  %s3, 2304, %s69, [#allocation9], 128, 128, 8
    $region17: #{cnn_forward.1} parent=1 // pred_fallthru
      _
    // Predicated region
    $region18: #{cnn_forward.1} parent=1 // pred_check
      _
    $region19: #{cnn_forward.1} parent=1 // pred_check_branch
      %76 = sbr.rel (0) target = $region21
    $region20: #{cnn_forward.1} parent=1 // pred_region
      %s78 = ssub.s32 16, 16
      %79 = vsyncadd [#allocation9], %s78
      %s81 = sshll.u32 [#allocation10], 4
      %s82 = int_to_ptr.vmem [resolvable:$true] %s81
      %84 = dma.hbm_to_vmem [thread:$0]  %s4, 16, %s82, [#allocation9]
    $region21: #{cnn_forward.1} parent=1 // pred_fallthru
      _
    // Predicated region
    $region22: #{cnn_forward.1} parent=1 // pred_check
      _
    $region23: #{cnn_forward.1} parent=1 // pred_check_branch
      %86 = sbr.rel (0) target = $region25
    $region24: #{cnn_forward.1} parent=1 // pred_region
      %s88 = ssub.s32 4608, 4608
      %89 = vsyncadd [#allocation12], %s88
      %s90 = sshll.u32 [#allocation11], 4
      %s91 = int_to_ptr.vmem [resolvable:$true] %s90
      %96 = dma.hbm_to_vmem [thread:$0]  %s5, 4608, %s91, [#allocation12], 128, 128, 8
    $region25: #{cnn_forward.1} parent=1 // pred_fallthru
      _
    // Predicated region
    $region26: #{cnn_forward.1} parent=1 // pred_check
      _
    $region27: #{cnn_forward.1} parent=1 // pred_check_branch
      %98 = sbr.rel (0) target = $region29
    $region28: #{cnn_forward.1} parent=1 // pred_region
      %s100 = ssub.s32 16, 16
      %101 = vsyncadd [#allocation12], %s100
      %s103 = sshll.u32 [#allocation13], 4
      %s104 = int_to_ptr.vmem [resolvable:$true] %s103
      %106 = dma.hbm_to_vmem [thread:$0]  %s6, 16, %s104, [#allocation12]
    $region29: #{cnn_forward.1} parent=1 // pred_fallthru
      _
    // Predicated region
    $region30: #{cnn_forward.1} parent=1 // pred_check
      _
    $region31: #{cnn_forward.1} parent=1 // pred_check_branch
      %108 = sbr.rel (0) target = $region33
    $region32: #{cnn_forward.1} parent=1 // pred_region
      %s110 = ssub.s32 9216, 9216
      %111 = vsyncadd [#allocation15], %s110
      %s112 = sshll.u32 [#allocation14], 4
      %s113 = int_to_ptr.vmem [resolvable:$true] %s112
      %118 = dma.hbm_to_vmem [thread:$0]  %s7, 9216, %s113, [#allocation15], 128, 128, 8
    $region33: #{cnn_forward.1} parent=1 // pred_fallthru
      _
    // Predicated region
    $region34: #{cnn_forward.1} parent=1 // pred_check
      _
    $region35: #{cnn_forward.1} parent=1 // pred_check_branch
      %120 = sbr.rel (0) target = $region37
    $region36: #{cnn_forward.1} parent=1 // pred_region
      %s122 = ssub.s32 16, 16
      %123 = vsyncadd [#allocation15], %s122
      %s125 = sshll.u32 [#allocation16], 4
      %s126 = int_to_ptr.vmem [resolvable:$true] %s125
      %128 = dma.hbm_to_vmem [thread:$0]  %s8, 16, %s126, [#allocation15]
    $region37: #{cnn_forward.1} parent=1 // pred_fallthru
      _
    // Predicated region
    $region38: #{cnn_forward.1} parent=1 // pred_check
      _
    $region39: #{cnn_forward.1} parent=1 // pred_check_branch
      %130 = sbr.rel (0) target = $region41
    $region40: #{cnn_forward.1} parent=1 // pred_region
      %s132 = ssub.s32 32768, 32768
      %133 = vsyncadd [#allocation18], %s132
      %s134 = sshll.u32 [#allocation17], 4
      %s135 = int_to_ptr.vmem [resolvable:$true] %s134
      %140 = dma.hbm_to_vmem [thread:$0]  %s9, 32768, %s135, [#allocation18], 512, 512, 32
    $region41: #{cnn_forward.1} parent=1 // pred_fallthru
      _
    // Predicated region
    $region42: #{cnn_forward.1} parent=1 // pred_check
      _
    $region43: #{cnn_forward.1} parent=1 // pred_check_branch
      %142 = sbr.rel (0) target = $region45
    $region44: #{cnn_forward.1} parent=1 // pred_region
      %s144 = ssub.s32 64, 64
      %145 = vsyncadd [#allocation18], %s144
      %s147 = sshll.u32 [#allocation19], 4
      %s148 = int_to_ptr.vmem [resolvable:$true] %s147
      %150 = dma.hbm_to_vmem [thread:$0]  %s10, 64, %s148, [#allocation18]
    $region45: #{cnn_forward.1} parent=1 // pred_fallthru
      _
    // Predicated region
    $region46: #{cnn_forward.1} parent=1 // pred_check
      _
    $region47: #{cnn_forward.1} parent=1 // pred_check_branch
      %152 = sbr.rel (0) target = $region49
    $region48: #{cnn_forward.1} parent=1 // pred_region
      %s154 = ssub.s32 8192, 8192
      %155 = vsyncadd [#allocation21], %s154
      %s156 = sshll.u32 [#allocation20], 4
      %s157 = int_to_ptr.vmem [resolvable:$true] %s156
      %162 = dma.hbm_to_vmem [thread:$0]  %s11, 8192, %s157, [#allocation21], 128, 128, 8
    $region49: #{cnn_forward.1} parent=1 // pred_fallthru
      _
    // Predicated region
    $region50: #{cnn_forward.1} parent=1 // pred_check
      _
    $region51: #{cnn_forward.1} parent=1 // pred_check_branch
      %164 = sbr.rel (0) target = $region53
    $region52: #{cnn_forward.1} parent=1 // pred_region
      %s166 = ssub.s32 16, 16
      %167 = vsyncadd [#allocation21], %s166
      %s169 = sshll.u32 [#allocation22], 4
      %s170 = int_to_ptr.vmem [resolvable:$true] %s169
      %172 = dma.hbm_to_vmem [thread:$0]  %s12, 16, %s170, [#allocation21]
    $region53: #{cnn_forward.1} parent=1 // pred_fallthru
      _
    // Predicated region
    $region54: #{cnn_forward.1} parent=1 // pred_check
      _
    $region55: #{cnn_forward.1} parent=1 // pred_check_branch
      %174 = sbr.rel (0) target = $region57
    $region56: #{cnn_forward.1} parent=1 // pred_region
      %s176 = ssub.s32 1664, 1664
      %177 = vsyncadd [#allocation24], %s176
      %s178 = sshll.u32 [#allocation23], 4
      %s179 = int_to_ptr.vmem [resolvable:$true] %s178
      %184 = dma.hbm_to_vmem [thread:$0]  %s13, 1664, %s179, [#allocation24], 128, 128, 8
    $region57: #{cnn_forward.1} parent=1 // pred_fallthru
      _
    // Predicated region
    $region58: #{cnn_forward.1} parent=1 // pred_check
      _
    $region59: #{cnn_forward.1} parent=1 // pred_check_branch
      %186 = sbr.rel (0) target = $region61
    $region60: #{cnn_forward.1} parent=1 // pred_region
      %s188 = ssub.s32 16, 16
      %189 = vsyncadd [#allocation24], %s188
      %s191 = sshll.u32 [#allocation25], 4
      %s192 = int_to_ptr.vmem [resolvable:$true] %s191
      %194 = dma.hbm_to_vmem [thread:$0]  %s14, 16, %s192, [#allocation24]
    $region61: #{cnn_forward.1} parent=1 // pred_fallthru
      _
    // Predicated region
    $region62: #{cnn_forward.1} parent=1 // pred_check
      _
    $region63: #{cnn_forward.1} parent=1 // pred_check_branch
      %196 = sbr.rel (0) target = $region65
    $region64: #{cnn_forward.1} parent=1 // pred_region
      %197 = dma.done [#allocation3], 2048
    $region65: #{cnn_forward.1} parent=1 // pred_fallthru
      _
    // Predicated region
    $region66: #{cnn_forward.1} parent=1 // pred_check
      _
    $region67: #{cnn_forward.1} parent=1 // pred_check_branch
      %199 = sbr.rel (0) target = $region69
    $region68: #{cnn_forward.1} parent=1 // pred_region
      %200 = dma.done [#allocation6], 1024
    $region69: #{cnn_forward.1} parent=1 // pred_fallthru
      _
    // Predicated region
    $region70: #{cnn_forward.1} parent=1 // pred_check
      _
    $region71: #{cnn_forward.1} parent=1 // pred_check_branch
      %202 = sbr.rel (0) target = $region73
    $region72: #{cnn_forward.1} parent=1 // pred_region
      %203 = dma.done [#allocation6], 16
    $region73: #{cnn_forward.1} parent=1 // pred_fallthru
      _
    // Predicated region
    $region74: #{cnn_forward.1} parent=1 // pred_check
      _
    $region75: #{cnn_forward.1} parent=1 // pred_check_branch
      %205 = sbr.rel (0) target = $region77
    $region76: #{cnn_forward.1} parent=1 // pred_region
      %206 = dma.done [#allocation9], 2304
    $region77: #{cnn_forward.1} parent=1 // pred_fallthru
      _
    // Predicated region
    $region78: #{cnn_forward.1} parent=1 // pred_check
      _
    $region79: #{cnn_forward.1} parent=1 // pred_check_branch
      %208 = sbr.rel (0) target = $region81
    $region80: #{cnn_forward.1} parent=1 // pred_region
      %209 = dma.done [#allocation9], 16
    $region81: #{cnn_forward.1} parent=1 // pred_fallthru
      _
    // Predicated region
    $region82: #{cnn_forward.1} parent=1 // pred_check
      _
    $region83: #{cnn_forward.1} parent=1 // pred_check_branch
      %211 = sbr.rel (0) target = $region85
    $region84: #{cnn_forward.1} parent=1 // pred_region
      %212 = dma.done [#allocation12], 4608
    $region85: #{cnn_forward.1} parent=1 // pred_fallthru
      _
    // Predicated region
    $region86: #{cnn_forward.1} parent=1 // pred_check
      _
    $region87: #{cnn_forward.1} parent=1 // pred_check_branch
      %214 = sbr.rel (0) target = $region89
    $region88: #{cnn_forward.1} parent=1 // pred_region
      %215 = dma.done [#allocation12], 16
    $region89: #{cnn_forward.1} parent=1 // pred_fallthru
      _
    // Predicated region
    $region90: #{cnn_forward.1} parent=1 // pred_check
      _
    $region91: #{cnn_forward.1} parent=1 // pred_check_branch
      %217 = sbr.rel (0) target = $region93
    $region92: #{cnn_forward.1} parent=1 // pred_region
      %218 = dma.done [#allocation15], 9216
    $region93: #{cnn_forward.1} parent=1 // pred_fallthru
      _
    // Predicated region
    $region94: #{cnn_forward.1} parent=1 // pred_check
      _
    $region95: #{cnn_forward.1} parent=1 // pred_check_branch
      %220 = sbr.rel (0) target = $region97
    $region96: #{cnn_forward.1} parent=1 // pred_region
      %221 = dma.done [#allocation15], 16
    $region97: #{cnn_forward.1} parent=1 // pred_fallthru
      _
    // Predicated region
    $region98: #{cnn_forward.1} parent=1 // pred_check
      _
    $region99: #{cnn_forward.1} parent=1 // pred_check_branch
      %223 = sbr.rel (0) target = $region101
    $region100: #{cnn_forward.1} parent=1 // pred_region
      %224 = dma.done [#allocation18], 32768
    $region101: #{cnn_forward.1} parent=1 // pred_fallthru
      _
    // Predicated region
    $region102: #{cnn_forward.1} parent=1 // pred_check
      _
    $region103: #{cnn_forward.1} parent=1 // pred_check_branch
      %226 = sbr.rel (0) target = $region105
    $region104: #{cnn_forward.1} parent=1 // pred_region
      %227 = dma.done [#allocation18], 64
    $region105: #{cnn_forward.1} parent=1 // pred_fallthru
      _
    // Predicated region
    $region106: #{cnn_forward.1} parent=1 // pred_check
      _
    $region107: #{cnn_forward.1} parent=1 // pred_check_branch
      %229 = sbr.rel (0) target = $region109
    $region108: #{cnn_forward.1} parent=1 // pred_region
      %230 = dma.done [#allocation21], 8192
    $region109: #{cnn_forward.1} parent=1 // pred_fallthru
      _
    // Predicated region
    $region110: #{cnn_forward.1} parent=1 // pred_check
      _
    $region111: #{cnn_forward.1} parent=1 // pred_check_branch
      %232 = sbr.rel (0) target = $region113
    $region112: #{cnn_forward.1} parent=1 // pred_region
      %233 = dma.done [#allocation21], 16
    $region113: #{cnn_forward.1} parent=1 // pred_fallthru
      _
    // Predicated region
    $region114: #{cnn_forward.1} parent=1 // pred_check
      _
    $region115: #{cnn_forward.1} parent=1 // pred_check_branch
      %235 = sbr.rel (0) target = $region117
    $region116: #{cnn_forward.1} parent=1 // pred_region
      %236 = dma.done [#allocation24], 1664
    $region117: #{cnn_forward.1} parent=1 // pred_fallthru
      _
    // Predicated region
    $region118: #{cnn_forward.1} parent=1 // pred_check
      _
    $region119: #{cnn_forward.1} parent=1 // pred_check_branch
      %238 = sbr.rel (0) target = $region121
    $region120: #{cnn_forward.1} parent=1 // pred_region
      %239 = dma.done [#allocation24], 16
    $region121: #{cnn_forward.1} parent=1 // pred_fallthru
      _
    %v240 = vld [vmem:[#allocation2] sm:$0xff]
    %v241 = vld [vmem:[#allocation2 + $0x8] sm:$0xff]
    %v242 = vld [vmem:[#allocation2 + $0x10] sm:$0xff]
    %v243 = vld [vmem:[#allocation2 + $0x18] sm:$0xff]
    %v244 = vld [vmem:[#allocation2 + $0x20] sm:$0xff]
    %v245 = vld [vmem:[#allocation2 + $0x28] sm:$0xff]
    %v246 = vld [vmem:[#allocation2 + $0x30] sm:$0xff]
    %v247 = vld [vmem:[#allocation2 + $0x38] sm:$0xff]
    %v248 = vld [vmem:[#allocation2 + $0x40] sm:$0xff]
    %v249 = vld [vmem:[#allocation2 + $0x48] sm:$0xff]
    %v250 = vld [vmem:[#allocation2 + $0x50] sm:$0xff]
    %v251 = vld [vmem:[#allocation2 + $0x58] sm:$0xff]
    %v252 = vld [vmem:[#allocation2 + $0x60] sm:$0xff]
    %v253 = vld [vmem:[#allocation2 + $0x68] sm:$0xff]
    %v254 = vld [vmem:[#allocation2 + $0x70] sm:$0xff]
    %v255 = vld [vmem:[#allocation2 + $0x78] sm:$0xff]
    %vm273 = vcmask 1041408
    %v274 = vrot.slane 0.0, 6
    %v275 = vsel %vm273, %v274, %v274
    %v276 = vrot.slane %v240, 6
    %v277 = vrot.slane %v241, 6
    %v278 = vsel %vm273, %v276, %v277
    %v279 = vrot.slane %v242, 6
    %v280 = vrot.slane %v243, 6
    %v281 = vsel %vm273, %v279, %v280
    %v282 = vrot.slane %v244, 6
    %v283 = vrot.slane %v245, 6
    %v284 = vsel %vm273, %v282, %v283
    %v285 = vrot.slane %v246, 6
    %v286 = vrot.slane %v247, 6
    %v287 = vsel %vm273, %v285, %v286
    %v288 = vrot.slane %v248, 6
    %v289 = vrot.slane %v249, 6
    %v290 = vsel %vm273, %v288, %v289
    %v291 = vrot.slane %v250, 6
    %v292 = vrot.slane %v251, 6
    %v293 = vsel %vm273, %v291, %v292
    %v294 = vrot.slane %v252, 6
    %v295 = vrot.slane %v253, 6
    %v296 = vsel %vm273, %v294, %v295
    %v297 = vrot.slane %v254, 6
    %v298 = vrot.slane %v255, 6
    %v299 = vsel %vm273, %v297, %v298
    %v324 = vsel %vm273, 0.0, %v274
    %v325 = vsel %vm273, 0.0, %v276
    %v326 = vsel %vm273, 0.0, %v279
    %v327 = vsel %vm273, 0.0, %v282
    %v328 = vsel %vm273, 0.0, %v285
    %v329 = vsel %vm273, 0.0, %v288
    %v330 = vsel %vm273, 0.0, %v291
    %v331 = vsel %vm273, 0.0, %v294
    %v332 = vsel %vm273, 0.0, %v297
    %v333 = vsel %vm273, %v274, 0.0
    %v334 = vsel %vm273, %v277, 0.0
    %v335 = vsel %vm273, %v280, 0.0
    %v336 = vsel %vm273, %v283, 0.0
    %v337 = vsel %vm273, %v286, 0.0
    %v338 = vsel %vm273, %v289, 0.0
    %v339 = vsel %vm273, %v292, 0.0
    %v340 = vsel %vm273, %v295, 0.0
    %v341 = vsel %vm273, %v298, 0.0
    %vm356 = vcmask 1046528
    %v357 = vrot.slane %v324, 1
    %v358 = vrot.slane %v275, 1
    %v359 = vsel %vm356, %v357, %v358
    %v360 = vrot.slane %v333, 1
    %v361 = vsel %vm356, %v358, %v360
    %v362 = vrot.slane %v325, 1
    %v363 = vrot.slane %v278, 1
    %v364 = vsel %vm356, %v362, %v363
    %v365 = vrot.slane %v334, 1
    %v366 = vsel %vm356, %v363, %v365
    %v367 = vrot.slane %v326, 1
    %v368 = vrot.slane %v281, 1
    %v369 = vsel %vm356, %v367, %v368
    %v370 = vrot.slane %v335, 1
    %v371 = vsel %vm356, %v368, %v370
    %v372 = vrot.slane %v327, 1
    %v373 = vrot.slane %v284, 1
    %v374 = vsel %vm356, %v372, %v373
    %v375 = vrot.slane %v336, 1
    %v376 = vsel %vm356, %v373, %v375
    %v377 = vrot.slane %v329, 1
    %v378 = vrot.slane %v290, 1
    %v379 = vsel %vm356, %v377, %v378
    %v380 = vrot.slane %v338, 1
    %v381 = vsel %vm356, %v378, %v380
    %v382 = vrot.slane %v330, 1
    %v383 = vrot.slane %v293, 1
    %v384 = vsel %vm356, %v382, %v383
    %v385 = vrot.slane %v339, 1
    %v386 = vsel %vm356, %v383, %v385
    %v387 = vrot.slane %v331, 1
    %v388 = vrot.slane %v296, 1
    %v389 = vsel %vm356, %v387, %v388
    %v390 = vrot.slane %v340, 1
    %v391 = vsel %vm356, %v388, %v390
    %392 = vrot.lane.b32.xlu0 %v359, 4
    %v393 = vpop.permute.xlu0 %392
    %394 = vrot.lane.b32.xlu0 %v361, 4
    %v395 = vpop.permute.xlu0 %394
    %396 = vrot.lane.b32.xlu0 %v364, 4
    %v397 = vpop.permute.xlu0 %396
    %398 = vrot.lane.b32.xlu0 %v366, 4
    %v399 = vpop.permute.xlu0 %398
    %400 = vrot.lane.b32.xlu0 %v369, 4
    %v401 = vpop.permute.xlu0 %400
    %402 = vrot.lane.b32.xlu0 %v371, 4
    %v403 = vpop.permute.xlu0 %402
    %404 = vrot.lane.b32.xlu0 %v374, 4
    %v405 = vpop.permute.xlu0 %404
    %406 = vrot.lane.b32.xlu0 %v376, 4
    %v407 = vpop.permute.xlu0 %406
    %408 = vrot.lane.b32.xlu0 %v379, 4
    %v409 = vpop.permute.xlu0 %408
    %410 = vrot.lane.b32.xlu0 %v381, 4
    %v411 = vpop.permute.xlu0 %410
    %412 = vrot.lane.b32.xlu0 %v384, 4
    %v413 = vpop.permute.xlu0 %412
    %414 = vrot.lane.b32.xlu0 %v386, 4
    %v415 = vpop.permute.xlu0 %414
    %416 = vrot.lane.b32.xlu0 %v389, 4
    %v417 = vpop.permute.xlu0 %416
    %418 = vrot.lane.b32.xlu0 %v391, 4
    %v419 = vpop.permute.xlu0 %418
    %vm434 = vcmask 1045504
    %v435 = vrot.slane %v324, 2
    %v436 = vrot.slane %v275, 2
    %v437 = vsel %vm434, %v435, %v436
    %v438 = vrot.slane %v333, 2
    %v439 = vsel %vm434, %v436, %v438
    %v440 = vrot.slane %v325, 2
    %v441 = vrot.slane %v278, 2
    %v442 = vsel %vm434, %v440, %v441
    %v443 = vrot.slane %v334, 2
    %v444 = vsel %vm434, %v441, %v443
    %v445 = vrot.slane %v326, 2
    %v446 = vrot.slane %v281, 2
    %v447 = vsel %vm434, %v445, %v446
    %v448 = vrot.slane %v335, 2
    %v449 = vsel %vm434, %v446, %v448
    %v450 = vrot.slane %v327, 2
    %v451 = vrot.slane %v284, 2
    %v452 = vsel %vm434, %v450, %v451
    %v453 = vrot.slane %v336, 2
    %v454 = vsel %vm434, %v451, %v453
    %v455 = vrot.slane %v329, 2
    %v456 = vrot.slane %v290, 2
    %v457 = vsel %vm434, %v455, %v456
    %v458 = vrot.slane %v338, 2
    %v459 = vsel %vm434, %v456, %v458
    %v460 = vrot.slane %v330, 2
    %v461 = vrot.slane %v293, 2
    %v462 = vsel %vm434, %v460, %v461
    %v463 = vrot.slane %v339, 2
    %v464 = vsel %vm434, %v461, %v463
    %v465 = vrot.slane %v331, 2
    %v466 = vrot.slane %v296, 2
    %v467 = vsel %vm434, %v465, %v466
    %v468 = vrot.slane %v340, 2
    %v469 = vsel %vm434, %v466, %v468
    %470 = vrot.lane.b32.xlu0 %v437, 8
    %v471 = vpop.permute.xlu0 %470
    %472 = vrot.lane.b32.xlu0 %v439, 8
    %v473 = vpop.permute.xlu0 %472
    %474 = vrot.lane.b32.xlu0 %v442, 8
    %v475 = vpop.permute.xlu0 %474
    %476 = vrot.lane.b32.xlu0 %v444, 8
    %v477 = vpop.permute.xlu0 %476
    %478 = vrot.lane.b32.xlu0 %v447, 8
    %v479 = vpop.permute.xlu0 %478
    %480 = vrot.lane.b32.xlu0 %v449, 8
    %v481 = vpop.permute.xlu0 %480
    %482 = vrot.lane.b32.xlu0 %v452, 8
    %v483 = vpop.permute.xlu0 %482
    %484 = vrot.lane.b32.xlu0 %v454, 8
    %v485 = vpop.permute.xlu0 %484
    %486 = vrot.lane.b32.xlu0 %v457, 8
    %v487 = vpop.permute.xlu0 %486
    %488 = vrot.lane.b32.xlu0 %v459, 8
    %v489 = vpop.permute.xlu0 %488
    %490 = vrot.lane.b32.xlu0 %v462, 8
    %v491 = vpop.permute.xlu0 %490
    %492 = vrot.lane.b32.xlu0 %v464, 8
    %v493 = vpop.permute.xlu0 %492
    %494 = vrot.lane.b32.xlu0 %v467, 8
    %v495 = vpop.permute.xlu0 %494
    %496 = vrot.lane.b32.xlu0 %v469, 8
    %v497 = vpop.permute.xlu0 %496
    %vm512 = vcmask 1044480
    %v513 = vrot.slane %v324, 3
    %v514 = vrot.slane %v275, 3
    %v515 = vsel %vm512, %v513, %v514
    %v516 = vrot.slane %v333, 3
    %v517 = vsel %vm512, %v514, %v516
    %v518 = vrot.slane %v325, 3
    %v519 = vrot.slane %v278, 3
    %v520 = vsel %vm512, %v518, %v519
    %v521 = vrot.slane %v334, 3
    %v522 = vsel %vm512, %v519, %v521
    %v523 = vrot.slane %v326, 3
    %v524 = vrot.slane %v281, 3
    %v525 = vsel %vm512, %v523, %v524
    %v526 = vrot.slane %v335, 3
    %v527 = vsel %vm512, %v524, %v526
    %v528 = vrot.slane %v327, 3
    %v529 = vrot.slane %v284, 3
    %v530 = vsel %vm512, %v528, %v529
    %v531 = vrot.slane %v336, 3
    %v532 = vsel %vm512, %v529, %v531
    %v533 = vrot.slane %v329, 3
    %v534 = vrot.slane %v290, 3
    %v535 = vsel %vm512, %v533, %v534
    %v536 = vrot.slane %v338, 3
    %v537 = vsel %vm512, %v534, %v536
    %v538 = vrot.slane %v330, 3
    %v539 = vrot.slane %v293, 3
    %v540 = vsel %vm512, %v538, %v539
    %v541 = vrot.slane %v339, 3
    %v542 = vsel %vm512, %v539, %v541
    %v543 = vrot.slane %v331, 3
    %v544 = vrot.slane %v296, 3
    %v545 = vsel %vm512, %v543, %v544
    %v546 = vrot.slane %v340, 3
    %v547 = vsel %vm512, %v544, %v546
    %548 = vrot.lane.b32.xlu0 %v515, 12
    %v549 = vpop.permute.xlu0 %548
    %550 = vrot.lane.b32.xlu0 %v517, 12
    %v551 = vpop.permute.xlu0 %550
    %552 = vrot.lane.b32.xlu0 %v520, 12
    %v553 = vpop.permute.xlu0 %552
    %554 = vrot.lane.b32.xlu0 %v522, 12
    %v555 = vpop.permute.xlu0 %554
    %556 = vrot.lane.b32.xlu0 %v525, 12
    %v557 = vpop.permute.xlu0 %556
    %558 = vrot.lane.b32.xlu0 %v527, 12
    %v559 = vpop.permute.xlu0 %558
    %560 = vrot.lane.b32.xlu0 %v530, 12
    %v561 = vpop.permute.xlu0 %560
    %562 = vrot.lane.b32.xlu0 %v532, 12
    %v563 = vpop.permute.xlu0 %562
    %564 = vrot.lane.b32.xlu0 %v535, 12
    %v565 = vpop.permute.xlu0 %564
    %566 = vrot.lane.b32.xlu0 %v537, 12
    %v567 = vpop.permute.xlu0 %566
    %568 = vrot.lane.b32.xlu0 %v540, 12
    %v569 = vpop.permute.xlu0 %568
    %570 = vrot.lane.b32.xlu0 %v542, 12
    %v571 = vpop.permute.xlu0 %570
    %572 = vrot.lane.b32.xlu0 %v545, 12
    %v573 = vpop.permute.xlu0 %572
    %574 = vrot.lane.b32.xlu0 %v547, 12
    %v575 = vpop.permute.xlu0 %574
    %vm590 = vcmask 1043456
    %v591 = vrot.slane %v324, 4
    %v592 = vrot.slane %v275, 4
    %v593 = vsel %vm590, %v591, %v592
    %v594 = vrot.slane %v333, 4
    %v595 = vsel %vm590, %v592, %v594
    %v596 = vrot.slane %v325, 4
    %v597 = vrot.slane %v278, 4
    %v598 = vsel %vm590, %v596, %v597
    %v599 = vrot.slane %v334, 4
    %v600 = vsel %vm590, %v597, %v599
    %v601 = vrot.slane %v326, 4
    %v602 = vrot.slane %v281, 4
    %v603 = vsel %vm590, %v601, %v602
    %v604 = vrot.slane %v335, 4
    %v605 = vsel %vm590, %v602, %v604
    %v606 = vrot.slane %v327, 4
    %v607 = vrot.slane %v284, 4
    %v608 = vsel %vm590, %v606, %v607
    %v609 = vrot.slane %v336, 4
    %v610 = vsel %vm590, %v607, %v609
    %v611 = vrot.slane %v329, 4
    %v612 = vrot.slane %v290, 4
    %v613 = vsel %vm590, %v611, %v612
    %v614 = vrot.slane %v338, 4
    %v615 = vsel %vm590, %v612, %v614
    %v616 = vrot.slane %v330, 4
    %v617 = vrot.slane %v293, 4
    %v618 = vsel %vm590, %v616, %v617
    %v619 = vrot.slane %v339, 4
    %v620 = vsel %vm590, %v617, %v619
    %v621 = vrot.slane %v331, 4
    %v622 = vrot.slane %v296, 4
    %v623 = vsel %vm590, %v621, %v622
    %v624 = vrot.slane %v340, 4
    %v625 = vsel %vm590, %v622, %v624
    %626 = vrot.lane.b32.xlu0 %v593, 16
    %v627 = vpop.permute.xlu0 %626
    %628 = vrot.lane.b32.xlu0 %v595, 16
    %v629 = vpop.permute.xlu0 %628
    %630 = vrot.lane.b32.xlu0 %v598, 16
    %v631 = vpop.permute.xlu0 %630
    %632 = vrot.lane.b32.xlu0 %v600, 16
    %v633 = vpop.permute.xlu0 %632
    %634 = vrot.lane.b32.xlu0 %v603, 16
    %v635 = vpop.permute.xlu0 %634
    %636 = vrot.lane.b32.xlu0 %v605, 16
    %v637 = vpop.permute.xlu0 %636
    %638 = vrot.lane.b32.xlu0 %v608, 16
    %v639 = vpop.permute.xlu0 %638
    %640 = vrot.lane.b32.xlu0 %v610, 16
    %v641 = vpop.permute.xlu0 %640
    %642 = vrot.lane.b32.xlu0 %v613, 16
    %v643 = vpop.permute.xlu0 %642
    %644 = vrot.lane.b32.xlu0 %v615, 16
    %v645 = vpop.permute.xlu0 %644
    %646 = vrot.lane.b32.xlu0 %v618, 16
    %v647 = vpop.permute.xlu0 %646
    %648 = vrot.lane.b32.xlu0 %v620, 16
    %v649 = vpop.permute.xlu0 %648
    %650 = vrot.lane.b32.xlu0 %v623, 16
    %v651 = vpop.permute.xlu0 %650
    %652 = vrot.lane.b32.xlu0 %v625, 16
    %v653 = vpop.permute.xlu0 %652
    %670 = vrot.lane.b32.xlu0 %v325, 20
    %v671 = vpop.permute.xlu0 %670
    %672 = vrot.lane.b32.xlu0 %v278, 20
    %v673 = vpop.permute.xlu0 %672
    %674 = vrot.lane.b32.xlu0 %v326, 20
    %v675 = vpop.permute.xlu0 %674
    %676 = vrot.lane.b32.xlu0 %v281, 20
    %v677 = vpop.permute.xlu0 %676
    %678 = vrot.lane.b32.xlu0 %v327, 20
    %v679 = vpop.permute.xlu0 %678
    %680 = vrot.lane.b32.xlu0 %v284, 20
    %v681 = vpop.permute.xlu0 %680
    %682 = vrot.lane.b32.xlu0 %v328, 20
    %v683 = vpop.permute.xlu0 %682
    %684 = vrot.lane.b32.xlu0 %v287, 20
    %v685 = vpop.permute.xlu0 %684
    %686 = vrot.lane.b32.xlu0 %v329, 20
    %v687 = vpop.permute.xlu0 %686
    %688 = vrot.lane.b32.xlu0 %v290, 20
    %v689 = vpop.permute.xlu0 %688
    %690 = vrot.lane.b32.xlu0 %v330, 20
    %v691 = vpop.permute.xlu0 %690
    %692 = vrot.lane.b32.xlu0 %v293, 20
    %v693 = vpop.permute.xlu0 %692
    %694 = vrot.lane.b32.xlu0 %v331, 20
    %v695 = vpop.permute.xlu0 %694
    %696 = vrot.lane.b32.xlu0 %v296, 20
    %v697 = vpop.permute.xlu0 %696
    %698 = vrot.lane.b32.xlu0 %v332, 20
    %v699 = vpop.permute.xlu0 %698
    %700 = vrot.lane.b32.xlu0 %v299, 20
    %v701 = vpop.permute.xlu0 %700
    %v720 = vrot.slane %v328, 1
    %v721 = vrot.slane %v287, 1
    %v722 = vsel %vm356, %v720, %v721
    %v723 = vrot.slane %v337, 1
    %v724 = vsel %vm356, %v721, %v723
    %v725 = vrot.slane %v332, 1
    %v726 = vrot.slane %v299, 1
    %v727 = vsel %vm356, %v725, %v726
    %v728 = vrot.slane %v341, 1
    %v729 = vsel %vm356, %v726, %v728
    %730 = vrot.lane.b32.xlu0 %v364, 24
    %v731 = vpop.permute.xlu0 %730
    %732 = vrot.lane.b32.xlu0 %v366, 24
    %v733 = vpop.permute.xlu0 %732
    %734 = vrot.lane.b32.xlu0 %v369, 24
    %v735 = vpop.permute.xlu0 %734
    %736 = vrot.lane.b32.xlu0 %v371, 24
    %v737 = vpop.permute.xlu0 %736
    %738 = vrot.lane.b32.xlu0 %v374, 24
    %v739 = vpop.permute.xlu0 %738
    %740 = vrot.lane.b32.xlu0 %v376, 24
    %v741 = vpop.permute.xlu0 %740
    %742 = vrot.lane.b32.xlu0 %v722, 24
    %v743 = vpop.permute.xlu0 %742
    %744 = vrot.lane.b32.xlu0 %v724, 24
    %v745 = vpop.permute.xlu0 %744
    %746 = vrot.lane.b32.xlu0 %v379, 24
    %v747 = vpop.permute.xlu0 %746
    %748 = vrot.lane.b32.xlu0 %v381, 24
    %v749 = vpop.permute.xlu0 %748
    %750 = vrot.lane.b32.xlu0 %v384, 24
    %v751 = vpop.permute.xlu0 %750
    %752 = vrot.lane.b32.xlu0 %v386, 24
    %v753 = vpop.permute.xlu0 %752
    %754 = vrot.lane.b32.xlu0 %v389, 24
    %v755 = vpop.permute.xlu0 %754
    %756 = vrot.lane.b32.xlu0 %v391, 24
    %v757 = vpop.permute.xlu0 %756
    %758 = vrot.lane.b32.xlu0 %v727, 24
    %v759 = vpop.permute.xlu0 %758
    %760 = vrot.lane.b32.xlu0 %v729, 24
    %v761 = vpop.permute.xlu0 %760
    %v778 = vrot.slane %v328, 2
    %v779 = vrot.slane %v287, 2
    %v780 = vsel %vm434, %v778, %v779
    %v781 = vrot.slane %v337, 2
    %v782 = vsel %vm434, %v779, %v781
    %v783 = vrot.slane %v332, 2
    %v784 = vrot.slane %v299, 2
    %v785 = vsel %vm434, %v783, %v784
    %v786 = vrot.slane %v341, 2
    %v787 = vsel %vm434, %v784, %v786
    %788 = vrot.lane.b32.xlu0 %v442, 28
    %v789 = vpop.permute.xlu0 %788
    %790 = vrot.lane.b32.xlu0 %v444, 28
    %v791 = vpop.permute.xlu0 %790
    %792 = vrot.lane.b32.xlu0 %v447, 28
    %v793 = vpop.permute.xlu0 %792
    %794 = vrot.lane.b32.xlu0 %v449, 28
    %v795 = vpop.permute.xlu0 %794
    %796 = vrot.lane.b32.xlu0 %v452, 28
    %v797 = vpop.permute.xlu0 %796
    %798 = vrot.lane.b32.xlu0 %v454, 28
    %v799 = vpop.permute.xlu0 %798
    %800 = vrot.lane.b32.xlu0 %v780, 28
    %v801 = vpop.permute.xlu0 %800
    %802 = vrot.lane.b32.xlu0 %v782, 28
    %v803 = vpop.permute.xlu0 %802
    %804 = vrot.lane.b32.xlu0 %v457, 28
    %v805 = vpop.permute.xlu0 %804
    %806 = vrot.lane.b32.xlu0 %v459, 28
    %v807 = vpop.permute.xlu0 %806
    %808 = vrot.lane.b32.xlu0 %v462, 28
    %v809 = vpop.permute.xlu0 %808
    %810 = vrot.lane.b32.xlu0 %v464, 28
    %v811 = vpop.permute.xlu0 %810
    %812 = vrot.lane.b32.xlu0 %v467, 28
    %v813 = vpop.permute.xlu0 %812
    %814 = vrot.lane.b32.xlu0 %v469, 28
    %v815 = vpop.permute.xlu0 %814
    %816 = vrot.lane.b32.xlu0 %v785, 28
    %v817 = vpop.permute.xlu0 %816
    %818 = vrot.lane.b32.xlu0 %v787, 28
    %v819 = vpop.permute.xlu0 %818
    %v836 = vrot.slane %v328, 3
    %v837 = vrot.slane %v287, 3
    %v838 = vsel %vm512, %v836, %v837
    %v839 = vrot.slane %v337, 3
    %v840 = vsel %vm512, %v837, %v839
    %v841 = vrot.slane %v332, 3
    %v842 = vrot.slane %v299, 3
    %v843 = vsel %vm512, %v841, %v842
    %v844 = vrot.slane %v341, 3
    %v845 = vsel %vm512, %v842, %v844
    %846 = vrot.lane.b32.xlu0 %v520, 32
    %v847 = vpop.permute.xlu0 %846
    %848 = vrot.lane.b32.xlu0 %v522, 32
    %v849 = vpop.permute.xlu0 %848
    %850 = vrot.lane.b32.xlu0 %v525, 32
    %v851 = vpop.permute.xlu0 %850
    %852 = vrot.lane.b32.xlu0 %v527, 32
    %v853 = vpop.permute.xlu0 %852
    %854 = vrot.lane.b32.xlu0 %v530, 32
    %v855 = vpop.permute.xlu0 %854
    %856 = vrot.lane.b32.xlu0 %v532, 32
    %v857 = vpop.permute.xlu0 %856
    %858 = vrot.lane.b32.xlu0 %v838, 32
    %v859 = vpop.permute.xlu0 %858
    %860 = vrot.lane.b32.xlu0 %v840, 32
    %v861 = vpop.permute.xlu0 %860
    %862 = vrot.lane.b32.xlu0 %v535, 32
    %v863 = vpop.permute.xlu0 %862
    %864 = vrot.lane.b32.xlu0 %v537, 32
    %v865 = vpop.permute.xlu0 %864
    %866 = vrot.lane.b32.xlu0 %v540, 32
    %v867 = vpop.permute.xlu0 %866
    %868 = vrot.lane.b32.xlu0 %v542, 32
    %v869 = vpop.permute.xlu0 %868
    %870 = vrot.lane.b32.xlu0 %v545, 32
    %v871 = vpop.permute.xlu0 %870
    %872 = vrot.lane.b32.xlu0 %v547, 32
    %v873 = vpop.permute.xlu0 %872
    %874 = vrot.lane.b32.xlu0 %v843, 32
    %v875 = vpop.permute.xlu0 %874
    %876 = vrot.lane.b32.xlu0 %v845, 32
    %v877 = vpop.permute.xlu0 %876
    %v894 = vrot.slane %v328, 4
    %v895 = vrot.slane %v287, 4
    %v896 = vsel %vm590, %v894, %v895
    %v897 = vrot.slane %v337, 4
    %v898 = vsel %vm590, %v895, %v897
    %v899 = vrot.slane %v332, 4
    %v900 = vrot.slane %v299, 4
    %v901 = vsel %vm590, %v899, %v900
    %v902 = vrot.slane %v341, 4
    %v903 = vsel %vm590, %v900, %v902
    %904 = vrot.lane.b32.xlu0 %v598, 36
    %v905 = vpop.permute.xlu0 %904
    %906 = vrot.lane.b32.xlu0 %v600, 36
    %v907 = vpop.permute.xlu0 %906
    %908 = vrot.lane.b32.xlu0 %v603, 36
    %v909 = vpop.permute.xlu0 %908
    %910 = vrot.lane.b32.xlu0 %v605, 36
    %v911 = vpop.permute.xlu0 %910
    %912 = vrot.lane.b32.xlu0 %v608, 36
    %v913 = vpop.permute.xlu0 %912
    %914 = vrot.lane.b32.xlu0 %v610, 36
    %v915 = vpop.permute.xlu0 %914
    %916 = vrot.lane.b32.xlu0 %v896, 36
    %v917 = vpop.permute.xlu0 %916
    %918 = vrot.lane.b32.xlu0 %v898, 36
    %v919 = vpop.permute.xlu0 %918
    %920 = vrot.lane.b32.xlu0 %v613, 36
    %v921 = vpop.permute.xlu0 %920
    %922 = vrot.lane.b32.xlu0 %v615, 36
    %v923 = vpop.permute.xlu0 %922
    %924 = vrot.lane.b32.xlu0 %v618, 36
    %v925 = vpop.permute.xlu0 %924
    %926 = vrot.lane.b32.xlu0 %v620, 36
    %v927 = vpop.permute.xlu0 %926
    %928 = vrot.lane.b32.xlu0 %v623, 36
    %v929 = vpop.permute.xlu0 %928
    %930 = vrot.lane.b32.xlu0 %v625, 36
    %v931 = vpop.permute.xlu0 %930
    %932 = vrot.lane.b32.xlu0 %v901, 36
    %v933 = vpop.permute.xlu0 %932
    %934 = vrot.lane.b32.xlu0 %v903, 36
    %v935 = vpop.permute.xlu0 %934
    %952 = vrot.lane.b32.xlu0 %v326, 40
    %v953 = vpop.permute.xlu0 %952
    %954 = vrot.lane.b32.xlu0 %v281, 40
    %v955 = vpop.permute.xlu0 %954
    %956 = vrot.lane.b32.xlu0 %v327, 40
    %v957 = vpop.permute.xlu0 %956
    %958 = vrot.lane.b32.xlu0 %v284, 40
    %v959 = vpop.permute.xlu0 %958
    %960 = vrot.lane.b32.xlu0 %v328, 40
    %v961 = vpop.permute.xlu0 %960
    %962 = vrot.lane.b32.xlu0 %v287, 40
    %v963 = vpop.permute.xlu0 %962
    %964 = vrot.lane.b32.xlu0 %v324, 40
    %v965 = vpop.permute.xlu0 %964
    %966 = vrot.lane.b32.xlu0 %v275, 40
    %v967 = vpop.permute.xlu0 %966
    %968 = vrot.lane.b32.xlu0 %v330, 40
    %v969 = vpop.permute.xlu0 %968
    %970 = vrot.lane.b32.xlu0 %v293, 40
    %v971 = vpop.permute.xlu0 %970
    %972 = vrot.lane.b32.xlu0 %v331, 40
    %v973 = vpop.permute.xlu0 %972
    %974 = vrot.lane.b32.xlu0 %v296, 40
    %v975 = vpop.permute.xlu0 %974
    %976 = vrot.lane.b32.xlu0 %v332, 40
    %v977 = vpop.permute.xlu0 %976
    %978 = vrot.lane.b32.xlu0 %v299, 40
    %v979 = vpop.permute.xlu0 %978
    %994 = vrot.lane.b32.xlu0 %v369, 44
    %v995 = vpop.permute.xlu0 %994
    %996 = vrot.lane.b32.xlu0 %v371, 44
    %v997 = vpop.permute.xlu0 %996
    %998 = vrot.lane.b32.xlu0 %v374, 44
    %v999 = vpop.permute.xlu0 %998
    %1000 = vrot.lane.b32.xlu0 %v376, 44
    %v1001 = vpop.permute.xlu0 %1000
    %1002 = vrot.lane.b32.xlu0 %v722, 44
    %v1003 = vpop.permute.xlu0 %1002
    %1004 = vrot.lane.b32.xlu0 %v724, 44
    %v1005 = vpop.permute.xlu0 %1004
    %1006 = vrot.lane.b32.xlu0 %v359, 44
    %v1007 = vpop.permute.xlu0 %1006
    %1008 = vrot.lane.b32.xlu0 %v361, 44
    %v1009 = vpop.permute.xlu0 %1008
    %1010 = vrot.lane.b32.xlu0 %v384, 44
    %v1011 = vpop.permute.xlu0 %1010
    %1012 = vrot.lane.b32.xlu0 %v386, 44
    %v1013 = vpop.permute.xlu0 %1012
    %1014 = vrot.lane.b32.xlu0 %v389, 44
    %v1015 = vpop.permute.xlu0 %1014
    %1016 = vrot.lane.b32.xlu0 %v391, 44
    %v1017 = vpop.permute.xlu0 %1016
    %1018 = vrot.lane.b32.xlu0 %v727, 44
    %v1019 = vpop.permute.xlu0 %1018
    %1020 = vrot.lane.b32.xlu0 %v729, 44
    %v1021 = vpop.permute.xlu0 %1020
    %1036 = vrot.lane.b32.xlu0 %v447, 48
    %v1037 = vpop.permute.xlu0 %1036
    %1038 = vrot.lane.b32.xlu0 %v449, 48
    %v1039 = vpop.permute.xlu0 %1038
    %1040 = vrot.lane.b32.xlu0 %v452, 48
    %v1041 = vpop.permute.xlu0 %1040
    %1042 = vrot.lane.b32.xlu0 %v454, 48
    %v1043 = vpop.permute.xlu0 %1042
    %1044 = vrot.lane.b32.xlu0 %v780, 48
    %v1045 = vpop.permute.xlu0 %1044
    %1046 = vrot.lane.b32.xlu0 %v782, 48
    %v1047 = vpop.permute.xlu0 %1046
    %1048 = vrot.lane.b32.xlu0 %v437, 48
    %v1049 = vpop.permute.xlu0 %1048
    %1050 = vrot.lane.b32.xlu0 %v439, 48
    %v1051 = vpop.permute.xlu0 %1050
    %1052 = vrot.lane.b32.xlu0 %v462, 48
    %v1053 = vpop.permute.xlu0 %1052
    %1054 = vrot.lane.b32.xlu0 %v464, 48
    %v1055 = vpop.permute.xlu0 %1054
    %1056 = vrot.lane.b32.xlu0 %v467, 48
    %v1057 = vpop.permute.xlu0 %1056
    %1058 = vrot.lane.b32.xlu0 %v469, 48
    %v1059 = vpop.permute.xlu0 %1058
    %1060 = vrot.lane.b32.xlu0 %v785, 48
    %v1061 = vpop.permute.xlu0 %1060
    %1062 = vrot.lane.b32.xlu0 %v787, 48
    %v1063 = vpop.permute.xlu0 %1062
    %1078 = vrot.lane.b32.xlu0 %v525, 52
    %v1079 = vpop.permute.xlu0 %1078
    %1080 = vrot.lane.b32.xlu0 %v527, 52
    %v1081 = vpop.permute.xlu0 %1080
    %1082 = vrot.lane.b32.xlu0 %v530, 52
    %v1083 = vpop.permute.xlu0 %1082
    %1084 = vrot.lane.b32.xlu0 %v532, 52
    %v1085 = vpop.permute.xlu0 %1084
    %1086 = vrot.lane.b32.xlu0 %v838, 52
    %v1087 = vpop.permute.xlu0 %1086
    %1088 = vrot.lane.b32.xlu0 %v840, 52
    %v1089 = vpop.permute.xlu0 %1088
    %1090 = vrot.lane.b32.xlu0 %v515, 52
    %v1091 = vpop.permute.xlu0 %1090
    %1092 = vrot.lane.b32.xlu0 %v517, 52
    %v1093 = vpop.permute.xlu0 %1092
    %1094 = vrot.lane.b32.xlu0 %v540, 52
    %v1095 = vpop.permute.xlu0 %1094
    %1096 = vrot.lane.b32.xlu0 %v542, 52
    %v1097 = vpop.permute.xlu0 %1096
    %1098 = vrot.lane.b32.xlu0 %v545, 52
    %v1099 = vpop.permute.xlu0 %1098
    %1100 = vrot.lane.b32.xlu0 %v547, 52
    %v1101 = vpop.permute.xlu0 %1100
    %1102 = vrot.lane.b32.xlu0 %v843, 52
    %v1103 = vpop.permute.xlu0 %1102
    %1104 = vrot.lane.b32.xlu0 %v845, 52
    %v1105 = vpop.permute.xlu0 %1104
    %1120 = vrot.lane.b32.xlu0 %v603, 56
    %v1121 = vpop.permute.xlu0 %1120
    %1122 = vrot.lane.b32.xlu0 %v605, 56
    %v1123 = vpop.permute.xlu0 %1122
    %1124 = vrot.lane.b32.xlu0 %v608, 56
    %v1125 = vpop.permute.xlu0 %1124
    %1126 = vrot.lane.b32.xlu0 %v610, 56
    %v1127 = vpop.permute.xlu0 %1126
    %1128 = vrot.lane.b32.xlu0 %v896, 56
    %v1129 = vpop.permute.xlu0 %1128
    %1130 = vrot.lane.b32.xlu0 %v898, 56
    %v1131 = vpop.permute.xlu0 %1130
    %1132 = vrot.lane.b32.xlu0 %v593, 56
    %v1133 = vpop.permute.xlu0 %1132
    %1134 = vrot.lane.b32.xlu0 %v595, 56
    %v1135 = vpop.permute.xlu0 %1134
    %1136 = vrot.lane.b32.xlu0 %v618, 56
    %v1137 = vpop.permute.xlu0 %1136
    %1138 = vrot.lane.b32.xlu0 %v620, 56
    %v1139 = vpop.permute.xlu0 %1138
    %1140 = vrot.lane.b32.xlu0 %v623, 56
    %v1141 = vpop.permute.xlu0 %1140
    %1142 = vrot.lane.b32.xlu0 %v625, 56
    %v1143 = vpop.permute.xlu0 %1142
    %1144 = vrot.lane.b32.xlu0 %v901, 56
    %v1145 = vpop.permute.xlu0 %1144
    %1146 = vrot.lane.b32.xlu0 %v903, 56
    %v1147 = vpop.permute.xlu0 %1146
    %vm1162 = vcmask 31744
    %v1163 = vsel %vm1162, %v324, %v393
    %v1164 = vsel %vm1162, %v275, %v395
    %v1165 = vsel %vm1162, %v325, %v397
    %v1166 = vsel %vm1162, %v278, %v399
    %v1167 = vsel %vm1162, %v326, %v401
    %v1168 = vsel %vm1162, %v281, %v403
    %v1169 = vsel %vm1162, %v327, %v405
    %v1170 = vsel %vm1162, %v284, %v407
    %v1171 = vsel %vm1162, %v329, %v409
    %v1172 = vsel %vm1162, %v290, %v411
    %v1173 = vsel %vm1162, %v330, %v413
    %v1174 = vsel %vm1162, %v293, %v415
    %v1175 = vsel %vm1162, %v331, %v417
    %v1176 = vsel %vm1162, %v296, %v419
    %vm1177 = vcmask 64512
    %v1178 = vsel %vm1177, %v1163, %v471
    %v1179 = vsel %vm1177, %v1164, %v473
    %v1180 = vsel %vm1177, %v1165, %v475
    %v1181 = vsel %vm1177, %v1166, %v477
    %v1182 = vsel %vm1177, %v1167, %v479
    %v1183 = vsel %vm1177, %v1168, %v481
    %v1184 = vsel %vm1177, %v1169, %v483
    %v1185 = vsel %vm1177, %v1170, %v485
    %v1186 = vsel %vm1177, %v1171, %v487
    %v1187 = vsel %vm1177, %v1172, %v489
    %v1188 = vsel %vm1177, %v1173, %v491
    %v1189 = vsel %vm1177, %v1174, %v493
    %v1190 = vsel %vm1177, %v1175, %v495
    %v1191 = vsel %vm1177, %v1176, %v497
    %vm1192 = vcmask 97280
    %v1193 = vsel %vm1192, %v1178, %v549
    %v1194 = vsel %vm1192, %v1179, %v551
    %v1195 = vsel %vm1192, %v1180, %v553
    %v1196 = vsel %vm1192, %v1181, %v555
    %v1197 = vsel %vm1192, %v1182, %v557
    %v1198 = vsel %vm1192, %v1183, %v559
    %v1199 = vsel %vm1192, %v1184, %v561
    %v1200 = vsel %vm1192, %v1185, %v563
    %v1201 = vsel %vm1192, %v1186, %v565
    %v1202 = vsel %vm1192, %v1187, %v567
    %v1203 = vsel %vm1192, %v1188, %v569
    %v1204 = vsel %vm1192, %v1189, %v571
    %v1205 = vsel %vm1192, %v1190, %v573
    %v1206 = vsel %vm1192, %v1191, %v575
    %vm1207 = vcmask 130048
    %v1208 = vsel %vm1207, %v1193, %v627
    %v1209 = vsel %vm1207, %v1194, %v629
    %v1210 = vsel %vm1207, %v1195, %v631
    %v1211 = vsel %vm1207, %v1196, %v633
    %v1212 = vsel %vm1207, %v1197, %v635
    %v1213 = vsel %vm1207, %v1198, %v637
    %v1214 = vsel %vm1207, %v1199, %v639
    %v1215 = vsel %vm1207, %v1200, %v641
    %v1216 = vsel %vm1207, %v1201, %v643
    %v1217 = vsel %vm1207, %v1202, %v645
    %v1218 = vsel %vm1207, %v1203, %v647
    %v1219 = vsel %vm1207, %v1204, %v649
    %v1220 = vsel %vm1207, %v1205, %v651
    %v1221 = vsel %vm1207, %v1206, %v653
    %vm1222 = vcmask 162816
    %v1223 = vsel %vm1222, %v1208, %v671
    %v1224 = vsel %vm1222, %v1209, %v673
    %v1225 = vsel %vm1222, %v1210, %v675
    %v1226 = vsel %vm1222, %v1211, %v677
    %v1227 = vsel %vm1222, %v1212, %v679
    %v1228 = vsel %vm1222, %v1213, %v681
    %v1229 = vsel %vm1222, %v1214, %v683
    %v1230 = vsel %vm1222, %v1215, %v685
    %v1231 = vsel %vm1222, %v1208, %v687
    %v1232 = vsel %vm1222, %v1209, %v689
    %v1233 = vsel %vm1222, %v1216, %v691
    %v1234 = vsel %vm1222, %v1217, %v693
    %v1235 = vsel %vm1222, %v1218, %v695
    %v1236 = vsel %vm1222, %v1219, %v697
    %v1237 = vsel %vm1222, %v1220, %v699
    %v1238 = vsel %vm1222, %v1221, %v701
    %vm1239 = vcmask 195584
    %v1240 = vsel %vm1239, %v1223, %v731
    %v1241 = vsel %vm1239, %v1224, %v733
    %v1242 = vsel %vm1239, %v1225, %v735
    %v1243 = vsel %vm1239, %v1226, %v737
    %v1244 = vsel %vm1239, %v1227, %v739
    %v1245 = vsel %vm1239, %v1228, %v741
    %v1246 = vsel %vm1239, %v1229, %v743
    %v1247 = vsel %vm1239, %v1230, %v745
    %v1248 = vsel %vm1239, %v1231, %v747
    %v1249 = vsel %vm1239, %v1232, %v749
    %v1250 = vsel %vm1239, %v1233, %v751
    %v1251 = vsel %vm1239, %v1234, %v753
    %v1252 = vsel %vm1239, %v1235, %v755
    %v1253 = vsel %vm1239, %v1236, %v757
    %v1254 = vsel %vm1239, %v1237, %v759
    %v1255 = vsel %vm1239, %v1238, %v761
    %vm1256 = vcmask 228352
    %v1257 = vsel %vm1256, %v1240, %v789
    %v1258 = vsel %vm1256, %v1241, %v791
    %v1259 = vsel %vm1256, %v1242, %v793
    %v1260 = vsel %vm1256, %v1243, %v795
    %v1261 = vsel %vm1256, %v1244, %v797
    %v1262 = vsel %vm1256, %v1245, %v799
    %v1263 = vsel %vm1256, %v1246, %v801
    %v1264 = vsel %vm1256, %v1247, %v803
    %v1265 = vsel %vm1256, %v1248, %v805
    %v1266 = vsel %vm1256, %v1249, %v807
    %v1267 = vsel %vm1256, %v1250, %v809
    %v1268 = vsel %vm1256, %v1251, %v811
    %v1269 = vsel %vm1256, %v1252, %v813
    %v1270 = vsel %vm1256, %v1253, %v815
    %v1271 = vsel %vm1256, %v1254, %v817
    %v1272 = vsel %vm1256, %v1255, %v819
    %vm1273 = vcmask 261120
    %v1274 = vsel %vm1273, %v1257, %v847
    %v1275 = vsel %vm1273, %v1258, %v849
    %v1276 = vsel %vm1273, %v1259, %v851
    %v1277 = vsel %vm1273, %v1260, %v853
    %v1278 = vsel %vm1273, %v1261, %v855
    %v1279 = vsel %vm1273, %v1262, %v857
    %v1280 = vsel %vm1273, %v1263, %v859
    %v1281 = vsel %vm1273, %v1264, %v861
    %v1282 = vsel %vm1273, %v1265, %v863
    %v1283 = vsel %vm1273, %v1266, %v865
    %v1284 = vsel %vm1273, %v1267, %v867
    %v1285 = vsel %vm1273, %v1268, %v869
    %v1286 = vsel %vm1273, %v1269, %v871
    %v1287 = vsel %vm1273, %v1270, %v873
    %v1288 = vsel %vm1273, %v1271, %v875
    %v1289 = vsel %vm1273, %v1272, %v877
    %vm1290 = vcmask 293888
    %v1291 = vsel %vm1290, %v1274, %v905
    %v1292 = vsel %vm1290, %v1275, %v907
    %v1293 = vsel %vm1290, %v1276, %v909
    %v1294 = vsel %vm1290, %v1277, %v911
    %v1295 = vsel %vm1290, %v1278, %v913
    %v1296 = vsel %vm1290, %v1279, %v915
    %v1297 = vsel %vm1290, %v1280, %v917
    %v1298 = vsel %vm1290, %v1281, %v919
    %v1299 = vsel %vm1290, %v1282, %v921
    %v1300 = vsel %vm1290, %v1283, %v923
    %v1301 = vsel %vm1290, %v1284, %v925
    %v1302 = vsel %vm1290, %v1285, %v927
    %v1303 = vsel %vm1290, %v1286, %v929
    %v1304 = vsel %vm1290, %v1287, %v931
    %v1305 = vsel %vm1290, %v1288, %v933
    %v1306 = vsel %vm1290, %v1289, %v935
    %vm1307 = vcmask 326656
    %v1308 = vsel %vm1307, %v1291, %v953
    %v1309 = vsel %vm1307, %v1292, %v955
    %v1310 = vsel %vm1307, %v1293, %v957
    %v1311 = vsel %vm1307, %v1294, %v959
    %v1312 = vsel %vm1307, %v1295, %v961
    %v1313 = vsel %vm1307, %v1296, %v963
    %v1314 = vsel %vm1307, %v1297, %v965
    %v1315 = vsel %vm1307, %v1298, %v967
    %v1316 = vsel %vm1307, %v1299, %v969
    %v1317 = vsel %vm1307, %v1300, %v971
    %v1318 = vsel %vm1307, %v1301, %v973
    %v1319 = vsel %vm1307, %v1302, %v975
    %v1320 = vsel %vm1307, %v1303, %v977
    %v1321 = vsel %vm1307, %v1304, %v979
    %v1322 = vsel %vm1307, %v1305, %v965
    %v1323 = vsel %vm1307, %v1306, %v967
    %vm1324 = vcmask 359424
    %v1325 = vsel %vm1324, %v1308, %v995
    %v1326 = vsel %vm1324, %v1309, %v997
    %v1327 = vsel %vm1324, %v1310, %v999
    %v1328 = vsel %vm1324, %v1311, %v1001
    %v1329 = vsel %vm1324, %v1312, %v1003
    %v1330 = vsel %vm1324, %v1313, %v1005
    %v1331 = vsel %vm1324, %v1314, %v1007
    %v1332 = vsel %vm1324, %v1315, %v1009
    %v1333 = vsel %vm1324, %v1316, %v1011
    %v1334 = vsel %vm1324, %v1317, %v1013
    %v1335 = vsel %vm1324, %v1318, %v1015
    %v1336 = vsel %vm1324, %v1319, %v1017
    %v1337 = vsel %vm1324, %v1320, %v1019
    %v1338 = vsel %vm1324, %v1321, %v1021
    %v1339 = vsel %vm1324, %v1322, %v1007
    %v1340 = vsel %vm1324, %v1323, %v1009
    %vm1341 = vcmask 392192
    %v1342 = vsel %vm1341, %v1325, %v1037
    %v1343 = vsel %vm1341, %v1326, %v1039
    %v1344 = vsel %vm1341, %v1327, %v1041
    %v1345 = vsel %vm1341, %v1328, %v1043
    %v1346 = vsel %vm1341, %v1329, %v1045
    %v1347 = vsel %vm1341, %v1330, %v1047
    %v1348 = vsel %vm1341, %v1331, %v1049
    %v1349 = vsel %vm1341, %v1332, %v1051
    %v1350 = vsel %vm1341, %v1333, %v1053
    %v1351 = vsel %vm1341, %v1334, %v1055
    %v1352 = vsel %vm1341, %v1335, %v1057
    %v1353 = vsel %vm1341, %v1336, %v1059
    %v1354 = vsel %vm1341, %v1337, %v1061
    %v1355 = vsel %vm1341, %v1338, %v1063
    %v1356 = vsel %vm1341, %v1339, %v1049
    %v1357 = vsel %vm1341, %v1340, %v1051
    %vm1358 = vcmask 424960
    %v1359 = vsel %vm1358, %v1342, %v1079
    %v1360 = vsel %vm1358, %v1343, %v1081
    %v1361 = vsel %vm1358, %v1344, %v1083
    %v1362 = vsel %vm1358, %v1345, %v1085
    %v1363 = vsel %vm1358, %v1346, %v1087
    %v1364 = vsel %vm1358, %v1347, %v1089
    %v1365 = vsel %vm1358, %v1348, %v1091
    %v1366 = vsel %vm1358, %v1349, %v1093
    %v1367 = vsel %vm1358, %v1350, %v1095
    %v1368 = vsel %vm1358, %v1351, %v1097
    %v1369 = vsel %vm1358, %v1352, %v1099
    %v1370 = vsel %vm1358, %v1353, %v1101
    %v1371 = vsel %vm1358, %v1354, %v1103
    %v1372 = vsel %vm1358, %v1355, %v1105
    %v1373 = vsel %vm1358, %v1356, %v1091
    %v1374 = vsel %vm1358, %v1357, %v1093
    %vm1375 = vcmask 457728
    %v1376 = vsel %vm1375, %v1359, %v1121
    %v1377 = vsel %vm1375, %v1360, %v1123
    %v1378 = vsel %vm1375, %v1361, %v1125
    %v1379 = vsel %vm1375, %v1362, %v1127
    %v1380 = vsel %vm1375, %v1363, %v1129
    %v1381 = vsel %vm1375, %v1364, %v1131
    %v1382 = vsel %vm1375, %v1365, %v1133
    %v1383 = vsel %vm1375, %v1366, %v1135
    %v1384 = vsel %vm1375, %v1367, %v1137
    %v1385 = vsel %vm1375, %v1368, %v1139
    %v1386 = vsel %vm1375, %v1369, %v1141
    %v1387 = vsel %vm1375, %v1370, %v1143
    %v1388 = vsel %vm1375, %v1371, %v1145
    %v1389 = vsel %vm1375, %v1372, %v1147
    %v1390 = vsel %vm1375, %v1373, %v1133
    %v1391 = vsel %vm1375, %v1374, %v1135
    %v1392 = vld [vmem:[#allocation5] sm:$0xff]
    %v1393 = vld [vmem:[#allocation5 + $0x8] sm:$0xff]
    %v1394 = vld [vmem:[#allocation5 + $0x10] sm:$0xff]
    %v1395 = vld [vmem:[#allocation5 + $0x18] sm:$0xff]
    %v1396 = vld [vmem:[#allocation5 + $0x20] sm:$0xff]
    %v1397 = vld [vmem:[#allocation5 + $0x28] sm:$0xff]
    %v1398 = vld [vmem:[#allocation5 + $0x30] sm:$0xff]
    %v1399 = vld [vmem:[#allocation5 + $0x38] sm:$0xf]
    %v1400 = vld [vmem:[#allocation7] sm:$0x1]
    %v1402 = vlaneseq
    %v1403 = vshrl.u32 %v1402, 7
    %v1404 = vsub.s32 0, %v1403
    %v1405 = vrot.slane %v1400, %v1404
    %vm1407 = vcmask 490496
    %v1409 = vsel %vm1407, %v1376, 0
    %v1412 = vsel %vm1407, %v1377, 0
    %v1415 = vsel %vm1407, %v1378, 0
    %v1418 = vsel %vm1407, %v1379, 0
    %v1421 = vsel %vm1407, %v1380, 0
    %v1424 = vsel %vm1407, %v1381, 0
    %v1427 = vsel %vm1407, %v1382, 0
    %v1430 = vsel %vm1407, %v1383, 0
    %v1433 = vsel %vm1407, %v1384, 0
    %v1436 = vsel %vm1407, %v1385, 0
    %v1439 = vsel %vm1407, %v1386, 0
    %v1442 = vsel %vm1407, %v1387, 0
    %v1445 = vsel %vm1407, %v1388, 0
    %v1448 = vsel %vm1407, %v1389, 0
    %v1451 = vsel %vm1407, %v1390, 0
    %v1454 = vsel %vm1407, %v1391, 0
    %v1457 = vsel %vm590, %v1399, 0
    %1459 = vmatprep.subr.mxu0 0.0
    %1460 = vmatpush1.msra.mxu0 %v1392
    %1461 = vmatprep.subr.mxu0 0.0
    %1462 = vmatpush1.msra.mxu0 %v1393
    %1463 = vmatprep.subr.mxu0 0.0
    %1464 = vmatpush1.msra.mxu0 %v1394
    %1465 = vmatprep.subr.mxu0 0.0
    %1466 = vmatpush1.msra.mxu0 %v1395
    %1467 = vmatprep.subr.mxu0 0.0
    %1468 = vmatpush1.msra.mxu0 %v1396
    %1469 = vmatprep.subr.mxu0 0.0
    %1470 = vmatpush1.msra.mxu0 %v1397
    %1471 = vmatprep.subr.mxu0 0.0
    %1472 = vmatpush1.msra.mxu0 %v1398
    %1473 = vmatprep.subr.mxu0 0.0
    %1474 = vmatpush1.msra.mxu0 %v1457
    %1475 = vmatprep.subr.mxu0 0.0
    %1476 = vmatpush1.msra.mxu0 0.0
    %1477 = vmatprep.subr.mxu0 0.0
    %1478 = vmatpush1.msra.mxu0 0.0
    %1479 = vmatprep.subr.mxu0 0.0
    %1480 = vmatpush1.msra.mxu0 0.0
    %1481 = vmatprep.subr.mxu0 0.0
    %1482 = vmatpush1.msra.mxu0 0.0
    %1483 = vmatprep.subr.mxu0 0.0
    %1484 = vmatpush1.msra.mxu0 0.0
    %1485 = vmatprep.subr.mxu0 0.0
    %1486 = vmatpush1.msra.mxu0 0.0
    %1487 = vmatprep.subr.mxu0 0.0
    %1488 = vmatpush1.msra.mxu0 0.0
    %1489 = vmatprep.subr.mxu0 0.0
    %1490 = vmatpush1.msra.mxu0 0.0
    %1491 = vmatprep.subr.mxu0 0.0
    %1492 = vmatpush1.msra.mxu0 0.0
    %1493 = vmatprep.subr.mxu0 0.0
    %1494 = vmatpush1.msra.mxu0 0.0
    %1495 = vmatprep.subr.mxu0 0.0
    %1496 = vmatpush1.msra.mxu0 0.0
    %1497 = vmatprep.subr.mxu0 0.0
    %1498 = vmatpush1.msra.mxu0 0.0
    %1499 = vmatprep.subr.mxu0 0.0
    %1500 = vmatpush1.msra.mxu0 0.0
    %1501 = vmatprep.subr.mxu0 0.0
    %1502 = vmatpush1.msra.mxu0 0.0
    %1503 = vmatprep.subr.mxu0 0.0
    %1504 = vmatpush1.msra.mxu0 0.0
    %1505 = vmatprep.subr.mxu0 0.0
    %1506 = vmatpush1.msra.mxu0 0.0
    %1507 = vmatprep.subr.mxu0 0.0
    %1508 = vmatpush1.msra.mxu0 0.0
    %1509 = vmatprep.subr.mxu0 0.0
    %1510 = vmatpush1.msra.mxu0 0.0
    %1511 = vmatprep.subr.mxu0 0.0
    %1512 = vmatpush1.msra.mxu0 0.0
    %1513 = vmatprep.subr.mxu0 0.0
    %1514 = vmatpush1.msra.mxu0 0.0
    %1515 = vmatprep.subr.mxu0 0.0
    %1516 = vmatpush1.msra.mxu0 0.0
    %1517 = vmatprep.subr.mxu0 0.0
    %1518 = vmatpush1.msra.mxu0 0.0
    %1519 = vmatprep.subr.mxu0 0.0
    %1520 = vmatpush1.msra.mxu0 0.0
    %1521 = vmatprep.subr.mxu0 0.0
    %1522 = vmatpush1.msra.mxu0 0.0
    %1523 = vmatprep.mubr.f32.mxu0 0.0
    %1524 = vmatmul.mubr.f32.gmra.mrb[0].mxu0 %v1409
    %v1525 = vpop.f32.mrb[0].mxu0
    %v1526 = vadd.f32 %v1405, %v1525
    %v1527 = vpop.f32.mrb[0].mxu0
    %1528 = vmatprep.mubr.f32.mxu0 0.0
    %1529 = vmatmul.mubr.f32.gmra.mrb[0].mxu0 %v1412
    %v1530 = vpop.f32.mrb[0].mxu0
    %v1531 = vadd.f32 %v1405, %v1530
    %v1532 = vpop.f32.mrb[0].mxu0
    %1533 = vmatprep.mubr.f32.mxu0 0.0
    %1534 = vmatmul.mubr.f32.gmra.mrb[0].mxu0 %v1415
    %v1535 = vpop.f32.mrb[0].mxu0
    %v1536 = vadd.f32 %v1405, %v1535
    %v1537 = vpop.f32.mrb[0].mxu0
    %1538 = vmatprep.mubr.f32.mxu0 0.0
    %1539 = vmatmul.mubr.f32.gmra.mrb[0].mxu0 %v1418
    %v1540 = vpop.f32.mrb[0].mxu0
    %v1541 = vadd.f32 %v1405, %v1540
    %v1542 = vpop.f32.mrb[0].mxu0
    %1543 = vmatprep.mubr.f32.mxu0 0.0
    %1544 = vmatmul.mubr.f32.gmra.mrb[0].mxu0 %v1421
    %v1545 = vpop.f32.mrb[0].mxu0
    %v1546 = vadd.f32 %v1405, %v1545
    %v1547 = vpop.f32.mrb[0].mxu0
    %1548 = vmatprep.mubr.f32.mxu0 0.0
    %1549 = vmatmul.mubr.f32.gmra.mrb[0].mxu0 %v1424
    %v1550 = vpop.f32.mrb[0].mxu0
    %v1551 = vadd.f32 %v1405, %v1550
    %v1552 = vpop.f32.mrb[0].mxu0
    %1553 = vmatprep.mubr.f32.mxu0 0.0
    %1554 = vmatmul.mubr.f32.gmra.mrb[0].mxu0 %v1427
    %v1555 = vpop.f32.mrb[0].mxu0
    %v1556 = vadd.f32 %v1405, %v1555
    %v1557 = vpop.f32.mrb[0].mxu0
    %1558 = vmatprep.mubr.f32.mxu0 0.0
    %1559 = vmatmul.mubr.f32.gmra.mrb[0].mxu0 %v1430
    %v1560 = vpop.f32.mrb[0].mxu0
    %v1561 = vadd.f32 %v1405, %v1560
    %v1562 = vpop.f32.mrb[0].mxu0
    %1563 = vmatprep.mubr.f32.mxu0 0.0
    %1564 = vmatmul.mubr.f32.gmra.mrb[0].mxu0 %v1433
    %v1565 = vpop.f32.mrb[0].mxu0
    %v1566 = vadd.f32 %v1405, %v1565
    %v1567 = vpop.f32.mrb[0].mxu0
    %1568 = vmatprep.mubr.f32.mxu0 0.0
    %1569 = vmatmul.mubr.f32.gmra.mrb[0].mxu0 %v1436
    %v1570 = vpop.f32.mrb[0].mxu0
    %v1571 = vadd.f32 %v1405, %v1570
    %v1572 = vpop.f32.mrb[0].mxu0
    %1573 = vmatprep.mubr.f32.mxu0 0.0
    %1574 = vmatmul.mubr.f32.gmra.mrb[0].mxu0 %v1439
    %v1575 = vpop.f32.mrb[0].mxu0
    %v1576 = vadd.f32 %v1405, %v1575
    %v1577 = vpop.f32.mrb[0].mxu0
    %1578 = vmatprep.mubr.f32.mxu0 0.0
    %1579 = vmatmul.mubr.f32.gmra.mrb[0].mxu0 %v1442
    %v1580 = vpop.f32.mrb[0].mxu0
    %v1581 = vadd.f32 %v1405, %v1580
    %v1582 = vpop.f32.mrb[0].mxu0
    %1583 = vmatprep.mubr.f32.mxu0 0.0
    %1584 = vmatmul.mubr.f32.gmra.mrb[0].mxu0 %v1445
    %v1585 = vpop.f32.mrb[0].mxu0
    %v1586 = vadd.f32 %v1405, %v1585
    %v1587 = vpop.f32.mrb[0].mxu0
    %1588 = vmatprep.mubr.f32.mxu0 0.0
    %1589 = vmatmul.mubr.f32.gmra.mrb[0].mxu0 %v1448
    %v1590 = vpop.f32.mrb[0].mxu0
    %v1591 = vadd.f32 %v1405, %v1590
    %v1592 = vpop.f32.mrb[0].mxu0
    %1593 = vmatprep.mubr.f32.mxu0 0.0
    %1594 = vmatmul.mubr.f32.gmra.mrb[0].mxu0 %v1451
    %v1595 = vpop.f32.mrb[0].mxu0
    %v1596 = vadd.f32 %v1405, %v1595
    %v1597 = vpop.f32.mrb[0].mxu0
    %1598 = vmatprep.mubr.f32.mxu0 0.0
    %1599 = vmatmul.mubr.f32.gmra.mrb[0].mxu0 %v1454
    %v1600 = vpop.f32.mrb[0].mxu0
    %v1601 = vadd.f32 %v1405, %v1600
    %v1602 = vpop.f32.mrb[0].mxu0
    %1603 = vdwg.mxu0
    %v1604 = vmax.f32 %v1526, 0.0
    %v1605 = vmax.f32 %v1531, 0.0
    %v1606 = vmax.f32 %v1536, 0.0
    %v1607 = vmax.f32 %v1541, 0.0
    %v1608 = vmax.f32 %v1546, 0.0
    %v1609 = vmax.f32 %v1551, 0.0
    %v1610 = vmax.f32 %v1556, 0.0
    %v1611 = vmax.f32 %v1561, 0.0
    %v1612 = vmax.f32 %v1566, 0.0
    %v1613 = vmax.f32 %v1571, 0.0
    %v1614 = vmax.f32 %v1576, 0.0
    %v1615 = vmax.f32 %v1581, 0.0
    %v1616 = vmax.f32 %v1586, 0.0
    %v1617 = vmax.f32 %v1591, 0.0
    %v1618 = vmax.f32 %v1596, 0.0
    %v1619 = vmax.f32 %v1601, 0.0
    %v1636 = vcombine.high %v1604, %v1604
    %v1638 = vunpack.c.l.s4 1983009808
    %v1639 = vunpack.c.0.s8 %v1638
    %v1640 = vlaneseq
    %v1641 = vshrl.u32 %v1640, 7
    %v1642 = vsub.s32 %v1639, %v1641
    %v1643 = vrot.slane %v1604, %v1642
    %v1645 = vunpack.c.l.s4 1983009808
    %v1646 = vunpack.c.0.s8 %v1645
    %v1647 = vlaneseq
    %v1648 = vshrl.u32 %v1647, 7
    %v1649 = vsub.s32 %v1646, %v1648
    %v1650 = vrot.slane %v1636, %v1649
    %v1651 = vcombine.high %v1643, %v1643
    %v1652 = vcombine.high %v1650, %v1650
    %v1653 = vcombine.high %v1605, %v1605
    %v1655 = vunpack.c.l.s4 1983009808
    %v1656 = vunpack.c.0.s8 %v1655
    %v1657 = vlaneseq
    %v1658 = vshrl.u32 %v1657, 7
    %v1659 = vsub.s32 %v1656, %v1658
    %v1660 = vrot.slane %v1605, %v1659
    %v1662 = vunpack.c.l.s4 1983009808
    %v1663 = vunpack.c.0.s8 %v1662
    %v1664 = vlaneseq
    %v1665 = vshrl.u32 %v1664, 7
    %v1666 = vsub.s32 %v1663, %v1665
    %v1667 = vrot.slane %v1653, %v1666
    %v1668 = vcombine.high %v1660, %v1660
    %v1669 = vcombine.high %v1667, %v1667
    %v1670 = vcombine.high %v1606, %v1606
    %v1672 = vunpack.c.l.s4 1983009808
    %v1673 = vunpack.c.0.s8 %v1672
    %v1674 = vlaneseq
    %v1675 = vshrl.u32 %v1674, 7
    %v1676 = vsub.s32 %v1673, %v1675
    %v1677 = vrot.slane %v1606, %v1676
    %v1679 = vunpack.c.l.s4 1983009808
    %v1680 = vunpack.c.0.s8 %v1679
    %v1681 = vlaneseq
    %v1682 = vshrl.u32 %v1681, 7
    %v1683 = vsub.s32 %v1680, %v1682
    %v1684 = vrot.slane %v1670, %v1683
    %v1685 = vcombine.high %v1677, %v1677
    %v1686 = vcombine.high %v1684, %v1684
    %v1687 = vcombine.high %v1607, %v1607
    %v1689 = vunpack.c.l.s4 1983009808
    %v1690 = vunpack.c.0.s8 %v1689
    %v1691 = vlaneseq
    %v1692 = vshrl.u32 %v1691, 7
    %v1693 = vsub.s32 %v1690, %v1692
    %v1694 = vrot.slane %v1607, %v1693
    %v1696 = vunpack.c.l.s4 1983009808
    %v1697 = vunpack.c.0.s8 %v1696
    %v1698 = vlaneseq
    %v1699 = vshrl.u32 %v1698, 7
    %v1700 = vsub.s32 %v1697, %v1699
    %v1701 = vrot.slane %v1687, %v1700
    %v1702 = vcombine.high %v1694, %v1694
    %v1703 = vcombine.high %v1701, %v1701
    %v1704 = vcombine.high %v1608, %v1608
    %v1706 = vunpack.c.l.s4 1983009808
    %v1707 = vunpack.c.0.s8 %v1706
    %v1708 = vlaneseq
    %v1709 = vshrl.u32 %v1708, 7
    %v1710 = vsub.s32 %v1707, %v1709
    %v1711 = vrot.slane %v1608, %v1710
    %v1713 = vunpack.c.l.s4 1983009808
    %v1714 = vunpack.c.0.s8 %v1713
    %v1715 = vlaneseq
    %v1716 = vshrl.u32 %v1715, 7
    %v1717 = vsub.s32 %v1714, %v1716
    %v1718 = vrot.slane %v1704, %v1717
    %v1719 = vcombine.high %v1711, %v1711
    %v1720 = vcombine.high %v1718, %v1718
    %v1721 = vcombine.high %v1609, %v1609
    %v1723 = vunpack.c.l.s4 1983009808
    %v1724 = vunpack.c.0.s8 %v1723
    %v1725 = vlaneseq
    %v1726 = vshrl.u32 %v1725, 7
    %v1727 = vsub.s32 %v1724, %v1726
    %v1728 = vrot.slane %v1609, %v1727
    %v1730 = vunpack.c.l.s4 1983009808
    %v1731 = vunpack.c.0.s8 %v1730
    %v1732 = vlaneseq
    %v1733 = vshrl.u32 %v1732, 7
    %v1734 = vsub.s32 %v1731, %v1733
    %v1735 = vrot.slane %v1721, %v1734
    %v1736 = vcombine.high %v1728, %v1728
    %v1737 = vcombine.high %v1735, %v1735
    %v1738 = vcombine.high %v1610, %v1610
    %v1740 = vunpack.c.l.s4 1983009808
    %v1741 = vunpack.c.0.s8 %v1740
    %v1742 = vlaneseq
    %v1743 = vshrl.u32 %v1742, 7
    %v1744 = vsub.s32 %v1741, %v1743
    %v1745 = vrot.slane %v1610, %v1744
    %v1747 = vunpack.c.l.s4 1983009808
    %v1748 = vunpack.c.0.s8 %v1747
    %v1749 = vlaneseq
    %v1750 = vshrl.u32 %v1749, 7
    %v1751 = vsub.s32 %v1748, %v1750
    %v1752 = vrot.slane %v1738, %v1751
    %v1753 = vcombine.high %v1745, %v1745
    %v1754 = vcombine.high %v1752, %v1752
    %v1755 = vcombine.high %v1611, %v1611
    %v1757 = vunpack.c.l.s4 1983009808
    %v1758 = vunpack.c.0.s8 %v1757
    %v1759 = vlaneseq
    %v1760 = vshrl.u32 %v1759, 7
    %v1761 = vsub.s32 %v1758, %v1760
    %v1762 = vrot.slane %v1611, %v1761
    %v1764 = vunpack.c.l.s4 1983009808
    %v1765 = vunpack.c.0.s8 %v1764
    %v1766 = vlaneseq
    %v1767 = vshrl.u32 %v1766, 7
    %v1768 = vsub.s32 %v1765, %v1767
    %v1769 = vrot.slane %v1755, %v1768
    %v1770 = vcombine.high %v1762, %v1762
    %v1771 = vcombine.high %v1769, %v1769
    %v1772 = vcombine.high %v1612, %v1612
    %v1774 = vunpack.c.l.s4 1983009808
    %v1775 = vunpack.c.0.s8 %v1774
    %v1776 = vlaneseq
    %v1777 = vshrl.u32 %v1776, 7
    %v1778 = vsub.s32 %v1775, %v1777
    %v1779 = vrot.slane %v1612, %v1778
    %v1781 = vunpack.c.l.s4 1983009808
    %v1782 = vunpack.c.0.s8 %v1781
    %v1783 = vlaneseq
    %v1784 = vshrl.u32 %v1783, 7
    %v1785 = vsub.s32 %v1782, %v1784
    %v1786 = vrot.slane %v1772, %v1785
    %v1787 = vcombine.high %v1779, %v1779
    %v1788 = vcombine.high %v1786, %v1786
    %v1789 = vcombine.high %v1613, %v1613
    %v1791 = vunpack.c.l.s4 1983009808
    %v1792 = vunpack.c.0.s8 %v1791
    %v1793 = vlaneseq
    %v1794 = vshrl.u32 %v1793, 7
    %v1795 = vsub.s32 %v1792, %v1794
    %v1796 = vrot.slane %v1613, %v1795
    %v1798 = vunpack.c.l.s4 1983009808
    %v1799 = vunpack.c.0.s8 %v1798
    %v1800 = vlaneseq
    %v1801 = vshrl.u32 %v1800, 7
    %v1802 = vsub.s32 %v1799, %v1801
    %v1803 = vrot.slane %v1789, %v1802
    %v1804 = vcombine.high %v1796, %v1796
    %v1805 = vcombine.high %v1803, %v1803
    %v1806 = vcombine.high %v1614, %v1614
    %v1808 = vunpack.c.l.s4 1983009808
    %v1809 = vunpack.c.0.s8 %v1808
    %v1810 = vlaneseq
    %v1811 = vshrl.u32 %v1810, 7
    %v1812 = vsub.s32 %v1809, %v1811
    %v1813 = vrot.slane %v1614, %v1812
    %v1815 = vunpack.c.l.s4 1983009808
    %v1816 = vunpack.c.0.s8 %v1815
    %v1817 = vlaneseq
    %v1818 = vshrl.u32 %v1817, 7
    %v1819 = vsub.s32 %v1816, %v1818
    %v1820 = vrot.slane %v1806, %v1819
    %v1821 = vcombine.high %v1813, %v1813
    %v1822 = vcombine.high %v1820, %v1820
    %v1823 = vcombine.high %v1615, %v1615
    %v1825 = vunpack.c.l.s4 1983009808
    %v1826 = vunpack.c.0.s8 %v1825
    %v1827 = vlaneseq
    %v1828 = vshrl.u32 %v1827, 7
    %v1829 = vsub.s32 %v1826, %v1828
    %v1830 = vrot.slane %v1615, %v1829
    %v1832 = vunpack.c.l.s4 1983009808
    %v1833 = vunpack.c.0.s8 %v1832
    %v1834 = vlaneseq
    %v1835 = vshrl.u32 %v1834, 7
    %v1836 = vsub.s32 %v1833, %v1835
    %v1837 = vrot.slane %v1823, %v1836
    %v1838 = vcombine.high %v1830, %v1830
    %v1839 = vcombine.high %v1837, %v1837
    %v1840 = vcombine.high %v1616, %v1616
    %v1842 = vunpack.c.l.s4 1983009808
    %v1843 = vunpack.c.0.s8 %v1842
    %v1844 = vlaneseq
    %v1845 = vshrl.u32 %v1844, 7
    %v1846 = vsub.s32 %v1843, %v1845
    %v1847 = vrot.slane %v1616, %v1846
    %v1849 = vunpack.c.l.s4 1983009808
    %v1850 = vunpack.c.0.s8 %v1849
    %v1851 = vlaneseq
    %v1852 = vshrl.u32 %v1851, 7
    %v1853 = vsub.s32 %v1850, %v1852
    %v1854 = vrot.slane %v1840, %v1853
    %v1855 = vcombine.high %v1847, %v1847
    %v1856 = vcombine.high %v1854, %v1854
    %v1857 = vcombine.high %v1617, %v1617
    %v1859 = vunpack.c.l.s4 1983009808
    %v1860 = vunpack.c.0.s8 %v1859
    %v1861 = vlaneseq
    %v1862 = vshrl.u32 %v1861, 7
    %v1863 = vsub.s32 %v1860, %v1862
    %v1864 = vrot.slane %v1617, %v1863
    %v1866 = vunpack.c.l.s4 1983009808
    %v1867 = vunpack.c.0.s8 %v1866
    %v1868 = vlaneseq
    %v1869 = vshrl.u32 %v1868, 7
    %v1870 = vsub.s32 %v1867, %v1869
    %v1871 = vrot.slane %v1857, %v1870
    %v1872 = vcombine.high %v1864, %v1864
    %v1873 = vcombine.high %v1871, %v1871
    %v1874 = vcombine.high %v1618, %v1618
    %v1876 = vunpack.c.l.s4 1983009808
    %v1877 = vunpack.c.0.s8 %v1876
    %v1878 = vlaneseq
    %v1879 = vshrl.u32 %v1878, 7
    %v1880 = vsub.s32 %v1877, %v1879
    %v1881 = vrot.slane %v1618, %v1880
    %v1883 = vunpack.c.l.s4 1983009808
    %v1884 = vunpack.c.0.s8 %v1883
    %v1885 = vlaneseq
    %v1886 = vshrl.u32 %v1885, 7
    %v1887 = vsub.s32 %v1884, %v1886
    %v1888 = vrot.slane %v1874, %v1887
    %v1889 = vcombine.high %v1881, %v1881
    %v1890 = vcombine.high %v1888, %v1888
    %v1891 = vcombine.high %v1619, %v1619
    %v1893 = vunpack.c.l.s4 1983009808
    %v1894 = vunpack.c.0.s8 %v1893
    %v1895 = vlaneseq
    %v1896 = vshrl.u32 %v1895, 7
    %v1897 = vsub.s32 %v1894, %v1896
    %v1898 = vrot.slane %v1619, %v1897
    %v1900 = vunpack.c.l.s4 1983009808
    %v1901 = vunpack.c.0.s8 %v1900
    %v1902 = vlaneseq
    %v1903 = vshrl.u32 %v1902, 7
    %v1904 = vsub.s32 %v1901, %v1903
    %v1905 = vrot.slane %v1891, %v1904
    %v1906 = vcombine.high %v1898, %v1898
    %v1907 = vcombine.high %v1905, %v1905
    %vm1972 = vcmask 123904
    %v1973 = vsel %vm1972, %v1643, -inf
    %v1974 = vrot.slane %v1973, 4
    %v1975 = vmax.f32 %v1973, %v1974
    %v1976 = vrot.slane %v1975, 2
    %v1977 = vmax.f32 %v1975, %v1976
    %v1978 = vrot.slane %v1977, 1
    %v1979 = vmax.f32 %v1977, %v1978
    %v1980 = vsel %vm1972, %v1651, -inf
    %v1981 = vrot.slane %v1980, 4
    %v1982 = vmax.f32 %v1980, %v1981
    %v1983 = vrot.slane %v1982, 2
    %v1984 = vmax.f32 %v1982, %v1983
    %v1985 = vrot.slane %v1984, 1
    %v1986 = vmax.f32 %v1984, %v1985
    %v1987 = vsel %vm1972, %v1650, -inf
    %v1988 = vrot.slane %v1987, 4
    %v1989 = vmax.f32 %v1987, %v1988
    %v1990 = vrot.slane %v1989, 2
    %v1991 = vmax.f32 %v1989, %v1990
    %v1992 = vrot.slane %v1991, 1
    %v1993 = vmax.f32 %v1991, %v1992
    %v1994 = vsel %vm1972, %v1652, -inf
    %v1995 = vrot.slane %v1994, 4
    %v1996 = vmax.f32 %v1994, %v1995
    %v1997 = vrot.slane %v1996, 2
    %v1998 = vmax.f32 %v1996, %v1997
    %v1999 = vrot.slane %v1998, 1
    %v2000 = vmax.f32 %v1998, %v1999
    %v2001 = vsel %vm1972, %v1660, -inf
    %v2002 = vrot.slane %v2001, 4
    %v2003 = vmax.f32 %v2001, %v2002
    %v2004 = vrot.slane %v2003, 2
    %v2005 = vmax.f32 %v2003, %v2004
    %v2006 = vrot.slane %v2005, 1
    %v2007 = vmax.f32 %v2005, %v2006
    %v2008 = vsel %vm1972, %v1668, -inf
    %v2009 = vrot.slane %v2008, 4
    %v2010 = vmax.f32 %v2008, %v2009
    %v2011 = vrot.slane %v2010, 2
    %v2012 = vmax.f32 %v2010, %v2011
    %v2013 = vrot.slane %v2012, 1
    %v2014 = vmax.f32 %v2012, %v2013
    %v2015 = vsel %vm1972, %v1667, -inf
    %v2016 = vrot.slane %v2015, 4
    %v2017 = vmax.f32 %v2015, %v2016
    %v2018 = vrot.slane %v2017, 2
    %v2019 = vmax.f32 %v2017, %v2018
    %v2020 = vrot.slane %v2019, 1
    %v2021 = vmax.f32 %v2019, %v2020
    %v2022 = vsel %vm1972, %v1669, -inf
    %v2023 = vrot.slane %v2022, 4
    %v2024 = vmax.f32 %v2022, %v2023
    %v2025 = vrot.slane %v2024, 2
    %v2026 = vmax.f32 %v2024, %v2025
    %v2027 = vrot.slane %v2026, 1
    %v2028 = vmax.f32 %v2026, %v2027
    %v2029 = vsel %vm1972, %v1677, -inf
    %v2030 = vrot.slane %v2029, 4
    %v2031 = vmax.f32 %v2029, %v2030
    %v2032 = vrot.slane %v2031, 2
    %v2033 = vmax.f32 %v2031, %v2032
    %v2034 = vrot.slane %v2033, 1
    %v2035 = vmax.f32 %v2033, %v2034
    %v2036 = vsel %vm1972, %v1685, -inf
    %v2037 = vrot.slane %v2036, 4
    %v2038 = vmax.f32 %v2036, %v2037
    %v2039 = vrot.slane %v2038, 2
    %v2040 = vmax.f32 %v2038, %v2039
    %v2041 = vrot.slane %v2040, 1
    %v2042 = vmax.f32 %v2040, %v2041
    %v2043 = vsel %vm1972, %v1684, -inf
    %v2044 = vrot.slane %v2043, 4
    %v2045 = vmax.f32 %v2043, %v2044
    %v2046 = vrot.slane %v2045, 2
    %v2047 = vmax.f32 %v2045, %v2046
    %v2048 = vrot.slane %v2047, 1
    %v2049 = vmax.f32 %v2047, %v2048
    %v2050 = vsel %vm1972, %v1686, -inf
    %v2051 = vrot.slane %v2050, 4
    %v2052 = vmax.f32 %v2050, %v2051
    %v2053 = vrot.slane %v2052, 2
    %v2054 = vmax.f32 %v2052, %v2053
    %v2055 = vrot.slane %v2054, 1
    %v2056 = vmax.f32 %v2054, %v2055
    %v2057 = vsel %vm1972, %v1694, -inf
    %v2058 = vrot.slane %v2057, 4
    %v2059 = vmax.f32 %v2057, %v2058
    %v2060 = vrot.slane %v2059, 2
    %v2061 = vmax.f32 %v2059, %v2060
    %v2062 = vrot.slane %v2061, 1
    %v2063 = vmax.f32 %v2061, %v2062
    %v2064 = vsel %vm1972, %v1702, -inf
    %v2065 = vrot.slane %v2064, 4
    %v2066 = vmax.f32 %v2064, %v2065
    %v2067 = vrot.slane %v2066, 2
    %v2068 = vmax.f32 %v2066, %v2067
    %v2069 = vrot.slane %v2068, 1
    %v2070 = vmax.f32 %v2068, %v2069
    %v2071 = vsel %vm1972, %v1701, -inf
    %v2072 = vrot.slane %v2071, 4
    %v2073 = vmax.f32 %v2071, %v2072
    %v2074 = vrot.slane %v2073, 2
    %v2075 = vmax.f32 %v2073, %v2074
    %v2076 = vrot.slane %v2075, 1
    %v2077 = vmax.f32 %v2075, %v2076
    %v2078 = vsel %vm1972, %v1703, -inf
    %v2079 = vrot.slane %v2078, 4
    %v2080 = vmax.f32 %v2078, %v2079
    %v2081 = vrot.slane %v2080, 2
    %v2082 = vmax.f32 %v2080, %v2081
    %v2083 = vrot.slane %v2082, 1
    %v2084 = vmax.f32 %v2082, %v2083
    %v2085 = vsel %vm1972, %v1711, -inf
    %v2086 = vrot.slane %v2085, 4
    %v2087 = vmax.f32 %v2085, %v2086
    %v2088 = vrot.slane %v2087, 2
    %v2089 = vmax.f32 %v2087, %v2088
    %v2090 = vrot.slane %v2089, 1
    %v2091 = vmax.f32 %v2089, %v2090
    %v2092 = vsel %vm1972, %v1719, -inf
    %v2093 = vrot.slane %v2092, 4
    %v2094 = vmax.f32 %v2092, %v2093
    %v2095 = vrot.slane %v2094, 2
    %v2096 = vmax.f32 %v2094, %v2095
    %v2097 = vrot.slane %v2096, 1
    %v2098 = vmax.f32 %v2096, %v2097
    %v2099 = vsel %vm1972, %v1718, -inf
    %v2100 = vrot.slane %v2099, 4
    %v2101 = vmax.f32 %v2099, %v2100
    %v2102 = vrot.slane %v2101, 2
    %v2103 = vmax.f32 %v2101, %v2102
    %v2104 = vrot.slane %v2103, 1
    %v2105 = vmax.f32 %v2103, %v2104
    %v2106 = vsel %vm1972, %v1720, -inf
    %v2107 = vrot.slane %v2106, 4
    %v2108 = vmax.f32 %v2106, %v2107
    %v2109 = vrot.slane %v2108, 2
    %v2110 = vmax.f32 %v2108, %v2109
    %v2111 = vrot.slane %v2110, 1
    %v2112 = vmax.f32 %v2110, %v2111
    %v2113 = vsel %vm1972, %v1728, -inf
    %v2114 = vrot.slane %v2113, 4
    %v2115 = vmax.f32 %v2113, %v2114
    %v2116 = vrot.slane %v2115, 2
    %v2117 = vmax.f32 %v2115, %v2116
    %v2118 = vrot.slane %v2117, 1
    %v2119 = vmax.f32 %v2117, %v2118
    %v2120 = vsel %vm1972, %v1736, -inf
    %v2121 = vrot.slane %v2120, 4
    %v2122 = vmax.f32 %v2120, %v2121
    %v2123 = vrot.slane %v2122, 2
    %v2124 = vmax.f32 %v2122, %v2123
    %v2125 = vrot.slane %v2124, 1
    %v2126 = vmax.f32 %v2124, %v2125
    %v2127 = vsel %vm1972, %v1735, -inf
    %v2128 = vrot.slane %v2127, 4
    %v2129 = vmax.f32 %v2127, %v2128
    %v2130 = vrot.slane %v2129, 2
    %v2131 = vmax.f32 %v2129, %v2130
    %v2132 = vrot.slane %v2131, 1
    %v2133 = vmax.f32 %v2131, %v2132
    %v2134 = vsel %vm1972, %v1737, -inf
    %v2135 = vrot.slane %v2134, 4
    %v2136 = vmax.f32 %v2134, %v2135
    %v2137 = vrot.slane %v2136, 2
    %v2138 = vmax.f32 %v2136, %v2137
    %v2139 = vrot.slane %v2138, 1
    %v2140 = vmax.f32 %v2138, %v2139
    %v2141 = vsel %vm1972, %v1745, -inf
    %v2142 = vrot.slane %v2141, 4
    %v2143 = vmax.f32 %v2141, %v2142
    %v2144 = vrot.slane %v2143, 2
    %v2145 = vmax.f32 %v2143, %v2144
    %v2146 = vrot.slane %v2145, 1
    %v2147 = vmax.f32 %v2145, %v2146
    %v2148 = vsel %vm1972, %v1753, -inf
    %v2149 = vrot.slane %v2148, 4
    %v2150 = vmax.f32 %v2148, %v2149
    %v2151 = vrot.slane %v2150, 2
    %v2152 = vmax.f32 %v2150, %v2151
    %v2153 = vrot.slane %v2152, 1
    %v2154 = vmax.f32 %v2152, %v2153
    %v2155 = vsel %vm1972, %v1752, -inf
    %v2156 = vrot.slane %v2155, 4
    %v2157 = vmax.f32 %v2155, %v2156
    %v2158 = vrot.slane %v2157, 2
    %v2159 = vmax.f32 %v2157, %v2158
    %v2160 = vrot.slane %v2159, 1
    %v2161 = vmax.f32 %v2159, %v2160
    %v2162 = vsel %vm1972, %v1754, -inf
    %v2163 = vrot.slane %v2162, 4
    %v2164 = vmax.f32 %v2162, %v2163
    %v2165 = vrot.slane %v2164, 2
    %v2166 = vmax.f32 %v2164, %v2165
    %v2167 = vrot.slane %v2166, 1
    %v2168 = vmax.f32 %v2166, %v2167
    %v2169 = vsel %vm1972, %v1762, -inf
    %v2170 = vrot.slane %v2169, 4
    %v2171 = vmax.f32 %v2169, %v2170
    %v2172 = vrot.slane %v2171, 2
    %v2173 = vmax.f32 %v2171, %v2172
    %v2174 = vrot.slane %v2173, 1
    %v2175 = vmax.f32 %v2173, %v2174
    %v2176 = vsel %vm1972, %v1770, -inf
    %v2177 = vrot.slane %v2176, 4
    %v2178 = vmax.f32 %v2176, %v2177
    %v2179 = vrot.slane %v2178, 2
    %v2180 = vmax.f32 %v2178, %v2179
    %v2181 = vrot.slane %v2180, 1
    %v2182 = vmax.f32 %v2180, %v2181
    %v2183 = vsel %vm1972, %v1769, -inf
    %v2184 = vrot.slane %v2183, 4
    %v2185 = vmax.f32 %v2183, %v2184
    %v2186 = vrot.slane %v2185, 2
    %v2187 = vmax.f32 %v2185, %v2186
    %v2188 = vrot.slane %v2187, 1
    %v2189 = vmax.f32 %v2187, %v2188
    %v2190 = vsel %vm1972, %v1771, -inf
    %v2191 = vrot.slane %v2190, 4
    %v2192 = vmax.f32 %v2190, %v2191
    %v2193 = vrot.slane %v2192, 2
    %v2194 = vmax.f32 %v2192, %v2193
    %v2195 = vrot.slane %v2194, 1
    %v2196 = vmax.f32 %v2194, %v2195
    %v2197 = vsel %vm1972, %v1779, -inf
    %v2198 = vrot.slane %v2197, 4
    %v2199 = vmax.f32 %v2197, %v2198
    %v2200 = vrot.slane %v2199, 2
    %v2201 = vmax.f32 %v2199, %v2200
    %v2202 = vrot.slane %v2201, 1
    %v2203 = vmax.f32 %v2201, %v2202
    %v2204 = vsel %vm1972, %v1787, -inf
    %v2205 = vrot.slane %v2204, 4
    %v2206 = vmax.f32 %v2204, %v2205
    %v2207 = vrot.slane %v2206, 2
    %v2208 = vmax.f32 %v2206, %v2207
    %v2209 = vrot.slane %v2208, 1
    %v2210 = vmax.f32 %v2208, %v2209
    %v2211 = vsel %vm1972, %v1786, -inf
    %v2212 = vrot.slane %v2211, 4
    %v2213 = vmax.f32 %v2211, %v2212
    %v2214 = vrot.slane %v2213, 2
    %v2215 = vmax.f32 %v2213, %v2214
    %v2216 = vrot.slane %v2215, 1
    %v2217 = vmax.f32 %v2215, %v2216
    %v2218 = vsel %vm1972, %v1788, -inf
    %v2219 = vrot.slane %v2218, 4
    %v2220 = vmax.f32 %v2218, %v2219
    %v2221 = vrot.slane %v2220, 2
    %v2222 = vmax.f32 %v2220, %v2221
    %v2223 = vrot.slane %v2222, 1
    %v2224 = vmax.f32 %v2222, %v2223
    %v2225 = vsel %vm1972, %v1796, -inf
    %v2226 = vrot.slane %v2225, 4
    %v2227 = vmax.f32 %v2225, %v2226
    %v2228 = vrot.slane %v2227, 2
    %v2229 = vmax.f32 %v2227, %v2228
    %v2230 = vrot.slane %v2229, 1
    %v2231 = vmax.f32 %v2229, %v2230
    %v2232 = vsel %vm1972, %v1804, -inf
    %v2233 = vrot.slane %v2232, 4
    %v2234 = vmax.f32 %v2232, %v2233
    %v2235 = vrot.slane %v2234, 2
    %v2236 = vmax.f32 %v2234, %v2235
    %v2237 = vrot.slane %v2236, 1
    %v2238 = vmax.f32 %v2236, %v2237
    %v2239 = vsel %vm1972, %v1803, -inf
    %v2240 = vrot.slane %v2239, 4
    %v2241 = vmax.f32 %v2239, %v2240
    %v2242 = vrot.slane %v2241, 2
    %v2243 = vmax.f32 %v2241, %v2242
    %v2244 = vrot.slane %v2243, 1
    %v2245 = vmax.f32 %v2243, %v2244
    %v2246 = vsel %vm1972, %v1805, -inf
    %v2247 = vrot.slane %v2246, 4
    %v2248 = vmax.f32 %v2246, %v2247
    %v2249 = vrot.slane %v2248, 2
    %v2250 = vmax.f32 %v2248, %v2249
    %v2251 = vrot.slane %v2250, 1
    %v2252 = vmax.f32 %v2250, %v2251
    %v2253 = vsel %vm1972, %v1813, -inf
    %v2254 = vrot.slane %v2253, 4
    %v2255 = vmax.f32 %v2253, %v2254
    %v2256 = vrot.slane %v2255, 2
    %v2257 = vmax.f32 %v2255, %v2256
    %v2258 = vrot.slane %v2257, 1
    %v2259 = vmax.f32 %v2257, %v2258
    %v2260 = vsel %vm1972, %v1821, -inf
    %v2261 = vrot.slane %v2260, 4
    %v2262 = vmax.f32 %v2260, %v2261
    %v2263 = vrot.slane %v2262, 2
    %v2264 = vmax.f32 %v2262, %v2263
    %v2265 = vrot.slane %v2264, 1
    %v2266 = vmax.f32 %v2264, %v2265
    %v2267 = vsel %vm1972, %v1820, -inf
    %v2268 = vrot.slane %v2267, 4
    %v2269 = vmax.f32 %v2267, %v2268
    %v2270 = vrot.slane %v2269, 2
    %v2271 = vmax.f32 %v2269, %v2270
    %v2272 = vrot.slane %v2271, 1
    %v2273 = vmax.f32 %v2271, %v2272
    %v2274 = vsel %vm1972, %v1822, -inf
    %v2275 = vrot.slane %v2274, 4
    %v2276 = vmax.f32 %v2274, %v2275
    %v2277 = vrot.slane %v2276, 2
    %v2278 = vmax.f32 %v2276, %v2277
    %v2279 = vrot.slane %v2278, 1
    %v2280 = vmax.f32 %v2278, %v2279
    %v2281 = vsel %vm1972, %v1830, -inf
    %v2282 = vrot.slane %v2281, 4
    %v2283 = vmax.f32 %v2281, %v2282
    %v2284 = vrot.slane %v2283, 2
    %v2285 = vmax.f32 %v2283, %v2284
    %v2286 = vrot.slane %v2285, 1
    %v2287 = vmax.f32 %v2285, %v2286
    %v2288 = vsel %vm1972, %v1838, -inf
    %v2289 = vrot.slane %v2288, 4
    %v2290 = vmax.f32 %v2288, %v2289
    %v2291 = vrot.slane %v2290, 2
    %v2292 = vmax.f32 %v2290, %v2291
    %v2293 = vrot.slane %v2292, 1
    %v2294 = vmax.f32 %v2292, %v2293
    %v2295 = vsel %vm1972, %v1837, -inf
    %v2296 = vrot.slane %v2295, 4
    %v2297 = vmax.f32 %v2295, %v2296
    %v2298 = vrot.slane %v2297, 2
    %v2299 = vmax.f32 %v2297, %v2298
    %v2300 = vrot.slane %v2299, 1
    %v2301 = vmax.f32 %v2299, %v2300
    %v2302 = vsel %vm1972, %v1839, -inf
    %v2303 = vrot.slane %v2302, 4
    %v2304 = vmax.f32 %v2302, %v2303
    %v2305 = vrot.slane %v2304, 2
    %v2306 = vmax.f32 %v2304, %v2305
    %v2307 = vrot.slane %v2306, 1
    %v2308 = vmax.f32 %v2306, %v2307
    %v2309 = vsel %vm1972, %v1847, -inf
    %v2310 = vrot.slane %v2309, 4
    %v2311 = vmax.f32 %v2309, %v2310
    %v2312 = vrot.slane %v2311, 2
    %v2313 = vmax.f32 %v2311, %v2312
    %v2314 = vrot.slane %v2313, 1
    %v2315 = vmax.f32 %v2313, %v2314
    %v2316 = vsel %vm1972, %v1855, -inf
    %v2317 = vrot.slane %v2316, 4
    %v2318 = vmax.f32 %v2316, %v2317
    %v2319 = vrot.slane %v2318, 2
    %v2320 = vmax.f32 %v2318, %v2319
    %v2321 = vrot.slane %v2320, 1
    %v2322 = vmax.f32 %v2320, %v2321
    %v2323 = vsel %vm1972, %v1854, -inf
    %v2324 = vrot.slane %v2323, 4
    %v2325 = vmax.f32 %v2323, %v2324
    %v2326 = vrot.slane %v2325, 2
    %v2327 = vmax.f32 %v2325, %v2326
    %v2328 = vrot.slane %v2327, 1
    %v2329 = vmax.f32 %v2327, %v2328
    %v2330 = vsel %vm1972, %v1856, -inf
    %v2331 = vrot.slane %v2330, 4
    %v2332 = vmax.f32 %v2330, %v2331
    %v2333 = vrot.slane %v2332, 2
    %v2334 = vmax.f32 %v2332, %v2333
    %v2335 = vrot.slane %v2334, 1
    %v2336 = vmax.f32 %v2334, %v2335
    %v2337 = vsel %vm1972, %v1864, -inf
    %v2338 = vrot.slane %v2337, 4
    %v2339 = vmax.f32 %v2337, %v2338
    %v2340 = vrot.slane %v2339, 2
    %v2341 = vmax.f32 %v2339, %v2340
    %v2342 = vrot.slane %v2341, 1
    %v2343 = vmax.f32 %v2341, %v2342
    %v2344 = vsel %vm1972, %v1872, -inf
    %v2345 = vrot.slane %v2344, 4
    %v2346 = vmax.f32 %v2344, %v2345
    %v2347 = vrot.slane %v2346, 2
    %v2348 = vmax.f32 %v2346, %v2347
    %v2349 = vrot.slane %v2348, 1
    %v2350 = vmax.f32 %v2348, %v2349
    %v2351 = vsel %vm1972, %v1871, -inf
    %v2352 = vrot.slane %v2351, 4
    %v2353 = vmax.f32 %v2351, %v2352
    %v2354 = vrot.slane %v2353, 2
    %v2355 = vmax.f32 %v2353, %v2354
    %v2356 = vrot.slane %v2355, 1
    %v2357 = vmax.f32 %v2355, %v2356
    %v2358 = vsel %vm1972, %v1873, -inf
    %v2359 = vrot.slane %v2358, 4
    %v2360 = vmax.f32 %v2358, %v2359
    %v2361 = vrot.slane %v2360, 2
    %v2362 = vmax.f32 %v2360, %v2361
    %v2363 = vrot.slane %v2362, 1
    %v2364 = vmax.f32 %v2362, %v2363
    %v2365 = vsel %vm1972, %v1881, -inf
    %v2366 = vrot.slane %v2365, 4
    %v2367 = vmax.f32 %v2365, %v2366
    %v2368 = vrot.slane %v2367, 2
    %v2369 = vmax.f32 %v2367, %v2368
    %v2370 = vrot.slane %v2369, 1
    %v2371 = vmax.f32 %v2369, %v2370
    %v2372 = vsel %vm1972, %v1889, -inf
    %v2373 = vrot.slane %v2372, 4
    %v2374 = vmax.f32 %v2372, %v2373
    %v2375 = vrot.slane %v2374, 2
    %v2376 = vmax.f32 %v2374, %v2375
    %v2377 = vrot.slane %v2376, 1
    %v2378 = vmax.f32 %v2376, %v2377
    %v2379 = vsel %vm1972, %v1888, -inf
    %v2380 = vrot.slane %v2379, 4
    %v2381 = vmax.f32 %v2379, %v2380
    %v2382 = vrot.slane %v2381, 2
    %v2383 = vmax.f32 %v2381, %v2382
    %v2384 = vrot.slane %v2383, 1
    %v2385 = vmax.f32 %v2383, %v2384
    %v2386 = vsel %vm1972, %v1890, -inf
    %v2387 = vrot.slane %v2386, 4
    %v2388 = vmax.f32 %v2386, %v2387
    %v2389 = vrot.slane %v2388, 2
    %v2390 = vmax.f32 %v2388, %v2389
    %v2391 = vrot.slane %v2390, 1
    %v2392 = vmax.f32 %v2390, %v2391
    %v2393 = vsel %vm1972, %v1898, -inf
    %v2394 = vrot.slane %v2393, 4
    %v2395 = vmax.f32 %v2393, %v2394
    %v2396 = vrot.slane %v2395, 2
    %v2397 = vmax.f32 %v2395, %v2396
    %v2398 = vrot.slane %v2397, 1
    %v2399 = vmax.f32 %v2397, %v2398
    %v2400 = vsel %vm1972, %v1906, -inf
    %v2401 = vrot.slane %v2400, 4
    %v2402 = vmax.f32 %v2400, %v2401
    %v2403 = vrot.slane %v2402, 2
    %v2404 = vmax.f32 %v2402, %v2403
    %v2405 = vrot.slane %v2404, 1
    %v2406 = vmax.f32 %v2404, %v2405
    %v2407 = vsel %vm1972, %v1905, -inf
    %v2408 = vrot.slane %v2407, 4
    %v2409 = vmax.f32 %v2407, %v2408
    %v2410 = vrot.slane %v2409, 2
    %v2411 = vmax.f32 %v2409, %v2410
    %v2412 = vrot.slane %v2411, 1
    %v2413 = vmax.f32 %v2411, %v2412
    %v2414 = vsel %vm1972, %v1907, -inf
    %v2415 = vrot.slane %v2414, 4
    %v2416 = vmax.f32 %v2414, %v2415
    %v2417 = vrot.slane %v2416, 2
    %v2418 = vmax.f32 %v2416, %v2417
    %v2419 = vrot.slane %v2418, 1
    %v2420 = vmax.f32 %v2418, %v2419
    %vm2485 = vcmask 1041409
    %v2486 = vsel %vm2485, %v1986, %v1979
    %vm2487 = vcmask 1042434
    %v2488 = vsel %vm2487, %v1993, %v2486
    %vm2489 = vcmask 1043459
    %v2490 = vsel %vm2489, %v2000, %v2488
    %vm2491 = vcmask 1044484
    %v2492 = vsel %vm2491, %v2007, %v2490
    %vm2493 = vcmask 1045509
    %v2494 = vsel %vm2493, %v2014, %v2492
    %vm2495 = vcmask 1046534
    %v2496 = vsel %vm2495, %v2021, %v2494
    %vm2497 = vcmask 1047559
    %v2498 = vsel %vm2497, %v2028, %v2496
    %v2499 = vsel %vm2485, %v2042, %v2035
    %v2500 = vsel %vm2487, %v2049, %v2499
    %v2501 = vsel %vm2489, %v2056, %v2500
    %v2502 = vsel %vm2491, %v2063, %v2501
    %v2503 = vsel %vm2493, %v2070, %v2502
    %v2504 = vsel %vm2495, %v2077, %v2503
    %v2505 = vsel %vm2497, %v2084, %v2504
    %v2506 = vsel %vm2485, %v2098, %v2091
    %v2507 = vsel %vm2487, %v2105, %v2506
    %v2508 = vsel %vm2489, %v2112, %v2507
    %v2509 = vsel %vm2491, %v2119, %v2508
    %v2510 = vsel %vm2493, %v2126, %v2509
    %v2511 = vsel %vm2495, %v2133, %v2510
    %v2512 = vsel %vm2497, %v2140, %v2511
    %v2513 = vsel %vm2485, %v2154, %v2147
    %v2514 = vsel %vm2487, %v2161, %v2513
    %v2515 = vsel %vm2489, %v2168, %v2514
    %v2516 = vsel %vm2491, %v2175, %v2515
    %v2517 = vsel %vm2493, %v2182, %v2516
    %v2518 = vsel %vm2495, %v2189, %v2517
    %v2519 = vsel %vm2497, %v2196, %v2518
    %v2520 = vsel %vm2485, %v2210, %v2203
    %v2521 = vsel %vm2487, %v2217, %v2520
    %v2522 = vsel %vm2489, %v2224, %v2521
    %v2523 = vsel %vm2491, %v2231, %v2522
    %v2524 = vsel %vm2493, %v2238, %v2523
    %v2525 = vsel %vm2495, %v2245, %v2524
    %v2526 = vsel %vm2497, %v2252, %v2525
    %v2527 = vsel %vm2485, %v2266, %v2259
    %v2528 = vsel %vm2487, %v2273, %v2527
    %v2529 = vsel %vm2489, %v2280, %v2528
    %v2530 = vsel %vm2491, %v2287, %v2529
    %v2531 = vsel %vm2493, %v2294, %v2530
    %v2532 = vsel %vm2495, %v2301, %v2531
    %v2533 = vsel %vm2497, %v2308, %v2532
    %v2534 = vsel %vm2485, %v2322, %v2315
    %v2535 = vsel %vm2487, %v2329, %v2534
    %v2536 = vsel %vm2489, %v2336, %v2535
    %v2537 = vsel %vm2491, %v2343, %v2536
    %v2538 = vsel %vm2493, %v2350, %v2537
    %v2539 = vsel %vm2495, %v2357, %v2538
    %v2540 = vsel %vm2497, %v2364, %v2539
    %v2541 = vsel %vm2485, %v2378, %v2371
    %v2542 = vsel %vm2487, %v2385, %v2541
    %v2543 = vsel %vm2489, %v2392, %v2542
    %v2544 = vsel %vm2491, %v2399, %v2543
    %v2545 = vsel %vm2493, %v2406, %v2544
    %v2546 = vsel %vm2495, %v2413, %v2545
    %v2547 = vsel %vm2497, %v2420, %v2546
    %v2548 = vrot.slane 0.0, 7
    %v2549 = vrot.slane %v2498, 7
    %v2550 = vrot.slane %v2505, 7
    %v2551 = vrot.slane %v2512, 7
    %v2552 = vrot.slane %v2519, 7
    %v2553 = vrot.slane %v2526, 7
    %v2554 = vrot.slane %v2533, 7
    %v2555 = vrot.slane %v2540, 7
    %v2556 = vrot.slane %v2547, 7
    %vm2566 = vcmask 1040384
    %v2567 = vsel %vm2566, 0.0, %v2548
    %v2568 = vsel %vm2566, 0.0, %v2549
    %v2569 = vsel %vm2566, 0.0, %v2550
    %v2570 = vsel %vm2566, 0.0, %v2551
    %v2571 = vsel %vm2566, 0.0, %v2552
    %v2572 = vsel %vm2566, 0.0, %v2553
    %v2573 = vsel %vm2566, 0.0, %v2554
    %v2574 = vsel %vm2566, 0.0, %v2555
    %v2575 = vsel %vm2566, 0.0, %v2556
    %v2576 = vsel %vm2566, %v2548, 0.0
    %v2577 = vsel %vm2566, %v2549, 0.0
    %v2578 = vsel %vm2566, %v2550, 0.0
    %v2579 = vsel %vm2566, %v2551, 0.0
    %v2580 = vsel %vm2566, %v2552, 0.0
    %v2581 = vsel %vm2566, %v2553, 0.0
    %v2582 = vsel %vm2566, %v2554, 0.0
    %v2583 = vsel %vm2566, %v2555, 0.0
    %v2584 = vsel %vm2566, %v2556, 0.0
    %v2599 = vrot.slane %v2567, 1
    %v2600 = vrot.slane %v2576, 1
    %v2601 = vsel %vm356, %v2599, %v2600
    %v2602 = vrot.slane %v2568, 1
    %v2603 = vrot.slane %v2577, 1
    %v2604 = vsel %vm356, %v2602, %v2603
    %v2605 = vrot.slane %v2569, 1
    %v2606 = vrot.slane %v2578, 1
    %v2607 = vsel %vm356, %v2605, %v2606
    %v2608 = vrot.slane %v2570, 1
    %v2609 = vrot.slane %v2579, 1
    %v2610 = vsel %vm356, %v2608, %v2609
    %v2611 = vrot.slane %v2572, 1
    %v2612 = vrot.slane %v2581, 1
    %v2613 = vsel %vm356, %v2611, %v2612
    %v2614 = vrot.slane %v2573, 1
    %v2615 = vrot.slane %v2582, 1
    %v2616 = vsel %vm356, %v2614, %v2615
    %v2617 = vrot.slane %v2574, 1
    %v2618 = vrot.slane %v2583, 1
    %v2619 = vsel %vm356, %v2617, %v2618
    %2620 = vrot.lane.b32.xlu0 %v2601, 16
    %v2621 = vpop.permute.xlu0 %2620
    %2622 = vrot.lane.b32.xlu0 %v2604, 16
    %v2623 = vpop.permute.xlu0 %2622
    %2624 = vrot.lane.b32.xlu0 %v2607, 16
    %v2625 = vpop.permute.xlu0 %2624
    %2626 = vrot.lane.b32.xlu0 %v2610, 16
    %v2627 = vpop.permute.xlu0 %2626
    %2628 = vrot.lane.b32.xlu0 %v2613, 16
    %v2629 = vpop.permute.xlu0 %2628
    %2630 = vrot.lane.b32.xlu0 %v2616, 16
    %v2631 = vpop.permute.xlu0 %2630
    %2632 = vrot.lane.b32.xlu0 %v2619, 16
    %v2633 = vpop.permute.xlu0 %2632
    %v2641 = vrot.slane %v2567, 2
    %v2642 = vrot.slane %v2576, 2
    %v2643 = vsel %vm434, %v2641, %v2642
    %v2644 = vrot.slane %v2568, 2
    %v2645 = vrot.slane %v2577, 2
    %v2646 = vsel %vm434, %v2644, %v2645
    %v2647 = vrot.slane %v2569, 2
    %v2648 = vrot.slane %v2578, 2
    %v2649 = vsel %vm434, %v2647, %v2648
    %v2650 = vrot.slane %v2570, 2
    %v2651 = vrot.slane %v2579, 2
    %v2652 = vsel %vm434, %v2650, %v2651
    %v2653 = vrot.slane %v2572, 2
    %v2654 = vrot.slane %v2581, 2
    %v2655 = vsel %vm434, %v2653, %v2654
    %v2656 = vrot.slane %v2573, 2
    %v2657 = vrot.slane %v2582, 2
    %v2658 = vsel %vm434, %v2656, %v2657
    %v2659 = vrot.slane %v2574, 2
    %v2660 = vrot.slane %v2583, 2
    %v2661 = vsel %vm434, %v2659, %v2660
    %2662 = vrot.lane.b32.xlu0 %v2643, 32
    %v2663 = vpop.permute.xlu0 %2662
    %2664 = vrot.lane.b32.xlu0 %v2646, 32
    %v2665 = vpop.permute.xlu0 %2664
    %2666 = vrot.lane.b32.xlu0 %v2649, 32
    %v2667 = vpop.permute.xlu0 %2666
    %2668 = vrot.lane.b32.xlu0 %v2652, 32
    %v2669 = vpop.permute.xlu0 %2668
    %2670 = vrot.lane.b32.xlu0 %v2655, 32
    %v2671 = vpop.permute.xlu0 %2670
    %2672 = vrot.lane.b32.xlu0 %v2658, 32
    %v2673 = vpop.permute.xlu0 %2672
    %2674 = vrot.lane.b32.xlu0 %v2661, 32
    %v2675 = vpop.permute.xlu0 %2674
    %2685 = vrot.lane.b32.xlu0 %v2568, 48
    %v2686 = vpop.permute.xlu0 %2685
    %2687 = vrot.lane.b32.xlu0 %v2569, 48
    %v2688 = vpop.permute.xlu0 %2687
    %2689 = vrot.lane.b32.xlu0 %v2570, 48
    %v2690 = vpop.permute.xlu0 %2689
    %2691 = vrot.lane.b32.xlu0 %v2571, 48
    %v2692 = vpop.permute.xlu0 %2691
    %2693 = vrot.lane.b32.xlu0 %v2572, 48
    %v2694 = vpop.permute.xlu0 %2693
    %2695 = vrot.lane.b32.xlu0 %v2573, 48
    %v2696 = vpop.permute.xlu0 %2695
    %2697 = vrot.lane.b32.xlu0 %v2574, 48
    %v2698 = vpop.permute.xlu0 %2697
    %2699 = vrot.lane.b32.xlu0 %v2575, 48
    %v2700 = vpop.permute.xlu0 %2699
    %v2711 = vrot.slane %v2571, 1
    %v2712 = vrot.slane %v2580, 1
    %v2713 = vsel %vm356, %v2711, %v2712
    %v2714 = vrot.slane %v2575, 1
    %v2715 = vrot.slane %v2584, 1
    %v2716 = vsel %vm356, %v2714, %v2715
    %2717 = vrot.lane.b32.xlu0 %v2604, 64
    %v2718 = vpop.permute.xlu0 %2717
    %2719 = vrot.lane.b32.xlu0 %v2607, 64
    %v2720 = vpop.permute.xlu0 %2719
    %2721 = vrot.lane.b32.xlu0 %v2610, 64
    %v2722 = vpop.permute.xlu0 %2721
    %2723 = vrot.lane.b32.xlu0 %v2713, 64
    %v2724 = vpop.permute.xlu0 %2723
    %2725 = vrot.lane.b32.xlu0 %v2613, 64
    %v2726 = vpop.permute.xlu0 %2725
    %2727 = vrot.lane.b32.xlu0 %v2616, 64
    %v2728 = vpop.permute.xlu0 %2727
    %2729 = vrot.lane.b32.xlu0 %v2619, 64
    %v2730 = vpop.permute.xlu0 %2729
    %2731 = vrot.lane.b32.xlu0 %v2716, 64
    %v2732 = vpop.permute.xlu0 %2731
    %v2741 = vrot.slane %v2571, 2
    %v2742 = vrot.slane %v2580, 2
    %v2743 = vsel %vm434, %v2741, %v2742
    %v2744 = vrot.slane %v2575, 2
    %v2745 = vrot.slane %v2584, 2
    %v2746 = vsel %vm434, %v2744, %v2745
    %2747 = vrot.lane.b32.xlu0 %v2646, 80
    %v2748 = vpop.permute.xlu0 %2747
    %2749 = vrot.lane.b32.xlu0 %v2649, 80
    %v2750 = vpop.permute.xlu0 %2749
    %2751 = vrot.lane.b32.xlu0 %v2652, 80
    %v2752 = vpop.permute.xlu0 %2751
    %2753 = vrot.lane.b32.xlu0 %v2743, 80
    %v2754 = vpop.permute.xlu0 %2753
    %2755 = vrot.lane.b32.xlu0 %v2655, 80
    %v2756 = vpop.permute.xlu0 %2755
    %2757 = vrot.lane.b32.xlu0 %v2658, 80
    %v2758 = vpop.permute.xlu0 %2757
    %2759 = vrot.lane.b32.xlu0 %v2661, 80
    %v2760 = vpop.permute.xlu0 %2759
    %2761 = vrot.lane.b32.xlu0 %v2746, 80
    %v2762 = vpop.permute.xlu0 %2761
    %2771 = vrot.lane.b32.xlu0 %v2569, 96
    %v2772 = vpop.permute.xlu0 %2771
    %2773 = vrot.lane.b32.xlu0 %v2570, 96
    %v2774 = vpop.permute.xlu0 %2773
    %2775 = vrot.lane.b32.xlu0 %v2571, 96
    %v2776 = vpop.permute.xlu0 %2775
    %2777 = vrot.lane.b32.xlu0 %v2567, 96
    %v2778 = vpop.permute.xlu0 %2777
    %2779 = vrot.lane.b32.xlu0 %v2573, 96
    %v2780 = vpop.permute.xlu0 %2779
    %2781 = vrot.lane.b32.xlu0 %v2574, 96
    %v2782 = vpop.permute.xlu0 %2781
    %2783 = vrot.lane.b32.xlu0 %v2575, 96
    %v2784 = vpop.permute.xlu0 %2783
    %2792 = vrot.lane.b32.xlu0 %v2607, 112
    %v2793 = vpop.permute.xlu0 %2792
    %2794 = vrot.lane.b32.xlu0 %v2610, 112
    %v2795 = vpop.permute.xlu0 %2794
    %2796 = vrot.lane.b32.xlu0 %v2713, 112
    %v2797 = vpop.permute.xlu0 %2796
    %2798 = vrot.lane.b32.xlu0 %v2601, 112
    %v2799 = vpop.permute.xlu0 %2798
    %2800 = vrot.lane.b32.xlu0 %v2616, 112
    %v2801 = vpop.permute.xlu0 %2800
    %2802 = vrot.lane.b32.xlu0 %v2619, 112
    %v2803 = vpop.permute.xlu0 %2802
    %2804 = vrot.lane.b32.xlu0 %v2716, 112
    %v2805 = vpop.permute.xlu0 %2804
    %v2813 = vsel %vm1207, %v2567, %v2621
    %v2814 = vsel %vm1207, %v2568, %v2623
    %v2815 = vsel %vm1207, %v2569, %v2625
    %v2816 = vsel %vm1207, %v2570, %v2627
    %v2817 = vsel %vm1207, %v2572, %v2629
    %v2818 = vsel %vm1207, %v2573, %v2631
    %v2819 = vsel %vm1207, %v2574, %v2633
    %v2820 = vsel %vm1273, %v2813, %v2663
    %v2821 = vsel %vm1273, %v2814, %v2665
    %v2822 = vsel %vm1273, %v2815, %v2667
    %v2823 = vsel %vm1273, %v2816, %v2669
    %v2824 = vsel %vm1273, %v2817, %v2671
    %v2825 = vsel %vm1273, %v2818, %v2673
    %v2826 = vsel %vm1273, %v2819, %v2675
    %v2827 = vsel %vm1341, %v2820, %v2686
    %v2828 = vsel %vm1341, %v2821, %v2688
    %v2829 = vsel %vm1341, %v2822, %v2690
    %v2830 = vsel %vm1341, %v2823, %v2692
    %v2831 = vsel %vm1341, %v2820, %v2694
    %v2832 = vsel %vm1341, %v2824, %v2696
    %v2833 = vsel %vm1341, %v2825, %v2698
    %v2834 = vsel %vm1341, %v2826, %v2700
    %vm2835 = vcmask 523264
    %v2836 = vsel %vm2835, %v2827, %v2718
    %v2837 = vsel %vm2835, %v2828, %v2720
    %v2838 = vsel %vm2835, %v2829, %v2722
    %v2839 = vsel %vm2835, %v2830, %v2724
    %v2840 = vsel %vm2835, %v2831, %v2726
    %v2841 = vsel %vm2835, %v2832, %v2728
    %v2842 = vsel %vm2835, %v2833, %v2730
    %v2843 = vsel %vm2835, %v2834, %v2732
    %vm2844 = vcmask 654336
    %v2845 = vsel %vm2844, %v2836, %v2748
    %v2846 = vsel %vm2844, %v2837, %v2750
    %v2847 = vsel %vm2844, %v2838, %v2752
    %v2848 = vsel %vm2844, %v2839, %v2754
    %v2849 = vsel %vm2844, %v2840, %v2756
    %v2850 = vsel %vm2844, %v2841, %v2758
    %v2851 = vsel %vm2844, %v2842, %v2760
    %v2852 = vsel %vm2844, %v2843, %v2762
    %vm2853 = vcmask 785408
    %v2854 = vsel %vm2853, %v2845, %v2772
    %v2855 = vsel %vm2853, %v2846, %v2774
    %v2856 = vsel %vm2853, %v2847, %v2776
    %v2857 = vsel %vm2853, %v2848, %v2778
    %v2858 = vsel %vm2853, %v2849, %v2780
    %v2859 = vsel %vm2853, %v2850, %v2782
    %v2860 = vsel %vm2853, %v2851, %v2784
    %v2861 = vsel %vm2853, %v2852, %v2778
    %vm2862 = vcmask 916480
    %v2863 = vsel %vm2862, %v2854, %v2793
    %v2864 = vsel %vm2862, %v2855, %v2795
    %v2865 = vsel %vm2862, %v2856, %v2797
    %v2866 = vsel %vm2862, %v2857, %v2799
    %v2867 = vsel %vm2862, %v2858, %v2801
    %v2868 = vsel %vm2862, %v2859, %v2803
    %v2869 = vsel %vm2862, %v2860, %v2805
    %v2870 = vsel %vm2862, %v2861, %v2799
    %v2871 = vld [vmem:[#allocation8] sm:$0xff]
    %v2872 = vld [vmem:[#allocation8 + $0x8] sm:$0xff]
    %v2873 = vld [vmem:[#allocation8 + $0x10] sm:$0xff]
    %v2874 = vld [vmem:[#allocation8 + $0x18] sm:$0xff]
    %v2875 = vld [vmem:[#allocation8 + $0x20] sm:$0xff]
    %v2876 = vld [vmem:[#allocation8 + $0x28] sm:$0xff]
    %v2877 = vld [vmem:[#allocation8 + $0x30] sm:$0xff]
    %v2878 = vld [vmem:[#allocation8 + $0x38] sm:$0xff]
    %v2879 = vld [vmem:[#allocation8 + $0x40] sm:$0xff]
    %v2880 = vld [vmem:[#allocation8 + $0x48] sm:$0xff]
    %v2881 = vld [vmem:[#allocation8 + $0x50] sm:$0xff]
    %v2882 = vld [vmem:[#allocation8 + $0x58] sm:$0xff]
    %v2883 = vld [vmem:[#allocation8 + $0x60] sm:$0xff]
    %v2884 = vld [vmem:[#allocation8 + $0x68] sm:$0xff]
    %v2885 = vld [vmem:[#allocation8 + $0x70] sm:$0xff]
    %v2886 = vld [vmem:[#allocation8 + $0x78] sm:$0xff]
    %v2887 = vld [vmem:[#allocation8 + $0x80] sm:$0xff]
    %v2888 = vld [vmem:[#allocation8 + $0x88] sm:$0xff]
    %v2889 = vld [vmem:[#allocation10] sm:$0x1]
    %v2891 = vlaneseq
    %v2892 = vshrl.u32 %v2891, 7
    %v2893 = vsub.s32 0, %v2892
    %v2894 = vrot.slane %v2889, %v2893
    %v2896 = vsel %vm1207, %v2649, 0
    %v2898 = vsel %vm1207, %v2652, 0
    %v2900 = vsel %vm1207, %v2743, 0
    %v2902 = vsel %vm1207, %v2643, 0
    %v2904 = vsel %vm1207, %v2658, 0
    %v2906 = vsel %vm1207, %v2661, 0
    %v2908 = vsel %vm1207, %v2746, 0
    %2910 = vmatprep.subr.mxu0 0.0
    %2911 = vmatpush1.msra.mxu0 %v2871
    %2912 = vmatprep.subr.mxu0 0.0
    %2913 = vmatpush1.msra.mxu0 %v2872
    %2914 = vmatprep.subr.mxu0 0.0
    %2915 = vmatpush1.msra.mxu0 %v2873
    %2916 = vmatprep.subr.mxu0 0.0
    %2917 = vmatpush1.msra.mxu0 %v2874
    %2918 = vmatprep.subr.mxu0 0.0
    %2919 = vmatpush1.msra.mxu0 %v2875
    %2920 = vmatprep.subr.mxu0 0.0
    %2921 = vmatpush1.msra.mxu0 %v2876
    %2922 = vmatprep.subr.mxu0 0.0
    %2923 = vmatpush1.msra.mxu0 %v2877
    %2924 = vmatprep.subr.mxu0 0.0
    %2925 = vmatpush1.msra.mxu0 %v2878
    %2926 = vmatprep.subr.mxu0 0.0
    %2927 = vmatpush1.msra.mxu0 %v2879
    %2928 = vmatprep.subr.mxu0 0.0
    %2929 = vmatpush1.msra.mxu0 %v2880
    %2930 = vmatprep.subr.mxu0 0.0
    %2931 = vmatpush1.msra.mxu0 %v2881
    %2932 = vmatprep.subr.mxu0 0.0
    %2933 = vmatpush1.msra.mxu0 %v2882
    %2934 = vmatprep.subr.mxu0 0.0
    %2935 = vmatpush1.msra.mxu0 %v2883
    %2936 = vmatprep.subr.mxu0 0.0
    %2937 = vmatpush1.msra.mxu0 %v2884
    %2938 = vmatprep.subr.mxu0 0.0
    %2939 = vmatpush1.msra.mxu0 %v2885
    %2940 = vmatprep.subr.mxu0 0.0
    %2941 = vmatpush1.msra.mxu0 %v2886
    %2942 = vmatprep.subr.mxu0 0.0
    %2943 = vmatpush1.msra.mxu0 %v2887
    %2944 = vmatprep.subr.mxu0 0.0
    %2945 = vmatpush1.msra.mxu0 %v2888
    %2946 = vmatprep.subr.mxu0 0.0
    %2947 = vmatpush1.msra.mxu0 0.0
    %2948 = vmatprep.subr.mxu0 0.0
    %2949 = vmatpush1.msra.mxu0 0.0
    %2950 = vmatprep.subr.mxu0 0.0
    %2951 = vmatpush1.msra.mxu0 0.0
    %2952 = vmatprep.subr.mxu0 0.0
    %2953 = vmatpush1.msra.mxu0 0.0
    %2954 = vmatprep.subr.mxu0 0.0
    %2955 = vmatpush1.msra.mxu0 0.0
    %2956 = vmatprep.subr.mxu0 0.0
    %2957 = vmatpush1.msra.mxu0 0.0
    %2958 = vmatprep.subr.mxu0 0.0
    %2959 = vmatpush1.msra.mxu0 0.0
    %2960 = vmatprep.subr.mxu0 0.0
    %2961 = vmatpush1.msra.mxu0 0.0
    %2962 = vmatprep.subr.mxu0 0.0
    %2963 = vmatpush1.msra.mxu0 0.0
    %2964 = vmatprep.subr.mxu0 0.0
    %2965 = vmatpush1.msra.mxu0 0.0
    %2966 = vmatprep.subr.mxu0 0.0
    %2967 = vmatpush1.msra.mxu0 0.0
    %2968 = vmatprep.subr.mxu0 0.0
    %2969 = vmatpush1.msra.mxu0 0.0
    %2970 = vmatprep.subr.mxu0 0.0
    %2971 = vmatpush1.msra.mxu0 0.0
    %2972 = vmatprep.subr.mxu0 0.0
    %2973 = vmatpush1.msra.mxu0 0.0
    %2974 = vmatprep.mubr.f32.mxu0 %v2896
    %2975 = vmatmul.mubr.f32.gmra.mrb[0].mxu0 %v2863
    %v2976 = vpop.f32.mrb[0].mxu0
    %v2977 = vadd.f32 %v2894, %v2976
    %v2978 = vpop.f32.mrb[0].mxu0
    %2979 = vmatprep.mubr.f32.mxu0 %v2898
    %2980 = vmatmul.mubr.f32.gmra.mrb[0].mxu0 %v2864
    %v2981 = vpop.f32.mrb[0].mxu0
    %v2982 = vadd.f32 %v2894, %v2981
    %v2983 = vpop.f32.mrb[0].mxu0
    %2984 = vmatprep.mubr.f32.mxu0 %v2900
    %2985 = vmatmul.mubr.f32.gmra.mrb[0].mxu0 %v2865
    %v2986 = vpop.f32.mrb[0].mxu0
    %v2987 = vadd.f32 %v2894, %v2986
    %v2988 = vpop.f32.mrb[0].mxu0
    %2989 = vmatprep.mubr.f32.mxu0 %v2902
    %2990 = vmatmul.mubr.f32.gmra.mrb[0].mxu0 %v2866
    %v2991 = vpop.f32.mrb[0].mxu0
    %v2992 = vadd.f32 %v2894, %v2991
    %v2993 = vpop.f32.mrb[0].mxu0
    %2994 = vmatprep.mubr.f32.mxu0 %v2904
    %2995 = vmatmul.mubr.f32.gmra.mrb[0].mxu0 %v2867
    %v2996 = vpop.f32.mrb[0].mxu0
    %v2997 = vadd.f32 %v2894, %v2996
    %v2998 = vpop.f32.mrb[0].mxu0
    %2999 = vmatprep.mubr.f32.mxu0 %v2906
    %3000 = vmatmul.mubr.f32.gmra.mrb[0].mxu0 %v2868
    %v3001 = vpop.f32.mrb[0].mxu0
    %v3002 = vadd.f32 %v2894, %v3001
    %v3003 = vpop.f32.mrb[0].mxu0
    %3004 = vmatprep.mubr.f32.mxu0 %v2908
    %3005 = vmatmul.mubr.f32.gmra.mrb[0].mxu0 %v2869
    %v3006 = vpop.f32.mrb[0].mxu0
    %v3007 = vadd.f32 %v2894, %v3006
    %v3008 = vpop.f32.mrb[0].mxu0
    %3009 = vmatprep.mubr.f32.mxu0 %v2902
    %3010 = vmatmul.mubr.f32.gmra.mrb[0].mxu0 %v2870
    %v3011 = vpop.f32.mrb[0].mxu0
    %v3012 = vadd.f32 %v2894, %v3011
    %v3013 = vpop.f32.mrb[0].mxu0
    %3014 = vdwg.mxu0
    %v3015 = vmax.f32 %v2977, 0.0
    %v3016 = vmax.f32 %v2982, 0.0
    %v3017 = vmax.f32 %v2987, 0.0
    %v3018 = vmax.f32 %v2992, 0.0
    %v3019 = vmax.f32 %v2997, 0.0
    %v3020 = vmax.f32 %v3002, 0.0
    %v3021 = vmax.f32 %v3007, 0.0
    %v3022 = vmax.f32 %v3012, 0.0
    %v3031 = vcombine.high %v3015, %v3015
    %v3033 = vunpack.c.l.s4 1983009808
    %v3034 = vunpack.c.0.s8 %v3033
    %v3035 = vlaneseq
    %v3036 = vshrl.u32 %v3035, 7
    %v3037 = vsub.s32 %v3034, %v3036
    %v3038 = vrot.slane %v3015, %v3037
    %v3040 = vunpack.c.l.s4 1983009808
    %v3041 = vunpack.c.0.s8 %v3040
    %v3042 = vlaneseq
    %v3043 = vshrl.u32 %v3042, 7
    %v3044 = vsub.s32 %v3041, %v3043
    %v3045 = vrot.slane %v3031, %v3044
    %v3046 = vcombine.high %v3038, %v3038
    %v3047 = vcombine.high %v3045, %v3045
    %v3048 = vcombine.high %v3016, %v3016
    %v3050 = vunpack.c.l.s4 1983009808
    %v3051 = vunpack.c.0.s8 %v3050
    %v3052 = vlaneseq
    %v3053 = vshrl.u32 %v3052, 7
    %v3054 = vsub.s32 %v3051, %v3053
    %v3055 = vrot.slane %v3016, %v3054
    %v3057 = vunpack.c.l.s4 1983009808
    %v3058 = vunpack.c.0.s8 %v3057
    %v3059 = vlaneseq
    %v3060 = vshrl.u32 %v3059, 7
    %v3061 = vsub.s32 %v3058, %v3060
    %v3062 = vrot.slane %v3048, %v3061
    %v3063 = vcombine.high %v3055, %v3055
    %v3064 = vcombine.high %v3062, %v3062
    %v3065 = vcombine.high %v3017, %v3017
    %v3067 = vunpack.c.l.s4 1983009808
    %v3068 = vunpack.c.0.s8 %v3067
    %v3069 = vlaneseq
    %v3070 = vshrl.u32 %v3069, 7
    %v3071 = vsub.s32 %v3068, %v3070
    %v3072 = vrot.slane %v3017, %v3071
    %v3074 = vunpack.c.l.s4 1983009808
    %v3075 = vunpack.c.0.s8 %v3074
    %v3076 = vlaneseq
    %v3077 = vshrl.u32 %v3076, 7
    %v3078 = vsub.s32 %v3075, %v3077
    %v3079 = vrot.slane %v3065, %v3078
    %v3080 = vcombine.high %v3072, %v3072
    %v3081 = vcombine.high %v3079, %v3079
    %v3082 = vcombine.high %v3018, %v3018
    %v3084 = vunpack.c.l.s4 1983009808
    %v3085 = vunpack.c.0.s8 %v3084
    %v3086 = vlaneseq
    %v3087 = vshrl.u32 %v3086, 7
    %v3088 = vsub.s32 %v3085, %v3087
    %v3089 = vrot.slane %v3018, %v3088
    %v3091 = vunpack.c.l.s4 1983009808
    %v3092 = vunpack.c.0.s8 %v3091
    %v3093 = vlaneseq
    %v3094 = vshrl.u32 %v3093, 7
    %v3095 = vsub.s32 %v3092, %v3094
    %v3096 = vrot.slane %v3082, %v3095
    %v3097 = vcombine.high %v3089, %v3089
    %v3098 = vcombine.high %v3096, %v3096
    %v3099 = vcombine.high %v3019, %v3019
    %v3101 = vunpack.c.l.s4 1983009808
    %v3102 = vunpack.c.0.s8 %v3101
    %v3103 = vlaneseq
    %v3104 = vshrl.u32 %v3103, 7
    %v3105 = vsub.s32 %v3102, %v3104
    %v3106 = vrot.slane %v3019, %v3105
    %v3108 = vunpack.c.l.s4 1983009808
    %v3109 = vunpack.c.0.s8 %v3108
    %v3110 = vlaneseq
    %v3111 = vshrl.u32 %v3110, 7
    %v3112 = vsub.s32 %v3109, %v3111
    %v3113 = vrot.slane %v3099, %v3112
    %v3114 = vcombine.high %v3106, %v3106
    %v3115 = vcombine.high %v3113, %v3113
    %v3116 = vcombine.high %v3020, %v3020
    %v3118 = vunpack.c.l.s4 1983009808
    %v3119 = vunpack.c.0.s8 %v3118
    %v3120 = vlaneseq
    %v3121 = vshrl.u32 %v3120, 7
    %v3122 = vsub.s32 %v3119, %v3121
    %v3123 = vrot.slane %v3020, %v3122
    %v3125 = vunpack.c.l.s4 1983009808
    %v3126 = vunpack.c.0.s8 %v3125
    %v3127 = vlaneseq
    %v3128 = vshrl.u32 %v3127, 7
    %v3129 = vsub.s32 %v3126, %v3128
    %v3130 = vrot.slane %v3116, %v3129
    %v3131 = vcombine.high %v3123, %v3123
    %v3132 = vcombine.high %v3130, %v3130
    %v3133 = vcombine.high %v3021, %v3021
    %v3135 = vunpack.c.l.s4 1983009808
    %v3136 = vunpack.c.0.s8 %v3135
    %v3137 = vlaneseq
    %v3138 = vshrl.u32 %v3137, 7
    %v3139 = vsub.s32 %v3136, %v3138
    %v3140 = vrot.slane %v3021, %v3139
    %v3142 = vunpack.c.l.s4 1983009808
    %v3143 = vunpack.c.0.s8 %v3142
    %v3144 = vlaneseq
    %v3145 = vshrl.u32 %v3144, 7
    %v3146 = vsub.s32 %v3143, %v3145
    %v3147 = vrot.slane %v3133, %v3146
    %v3148 = vcombine.high %v3140, %v3140
    %v3149 = vcombine.high %v3147, %v3147
    %v3150 = vcombine.high %v3022, %v3022
    %v3152 = vunpack.c.l.s4 1983009808
    %v3153 = vunpack.c.0.s8 %v3152
    %v3154 = vlaneseq
    %v3155 = vshrl.u32 %v3154, 7
    %v3156 = vsub.s32 %v3153, %v3155
    %v3157 = vrot.slane %v3022, %v3156
    %v3159 = vunpack.c.l.s4 1983009808
    %v3160 = vunpack.c.0.s8 %v3159
    %v3161 = vlaneseq
    %v3162 = vshrl.u32 %v3161, 7
    %v3163 = vsub.s32 %v3160, %v3162
    %v3164 = vrot.slane %v3150, %v3163
    %v3165 = vcombine.high %v3157, %v3157
    %v3166 = vcombine.high %v3164, %v3164
    %vm3199 = vcmask 254976
    %v3200 = vsel %vm3199, %v3038, -inf
    %v3201 = vrot.slane %v3200, 4
    %v3202 = vmax.f32 %v3200, %v3201
    %v3203 = vrot.slane %v3202, 2
    %v3204 = vmax.f32 %v3202, %v3203
    %v3205 = vrot.slane %v3204, 1
    %v3206 = vmax.f32 %v3204, %v3205
    %v3207 = vsel %vm3199, %v3046, -inf
    %v3208 = vrot.slane %v3207, 4
    %v3209 = vmax.f32 %v3207, %v3208
    %v3210 = vrot.slane %v3209, 2
    %v3211 = vmax.f32 %v3209, %v3210
    %v3212 = vrot.slane %v3211, 1
    %v3213 = vmax.f32 %v3211, %v3212
    %v3214 = vsel %vm3199, %v3045, -inf
    %v3215 = vrot.slane %v3214, 4
    %v3216 = vmax.f32 %v3214, %v3215
    %v3217 = vrot.slane %v3216, 2
    %v3218 = vmax.f32 %v3216, %v3217
    %v3219 = vrot.slane %v3218, 1
    %v3220 = vmax.f32 %v3218, %v3219
    %v3221 = vsel %vm3199, %v3047, -inf
    %v3222 = vrot.slane %v3221, 4
    %v3223 = vmax.f32 %v3221, %v3222
    %v3224 = vrot.slane %v3223, 2
    %v3225 = vmax.f32 %v3223, %v3224
    %v3226 = vrot.slane %v3225, 1
    %v3227 = vmax.f32 %v3225, %v3226
    %v3228 = vsel %vm3199, %v3055, -inf
    %v3229 = vrot.slane %v3228, 4
    %v3230 = vmax.f32 %v3228, %v3229
    %v3231 = vrot.slane %v3230, 2
    %v3232 = vmax.f32 %v3230, %v3231
    %v3233 = vrot.slane %v3232, 1
    %v3234 = vmax.f32 %v3232, %v3233
    %v3235 = vsel %vm3199, %v3063, -inf
    %v3236 = vrot.slane %v3235, 4
    %v3237 = vmax.f32 %v3235, %v3236
    %v3238 = vrot.slane %v3237, 2
    %v3239 = vmax.f32 %v3237, %v3238
    %v3240 = vrot.slane %v3239, 1
    %v3241 = vmax.f32 %v3239, %v3240
    %v3242 = vsel %vm3199, %v3062, -inf
    %v3243 = vrot.slane %v3242, 4
    %v3244 = vmax.f32 %v3242, %v3243
    %v3245 = vrot.slane %v3244, 2
    %v3246 = vmax.f32 %v3244, %v3245
    %v3247 = vrot.slane %v3246, 1
    %v3248 = vmax.f32 %v3246, %v3247
    %v3249 = vsel %vm3199, %v3064, -inf
    %v3250 = vrot.slane %v3249, 4
    %v3251 = vmax.f32 %v3249, %v3250
    %v3252 = vrot.slane %v3251, 2
    %v3253 = vmax.f32 %v3251, %v3252
    %v3254 = vrot.slane %v3253, 1
    %v3255 = vmax.f32 %v3253, %v3254
    %v3256 = vsel %vm3199, %v3072, -inf
    %v3257 = vrot.slane %v3256, 4
    %v3258 = vmax.f32 %v3256, %v3257
    %v3259 = vrot.slane %v3258, 2
    %v3260 = vmax.f32 %v3258, %v3259
    %v3261 = vrot.slane %v3260, 1
    %v3262 = vmax.f32 %v3260, %v3261
    %v3263 = vsel %vm3199, %v3080, -inf
    %v3264 = vrot.slane %v3263, 4
    %v3265 = vmax.f32 %v3263, %v3264
    %v3266 = vrot.slane %v3265, 2
    %v3267 = vmax.f32 %v3265, %v3266
    %v3268 = vrot.slane %v3267, 1
    %v3269 = vmax.f32 %v3267, %v3268
    %v3270 = vsel %vm3199, %v3079, -inf
    %v3271 = vrot.slane %v3270, 4
    %v3272 = vmax.f32 %v3270, %v3271
    %v3273 = vrot.slane %v3272, 2
    %v3274 = vmax.f32 %v3272, %v3273
    %v3275 = vrot.slane %v3274, 1
    %v3276 = vmax.f32 %v3274, %v3275
    %v3277 = vsel %vm3199, %v3081, -inf
    %v3278 = vrot.slane %v3277, 4
    %v3279 = vmax.f32 %v3277, %v3278
    %v3280 = vrot.slane %v3279, 2
    %v3281 = vmax.f32 %v3279, %v3280
    %v3282 = vrot.slane %v3281, 1
    %v3283 = vmax.f32 %v3281, %v3282
    %v3284 = vsel %vm3199, %v3089, -inf
    %v3285 = vrot.slane %v3284, 4
    %v3286 = vmax.f32 %v3284, %v3285
    %v3287 = vrot.slane %v3286, 2
    %v3288 = vmax.f32 %v3286, %v3287
    %v3289 = vrot.slane %v3288, 1
    %v3290 = vmax.f32 %v3288, %v3289
    %v3291 = vsel %vm3199, %v3097, -inf
    %v3292 = vrot.slane %v3291, 4
    %v3293 = vmax.f32 %v3291, %v3292
    %v3294 = vrot.slane %v3293, 2
    %v3295 = vmax.f32 %v3293, %v3294
    %v3296 = vrot.slane %v3295, 1
    %v3297 = vmax.f32 %v3295, %v3296
    %v3298 = vsel %vm3199, %v3096, -inf
    %v3299 = vrot.slane %v3298, 4
    %v3300 = vmax.f32 %v3298, %v3299
    %v3301 = vrot.slane %v3300, 2
    %v3302 = vmax.f32 %v3300, %v3301
    %v3303 = vrot.slane %v3302, 1
    %v3304 = vmax.f32 %v3302, %v3303
    %v3305 = vsel %vm3199, %v3098, -inf
    %v3306 = vrot.slane %v3305, 4
    %v3307 = vmax.f32 %v3305, %v3306
    %v3308 = vrot.slane %v3307, 2
    %v3309 = vmax.f32 %v3307, %v3308
    %v3310 = vrot.slane %v3309, 1
    %v3311 = vmax.f32 %v3309, %v3310
    %v3312 = vsel %vm3199, %v3106, -inf
    %v3313 = vrot.slane %v3312, 4
    %v3314 = vmax.f32 %v3312, %v3313
    %v3315 = vrot.slane %v3314, 2
    %v3316 = vmax.f32 %v3314, %v3315
    %v3317 = vrot.slane %v3316, 1
    %v3318 = vmax.f32 %v3316, %v3317
    %v3319 = vsel %vm3199, %v3114, -inf
    %v3320 = vrot.slane %v3319, 4
    %v3321 = vmax.f32 %v3319, %v3320
    %v3322 = vrot.slane %v3321, 2
    %v3323 = vmax.f32 %v3321, %v3322
    %v3324 = vrot.slane %v3323, 1
    %v3325 = vmax.f32 %v3323, %v3324
    %v3326 = vsel %vm3199, %v3113, -inf
    %v3327 = vrot.slane %v3326, 4
    %v3328 = vmax.f32 %v3326, %v3327
    %v3329 = vrot.slane %v3328, 2
    %v3330 = vmax.f32 %v3328, %v3329
    %v3331 = vrot.slane %v3330, 1
    %v3332 = vmax.f32 %v3330, %v3331
    %v3333 = vsel %vm3199, %v3115, -inf
    %v3334 = vrot.slane %v3333, 4
    %v3335 = vmax.f32 %v3333, %v3334
    %v3336 = vrot.slane %v3335, 2
    %v3337 = vmax.f32 %v3335, %v3336
    %v3338 = vrot.slane %v3337, 1
    %v3339 = vmax.f32 %v3337, %v3338
    %v3340 = vsel %vm3199, %v3123, -inf
    %v3341 = vrot.slane %v3340, 4
    %v3342 = vmax.f32 %v3340, %v3341
    %v3343 = vrot.slane %v3342, 2
    %v3344 = vmax.f32 %v3342, %v3343
    %v3345 = vrot.slane %v3344, 1
    %v3346 = vmax.f32 %v3344, %v3345
    %v3347 = vsel %vm3199, %v3131, -inf
    %v3348 = vrot.slane %v3347, 4
    %v3349 = vmax.f32 %v3347, %v3348
    %v3350 = vrot.slane %v3349, 2
    %v3351 = vmax.f32 %v3349, %v3350
    %v3352 = vrot.slane %v3351, 1
    %v3353 = vmax.f32 %v3351, %v3352
    %v3354 = vsel %vm3199, %v3130, -inf
    %v3355 = vrot.slane %v3354, 4
    %v3356 = vmax.f32 %v3354, %v3355
    %v3357 = vrot.slane %v3356, 2
    %v3358 = vmax.f32 %v3356, %v3357
    %v3359 = vrot.slane %v3358, 1
    %v3360 = vmax.f32 %v3358, %v3359
    %v3361 = vsel %vm3199, %v3132, -inf
    %v3362 = vrot.slane %v3361, 4
    %v3363 = vmax.f32 %v3361, %v3362
    %v3364 = vrot.slane %v3363, 2
    %v3365 = vmax.f32 %v3363, %v3364
    %v3366 = vrot.slane %v3365, 1
    %v3367 = vmax.f32 %v3365, %v3366
    %v3368 = vsel %vm3199, %v3140, -inf
    %v3369 = vrot.slane %v3368, 4
    %v3370 = vmax.f32 %v3368, %v3369
    %v3371 = vrot.slane %v3370, 2
    %v3372 = vmax.f32 %v3370, %v3371
    %v3373 = vrot.slane %v3372, 1
    %v3374 = vmax.f32 %v3372, %v3373
    %v3375 = vsel %vm3199, %v3148, -inf
    %v3376 = vrot.slane %v3375, 4
    %v3377 = vmax.f32 %v3375, %v3376
    %v3378 = vrot.slane %v3377, 2
    %v3379 = vmax.f32 %v3377, %v3378
    %v3380 = vrot.slane %v3379, 1
    %v3381 = vmax.f32 %v3379, %v3380
    %v3382 = vsel %vm3199, %v3147, -inf
    %v3383 = vrot.slane %v3382, 4
    %v3384 = vmax.f32 %v3382, %v3383
    %v3385 = vrot.slane %v3384, 2
    %v3386 = vmax.f32 %v3384, %v3385
    %v3387 = vrot.slane %v3386, 1
    %v3388 = vmax.f32 %v3386, %v3387
    %v3389 = vsel %vm3199, %v3149, -inf
    %v3390 = vrot.slane %v3389, 4
    %v3391 = vmax.f32 %v3389, %v3390
    %v3392 = vrot.slane %v3391, 2
    %v3393 = vmax.f32 %v3391, %v3392
    %v3394 = vrot.slane %v3393, 1
    %v3395 = vmax.f32 %v3393, %v3394
    %v3396 = vsel %vm3199, %v3157, -inf
    %v3397 = vrot.slane %v3396, 4
    %v3398 = vmax.f32 %v3396, %v3397
    %v3399 = vrot.slane %v3398, 2
    %v3400 = vmax.f32 %v3398, %v3399
    %v3401 = vrot.slane %v3400, 1
    %v3402 = vmax.f32 %v3400, %v3401
    %v3403 = vsel %vm3199, %v3165, -inf
    %v3404 = vrot.slane %v3403, 4
    %v3405 = vmax.f32 %v3403, %v3404
    %v3406 = vrot.slane %v3405, 2
    %v3407 = vmax.f32 %v3405, %v3406
    %v3408 = vrot.slane %v3407, 1
    %v3409 = vmax.f32 %v3407, %v3408
    %v3410 = vsel %vm3199, %v3164, -inf
    %v3411 = vrot.slane %v3410, 4
    %v3412 = vmax.f32 %v3410, %v3411
    %v3413 = vrot.slane %v3412, 2
    %v3414 = vmax.f32 %v3412, %v3413
    %v3415 = vrot.slane %v3414, 1
    %v3416 = vmax.f32 %v3414, %v3415
    %v3417 = vsel %vm3199, %v3166, -inf
    %v3418 = vrot.slane %v3417, 4
    %v3419 = vmax.f32 %v3417, %v3418
    %v3420 = vrot.slane %v3419, 2
    %v3421 = vmax.f32 %v3419, %v3420
    %v3422 = vrot.slane %v3421, 1
    %v3423 = vmax.f32 %v3421, %v3422
    %v3456 = vsel %vm2485, %v3213, %v3206
    %v3457 = vsel %vm2487, %v3220, %v3456
    %v3458 = vsel %vm2489, %v3227, %v3457
    %v3459 = vsel %vm2485, %v3241, %v3234
    %v3460 = vsel %vm2487, %v3248, %v3459
    %v3461 = vsel %vm2489, %v3255, %v3460
    %v3462 = vsel %vm2485, %v3269, %v3262
    %v3463 = vsel %vm2487, %v3276, %v3462
    %v3464 = vsel %vm2489, %v3283, %v3463
    %v3465 = vsel %vm2485, %v3297, %v3290
    %v3466 = vsel %vm2487, %v3304, %v3465
    %v3467 = vsel %vm2489, %v3311, %v3466
    %v3468 = vsel %vm2485, %v3325, %v3318
    %v3469 = vsel %vm2487, %v3332, %v3468
    %v3470 = vsel %vm2489, %v3339, %v3469
    %v3471 = vsel %vm2485, %v3353, %v3346
    %v3472 = vsel %vm2487, %v3360, %v3471
    %v3473 = vsel %vm2489, %v3367, %v3472
    %v3474 = vsel %vm2485, %v3381, %v3374
    %v3475 = vsel %vm2487, %v3388, %v3474
    %v3476 = vsel %vm2489, %v3395, %v3475
    %v3477 = vsel %vm2485, %v3409, %v3402
    %v3478 = vsel %vm2487, %v3416, %v3477
    %v3479 = vsel %vm2489, %v3423, %v3478
    %v3480 = vrot.slane %v3458, 7
    %v3481 = vrot.slane %v3461, 7
    %v3482 = vrot.slane %v3464, 7
    %v3483 = vrot.slane %v3467, 7
    %v3484 = vrot.slane %v3470, 7
    %v3485 = vrot.slane %v3473, 7
    %v3486 = vrot.slane %v3476, 7
    %v3487 = vrot.slane %v3479, 7
    %v3496 = vsel %vm2566, 0.0, %v3480
    %v3497 = vsel %vm2566, 0.0, %v3481
    %v3498 = vsel %vm2566, 0.0, %v3482
    %v3499 = vsel %vm2566, 0.0, %v3483
    %v3500 = vsel %vm2566, 0.0, %v3484
    %v3501 = vsel %vm2566, 0.0, %v3485
    %v3502 = vsel %vm2566, 0.0, %v3486
    %v3503 = vsel %vm2566, 0.0, %v3487
    %v3504 = vsel %vm512, %v2567, 0.0
    %v3505 = vsel %vm512, %v3496, 0.0
    %v3506 = vsel %vm512, %v3497, 0.0
    %v3507 = vsel %vm512, %v3498, 0.0
    %v3508 = vsel %vm512, %v3499, 0.0
    %v3509 = vsel %vm512, %v3500, 0.0
    %v3510 = vsel %vm512, %v3501, 0.0
    %v3511 = vsel %vm512, %v3502, 0.0
    %v3512 = vsel %vm512, %v3503, 0.0
    %v3520 = vrot.slane %v3504, 1
    %v3521 = vrot.slane %v3505, 1
    %v3522 = vrot.slane %v3506, 1
    %v3523 = vrot.slane %v3507, 1
    %v3524 = vrot.slane %v3509, 1
    %v3525 = vrot.slane %v3510, 1
    %v3526 = vrot.slane %v3511, 1
    %3527 = vrot.lane.b32.xlu0 %v3520, 32
    %v3528 = vpop.permute.xlu0 %3527
    %3529 = vrot.lane.b32.xlu0 %v3521, 32
    %v3530 = vpop.permute.xlu0 %3529
    %3531 = vrot.lane.b32.xlu0 %v3522, 32
    %v3532 = vpop.permute.xlu0 %3531
    %3533 = vrot.lane.b32.xlu0 %v3523, 32
    %v3534 = vpop.permute.xlu0 %3533
    %3535 = vrot.lane.b32.xlu0 %v3524, 32
    %v3536 = vpop.permute.xlu0 %3535
    %3537 = vrot.lane.b32.xlu0 %v3525, 32
    %v3538 = vpop.permute.xlu0 %3537
    %3539 = vrot.lane.b32.xlu0 %v3526, 32
    %v3540 = vpop.permute.xlu0 %3539
    %v3548 = vrot.slane %v3504, 2
    %v3549 = vrot.slane %v3505, 2
    %v3550 = vrot.slane %v3506, 2
    %v3551 = vrot.slane %v3507, 2
    %v3552 = vrot.slane %v3509, 2
    %v3553 = vrot.slane %v3510, 2
    %v3554 = vrot.slane %v3511, 2
    %3555 = vrot.lane.b32.xlu0 %v3548, 64
    %v3556 = vpop.permute.xlu0 %3555
    %3557 = vrot.lane.b32.xlu0 %v3549, 64
    %v3558 = vpop.permute.xlu0 %3557
    %3559 = vrot.lane.b32.xlu0 %v3550, 64
    %v3560 = vpop.permute.xlu0 %3559
    %3561 = vrot.lane.b32.xlu0 %v3551, 64
    %v3562 = vpop.permute.xlu0 %3561
    %3563 = vrot.lane.b32.xlu0 %v3552, 64
    %v3564 = vpop.permute.xlu0 %3563
    %3565 = vrot.lane.b32.xlu0 %v3553, 64
    %v3566 = vpop.permute.xlu0 %3565
    %3567 = vrot.lane.b32.xlu0 %v3554, 64
    %v3568 = vpop.permute.xlu0 %3567
    %3578 = vrot.lane.b32.xlu0 %v3505, 96
    %v3579 = vpop.permute.xlu0 %3578
    %3580 = vrot.lane.b32.xlu0 %v3506, 96
    %v3581 = vpop.permute.xlu0 %3580
    %3582 = vrot.lane.b32.xlu0 %v3507, 96
    %v3583 = vpop.permute.xlu0 %3582
    %3584 = vrot.lane.b32.xlu0 %v3508, 96
    %v3585 = vpop.permute.xlu0 %3584
    %3586 = vrot.lane.b32.xlu0 %v3509, 96
    %v3587 = vpop.permute.xlu0 %3586
    %3588 = vrot.lane.b32.xlu0 %v3510, 96
    %v3589 = vpop.permute.xlu0 %3588
    %3590 = vrot.lane.b32.xlu0 %v3511, 96
    %v3591 = vpop.permute.xlu0 %3590
    %3592 = vrot.lane.b32.xlu0 %v3512, 96
    %v3593 = vpop.permute.xlu0 %3592
    %v3602 = vrot.slane %v3508, 1
    %v3603 = vrot.slane %v3512, 1
    %v3612 = vrot.slane %v3508, 2
    %v3613 = vrot.slane %v3512, 2
    %3614 = vrot.lane.b32.xlu0 %v3549, 32
    %v3615 = vpop.permute.xlu0 %3614
    %3616 = vrot.lane.b32.xlu0 %v3550, 32
    %v3617 = vpop.permute.xlu0 %3616
    %3618 = vrot.lane.b32.xlu0 %v3551, 32
    %v3619 = vpop.permute.xlu0 %3618
    %3620 = vrot.lane.b32.xlu0 %v3612, 32
    %v3621 = vpop.permute.xlu0 %3620
    %3622 = vrot.lane.b32.xlu0 %v3552, 32
    %v3623 = vpop.permute.xlu0 %3622
    %3624 = vrot.lane.b32.xlu0 %v3553, 32
    %v3625 = vpop.permute.xlu0 %3624
    %3626 = vrot.lane.b32.xlu0 %v3554, 32
    %v3627 = vpop.permute.xlu0 %3626
    %3628 = vrot.lane.b32.xlu0 %v3613, 32
    %v3629 = vpop.permute.xlu0 %3628
    %3638 = vrot.lane.b32.xlu0 %v3506, 64
    %v3639 = vpop.permute.xlu0 %3638
    %3640 = vrot.lane.b32.xlu0 %v3507, 64
    %v3641 = vpop.permute.xlu0 %3640
    %3642 = vrot.lane.b32.xlu0 %v3508, 64
    %v3643 = vpop.permute.xlu0 %3642
    %3644 = vrot.lane.b32.xlu0 %v3504, 64
    %v3645 = vpop.permute.xlu0 %3644
    %3646 = vrot.lane.b32.xlu0 %v3510, 64
    %v3647 = vpop.permute.xlu0 %3646
    %3648 = vrot.lane.b32.xlu0 %v3511, 64
    %v3649 = vpop.permute.xlu0 %3648
    %3650 = vrot.lane.b32.xlu0 %v3512, 64
    %v3651 = vpop.permute.xlu0 %3650
    %3659 = vrot.lane.b32.xlu0 %v3522, 96
    %v3660 = vpop.permute.xlu0 %3659
    %3661 = vrot.lane.b32.xlu0 %v3523, 96
    %v3662 = vpop.permute.xlu0 %3661
    %3663 = vrot.lane.b32.xlu0 %v3602, 96
    %v3664 = vpop.permute.xlu0 %3663
    %3665 = vrot.lane.b32.xlu0 %v3520, 96
    %v3666 = vpop.permute.xlu0 %3665
    %3667 = vrot.lane.b32.xlu0 %v3525, 96
    %v3668 = vpop.permute.xlu0 %3667
    %3669 = vrot.lane.b32.xlu0 %v3526, 96
    %v3670 = vpop.permute.xlu0 %3669
    %3671 = vrot.lane.b32.xlu0 %v3603, 96
    %v3672 = vpop.permute.xlu0 %3671
    %v3680 = vsel %vm1273, %v3504, %v3528
    %v3681 = vsel %vm1273, %v3505, %v3530
    %v3682 = vsel %vm1273, %v3506, %v3532
    %v3683 = vsel %vm1273, %v3507, %v3534
    %v3684 = vsel %vm1273, %v3509, %v3536
    %v3685 = vsel %vm1273, %v3510, %v3538
    %v3686 = vsel %vm1273, %v3511, %v3540
    %v3687 = vsel %vm2835, %v3680, %v3556
    %v3688 = vsel %vm2835, %v3681, %v3558
    %v3689 = vsel %vm2835, %v3682, %v3560
    %v3690 = vsel %vm2835, %v3683, %v3562
    %v3691 = vsel %vm2835, %v3684, %v3564
    %v3692 = vsel %vm2835, %v3685, %v3566
    %v3693 = vsel %vm2835, %v3686, %v3568
    %v3694 = vsel %vm2853, %v3687, %v3579
    %v3695 = vsel %vm2853, %v3688, %v3581
    %v3696 = vsel %vm2853, %v3689, %v3583
    %v3697 = vsel %vm2853, %v3690, %v3585
    %v3698 = vsel %vm2853, %v3687, %v3587
    %v3699 = vsel %vm2853, %v3691, %v3589
    %v3700 = vsel %vm2853, %v3692, %v3591
    %v3701 = vsel %vm2853, %v3693, %v3593
    %v3702 = vsel %vm1273, %v3521, %v3615
    %v3703 = vsel %vm1273, %v3522, %v3617
    %v3704 = vsel %vm1273, %v3523, %v3619
    %v3705 = vsel %vm1273, %v3602, %v3621
    %v3706 = vsel %vm1273, %v3524, %v3623
    %v3707 = vsel %vm1273, %v3525, %v3625
    %v3708 = vsel %vm1273, %v3526, %v3627
    %v3709 = vsel %vm1273, %v3603, %v3629
    %v3710 = vsel %vm2835, %v3702, %v3639
    %v3711 = vsel %vm2835, %v3703, %v3641
    %v3712 = vsel %vm2835, %v3704, %v3643
    %v3713 = vsel %vm2835, %v3705, %v3645
    %v3714 = vsel %vm2835, %v3706, %v3647
    %v3715 = vsel %vm2835, %v3707, %v3649
    %v3716 = vsel %vm2835, %v3708, %v3651
    %v3717 = vsel %vm2835, %v3709, %v3645
    %v3718 = vsel %vm2853, %v3710, %v3660
    %v3719 = vsel %vm2853, %v3711, %v3662
    %v3720 = vsel %vm2853, %v3712, %v3664
    %v3721 = vsel %vm2853, %v3713, %v3666
    %v3722 = vsel %vm2853, %v3714, %v3668
    %v3723 = vsel %vm2853, %v3715, %v3670
    %v3724 = vsel %vm2853, %v3716, %v3672
    %v3725 = vsel %vm2853, %v3717, %v3666
    %v3742 = vcombine.low %v3694, %v3718
    %v3743 = vcombine.low %v3695, %v3719
    %v3744 = vcombine.low %v3696, %v3720
    %v3745 = vcombine.low %v3697, %v3721
    %v3746 = vcombine.low %v3698, %v3722
    %v3747 = vcombine.low %v3699, %v3723
    %v3748 = vcombine.low %v3700, %v3724
    %v3749 = vcombine.low %v3701, %v3725
    %v3750 = vld [vmem:[#allocation11] sm:$0xff]
    %v3751 = vld [vmem:[#allocation11 + $0x8] sm:$0xff]
    %v3752 = vld [vmem:[#allocation11 + $0x10] sm:$0xff]
    %v3753 = vld [vmem:[#allocation11 + $0x18] sm:$0xff]
    %v3754 = vld [vmem:[#allocation11 + $0x20] sm:$0xff]
    %v3755 = vld [vmem:[#allocation11 + $0x28] sm:$0xff]
    %v3756 = vld [vmem:[#allocation11 + $0x30] sm:$0xff]
    %v3757 = vld [vmem:[#allocation11 + $0x38] sm:$0xff]
    %v3758 = vld [vmem:[#allocation11 + $0x40] sm:$0xff]
    %v3759 = vld [vmem:[#allocation11 + $0x48] sm:$0xff]
    %v3760 = vld [vmem:[#allocation11 + $0x50] sm:$0xff]
    %v3761 = vld [vmem:[#allocation11 + $0x58] sm:$0xff]
    %v3762 = vld [vmem:[#allocation11 + $0x60] sm:$0xff]
    %v3763 = vld [vmem:[#allocation11 + $0x68] sm:$0xff]
    %v3764 = vld [vmem:[#allocation11 + $0x70] sm:$0xff]
    %v3765 = vld [vmem:[#allocation11 + $0x78] sm:$0xff]
    %v3766 = vld [vmem:[#allocation11 + $0x80] sm:$0xff]
    %v3767 = vld [vmem:[#allocation11 + $0x88] sm:$0xff]
    %v3768 = vld [vmem:[#allocation11 + $0x90] sm:$0xff]
    %v3769 = vld [vmem:[#allocation11 + $0x98] sm:$0xff]
    %v3770 = vld [vmem:[#allocation11 + $0xa0] sm:$0xff]
    %v3771 = vld [vmem:[#allocation11 + $0xa8] sm:$0xff]
    %v3772 = vld [vmem:[#allocation11 + $0xb0] sm:$0xff]
    %v3773 = vld [vmem:[#allocation11 + $0xb8] sm:$0xff]
    %v3774 = vld [vmem:[#allocation11 + $0xc0] sm:$0xff]
    %v3775 = vld [vmem:[#allocation11 + $0xc8] sm:$0xff]
    %v3776 = vld [vmem:[#allocation11 + $0xd0] sm:$0xff]
    %v3777 = vld [vmem:[#allocation11 + $0xd8] sm:$0xff]
    %v3778 = vld [vmem:[#allocation11 + $0xe0] sm:$0xff]
    %v3779 = vld [vmem:[#allocation11 + $0xe8] sm:$0xff]
    %v3780 = vld [vmem:[#allocation11 + $0xf0] sm:$0xff]
    %v3781 = vld [vmem:[#allocation11 + $0xf8] sm:$0xff]
    %v3782 = vld [vmem:[#allocation11 + $0x100] sm:$0xff]
    %v3783 = vld [vmem:[#allocation11 + $0x108] sm:$0xff]
    %v3784 = vld [vmem:[#allocation11 + $0x110] sm:$0xff]
    %v3785 = vld [vmem:[#allocation11 + $0x118] sm:$0xff]
    %v3786 = vld [vmem:[#allocation13] sm:$0x1]
    %v3788 = vlaneseq
    %v3789 = vshrl.u32 %v3788, 7
    %v3790 = vsub.s32 0, %v3789
    %v3791 = vrot.slane %v3786, %v3790
    %v3793 = vcombine.low %v3742, %v3743
    %v3794 = vcombine.high %v3742, %v3743
    %v3795 = vcombine.low %v3550, %v3551
    %v3796 = vcombine.low %v3744, %v3745
    %v3797 = vcombine.high %v3744, %v3745
    %v3798 = vcombine.low %v3612, %v3548
    %v3799 = vcombine.low %v3746, %v3747
    %v3800 = vcombine.high %v3746, %v3747
    %v3801 = vcombine.low %v3553, %v3554
    %v3802 = vcombine.low %v3748, %v3749
    %v3803 = vcombine.high %v3748, %v3749
    %v3804 = vcombine.low %v3613, %v3548
    %v3813 = vsel %vm1273, %v3795, 0
    %v3815 = vsel %vm1273, %v3798, 0
    %v3817 = vsel %vm1273, %v3801, 0
    %v3819 = vsel %vm1273, %v3804, 0
    %3821 = vmatprep.subr.mxu0 0.0
    %3822 = vmatpush1.msra.mxu0 %v3750
    %3823 = vmatprep.subr.mxu0 0.0
    %3824 = vmatpush1.msra.mxu0 %v3751
    %3825 = vmatprep.subr.mxu0 0.0
    %3826 = vmatpush1.msra.mxu0 %v3752
    %3827 = vmatprep.subr.mxu0 0.0
    %3828 = vmatpush1.msra.mxu0 %v3753
    %3829 = vmatprep.subr.mxu0 0.0
    %3830 = vmatpush1.msra.mxu0 %v3754
    %3831 = vmatprep.subr.mxu0 0.0
    %3832 = vmatpush1.msra.mxu0 %v3755
    %3833 = vmatprep.subr.mxu0 0.0
    %3834 = vmatpush1.msra.mxu0 %v3756
    %3835 = vmatprep.subr.mxu0 0.0
    %3836 = vmatpush1.msra.mxu0 %v3757
    %3837 = vmatprep.subr.mxu0 0.0
    %3838 = vmatpush1.msra.mxu0 %v3758
    %3839 = vmatprep.subr.mxu0 0.0
    %3840 = vmatpush1.msra.mxu0 %v3759
    %3841 = vmatprep.subr.mxu0 0.0
    %3842 = vmatpush1.msra.mxu0 %v3760
    %3843 = vmatprep.subr.mxu0 0.0
    %3844 = vmatpush1.msra.mxu0 %v3761
    %3845 = vmatprep.subr.mxu0 0.0
    %3846 = vmatpush1.msra.mxu0 %v3762
    %3847 = vmatprep.subr.mxu0 0.0
    %3848 = vmatpush1.msra.mxu0 %v3763
    %3849 = vmatprep.subr.mxu0 0.0
    %3850 = vmatpush1.msra.mxu0 %v3764
    %3851 = vmatprep.subr.mxu0 0.0
    %3852 = vmatpush1.msra.mxu0 %v3765
    %3853 = vmatprep.subr.mxu0 0.0
    %3854 = vmatpush1.msra.mxu0 %v3766
    %3855 = vmatprep.subr.mxu0 0.0
    %3856 = vmatpush1.msra.mxu0 %v3767
    %3857 = vmatprep.subr.mxu0 0.0
    %3858 = vmatpush1.msra.mxu0 %v3768
    %3859 = vmatprep.subr.mxu0 0.0
    %3860 = vmatpush1.msra.mxu0 %v3769
    %3861 = vmatprep.subr.mxu0 0.0
    %3862 = vmatpush1.msra.mxu0 %v3770
    %3863 = vmatprep.subr.mxu0 0.0
    %3864 = vmatpush1.msra.mxu0 %v3771
    %3865 = vmatprep.subr.mxu0 0.0
    %3866 = vmatpush1.msra.mxu0 %v3772
    %3867 = vmatprep.subr.mxu0 0.0
    %3868 = vmatpush1.msra.mxu0 %v3773
    %3869 = vmatprep.subr.mxu0 0.0
    %3870 = vmatpush1.msra.mxu0 %v3774
    %3871 = vmatprep.subr.mxu0 0.0
    %3872 = vmatpush1.msra.mxu0 %v3775
    %3873 = vmatprep.subr.mxu0 0.0
    %3874 = vmatpush1.msra.mxu0 %v3776
    %3875 = vmatprep.subr.mxu0 0.0
    %3876 = vmatpush1.msra.mxu0 %v3777
    %3877 = vmatprep.subr.mxu0 0.0
    %3878 = vmatpush1.msra.mxu0 %v3778
    %3879 = vmatprep.subr.mxu0 0.0
    %3880 = vmatpush1.msra.mxu0 %v3779
    %3881 = vmatprep.subr.mxu0 0.0
    %3882 = vmatpush1.msra.mxu0 %v3780
    %3883 = vmatprep.subr.mxu0 0.0
    %3884 = vmatpush1.msra.mxu0 %v3781
    %3885 = vmatprep.mubr.f32.mxu0 %v3794
    %3886 = vmatmul.mubr.f32.gmra.mrb[0].mxu0 %v3793
    %v3887 = vpop.f32.mrb[0].mxu0
    %v3888 = vadd.f32 %v3791, %v3887
    %v3889 = vpop.f32.mrb[0].mxu0
    %3890 = vmatprep.mubr.f32.mxu0 %v3797
    %3891 = vmatmul.mubr.f32.gmra.mrb[0].mxu0 %v3796
    %v3892 = vpop.f32.mrb[0].mxu0
    %v3893 = vadd.f32 %v3791, %v3892
    %v3894 = vpop.f32.mrb[0].mxu0
    %3895 = vmatprep.mubr.f32.mxu0 %v3800
    %3896 = vmatmul.mubr.f32.gmra.mrb[0].mxu0 %v3799
    %v3897 = vpop.f32.mrb[0].mxu0
    %v3898 = vadd.f32 %v3791, %v3897
    %v3899 = vpop.f32.mrb[0].mxu0
    %3900 = vmatprep.mubr.f32.mxu0 %v3803
    %3901 = vmatmul.mubr.f32.gmra.mrb[0].mxu0 %v3802
    %v3902 = vpop.f32.mrb[0].mxu0
    %v3903 = vadd.f32 %v3791, %v3902
    %v3904 = vpop.f32.mrb[0].mxu0
    %3905 = vdwg.mxu0
    %3906 = vmatprep.subr.mxu0 0.0
    %3907 = vmatpush1.msra.mxu0 %v3782
    %3908 = vmatprep.subr.mxu0 0.0
    %3909 = vmatpush1.msra.mxu0 %v3783
    %3910 = vmatprep.subr.mxu0 0.0
    %3911 = vmatpush1.msra.mxu0 %v3784
    %3912 = vmatprep.subr.mxu0 0.0
    %3913 = vmatpush1.msra.mxu0 %v3785
    %3914 = vmatprep.subr.mxu0 0.0
    %3915 = vmatpush1.msra.mxu0 0.0
    %3916 = vmatprep.subr.mxu0 0.0
    %3917 = vmatpush1.msra.mxu0 0.0
    %3918 = vmatprep.subr.mxu0 0.0
    %3919 = vmatpush1.msra.mxu0 0.0
    %3920 = vmatprep.subr.mxu0 0.0
    %3921 = vmatpush1.msra.mxu0 0.0
    %3922 = vmatprep.subr.mxu0 0.0
    %3923 = vmatpush1.msra.mxu0 0.0
    %3924 = vmatprep.subr.mxu0 0.0
    %3925 = vmatpush1.msra.mxu0 0.0
    %3926 = vmatprep.subr.mxu0 0.0
    %3927 = vmatpush1.msra.mxu0 0.0
    %3928 = vmatprep.subr.mxu0 0.0
    %3929 = vmatpush1.msra.mxu0 0.0
    %3930 = vmatprep.subr.mxu0 0.0
    %3931 = vmatpush1.msra.mxu0 0.0
    %3932 = vmatprep.subr.mxu0 0.0
    %3933 = vmatpush1.msra.mxu0 0.0
    %3934 = vmatprep.subr.mxu0 0.0
    %3935 = vmatpush1.msra.mxu0 0.0
    %3936 = vmatprep.subr.mxu0 0.0
    %3937 = vmatpush1.msra.mxu0 0.0
    %3938 = vmatprep.subr.mxu0 0.0
    %3939 = vmatpush1.msra.mxu0 0.0
    %3940 = vmatprep.subr.mxu0 0.0
    %3941 = vmatpush1.msra.mxu0 0.0
    %3942 = vmatprep.subr.mxu0 0.0
    %3943 = vmatpush1.msra.mxu0 0.0
    %3944 = vmatprep.subr.mxu0 0.0
    %3945 = vmatpush1.msra.mxu0 0.0
    %3946 = vmatprep.subr.mxu0 0.0
    %3947 = vmatpush1.msra.mxu0 0.0
    %3948 = vmatprep.subr.mxu0 0.0
    %3949 = vmatpush1.msra.mxu0 0.0
    %3950 = vmatprep.subr.mxu0 0.0
    %3951 = vmatpush1.msra.mxu0 0.0
    %3952 = vmatprep.subr.mxu0 0.0
    %3953 = vmatpush1.msra.mxu0 0.0
    %3954 = vmatprep.subr.mxu0 0.0
    %3955 = vmatpush1.msra.mxu0 0.0
    %3956 = vmatprep.subr.mxu0 0.0
    %3957 = vmatpush1.msra.mxu0 0.0
    %3958 = vmatprep.subr.mxu0 0.0
    %3959 = vmatpush1.msra.mxu0 0.0
    %3960 = vmatprep.subr.mxu0 0.0
    %3961 = vmatpush1.msra.mxu0 0.0
    %3962 = vmatprep.subr.mxu0 0.0
    %3963 = vmatpush1.msra.mxu0 0.0
    %3964 = vmatprep.subr.mxu0 0.0
    %3965 = vmatpush1.msra.mxu0 0.0
    %3966 = vmatprep.subr.mxu0 0.0
    %3967 = vmatpush1.msra.mxu0 0.0
    %3968 = vmatprep.subr.mxu0 0.0
    %3969 = vmatpush1.msra.mxu0 0.0
    %3970 = vmatprep.mubr.f32.mxu0 0.0
    %3971 = vmatmul.mubr.f32.gmra.mrb[0].mxu0 %v3813
    %v3972 = vpop.f32.mrb[0].mxu0
    %v3973 = vadd.f32 %v3888, %v3972
    %v3974 = vpop.f32.mrb[0].mxu0
    %3975 = vmatprep.mubr.f32.mxu0 0.0
    %3976 = vmatmul.mubr.f32.gmra.mrb[0].mxu0 %v3815
    %v3977 = vpop.f32.mrb[0].mxu0
    %v3978 = vadd.f32 %v3893, %v3977
    %v3979 = vpop.f32.mrb[0].mxu0
    %3980 = vmatprep.mubr.f32.mxu0 0.0
    %3981 = vmatmul.mubr.f32.gmra.mrb[0].mxu0 %v3817
    %v3982 = vpop.f32.mrb[0].mxu0
    %v3983 = vadd.f32 %v3898, %v3982
    %v3984 = vpop.f32.mrb[0].mxu0
    %3985 = vmatprep.mubr.f32.mxu0 0.0
    %3986 = vmatmul.mubr.f32.gmra.mrb[0].mxu0 %v3819
    %v3987 = vpop.f32.mrb[0].mxu0
    %v3988 = vadd.f32 %v3903, %v3987
    %v3989 = vpop.f32.mrb[0].mxu0
    %3990 = vdwg.mxu0
    %v3991 = vmax.f32 %v3973, 0.0
    %v3992 = vmax.f32 %v3978, 0.0
    %v3993 = vmax.f32 %v3983, 0.0
    %v3994 = vmax.f32 %v3988, 0.0
    %v3999 = vcombine.high %v3991, %v3991
    %v4001 = vunpack.c.l.s4 1983009808
    %v4002 = vunpack.c.0.s8 %v4001
    %v4003 = vlaneseq
    %v4004 = vshrl.u32 %v4003, 7
    %v4005 = vsub.s32 %v4002, %v4004
    %v4006 = vrot.slane %v3991, %v4005
    %v4008 = vunpack.c.l.s4 1983009808
    %v4009 = vunpack.c.0.s8 %v4008
    %v4010 = vlaneseq
    %v4011 = vshrl.u32 %v4010, 7
    %v4012 = vsub.s32 %v4009, %v4011
    %v4013 = vrot.slane %v3999, %v4012
    %v4014 = vcombine.high %v4006, %v4006
    %v4015 = vcombine.high %v4013, %v4013
    %v4016 = vcombine.high %v3992, %v3992
    %v4018 = vunpack.c.l.s4 1983009808
    %v4019 = vunpack.c.0.s8 %v4018
    %v4020 = vlaneseq
    %v4021 = vshrl.u32 %v4020, 7
    %v4022 = vsub.s32 %v4019, %v4021
    %v4023 = vrot.slane %v3992, %v4022
    %v4025 = vunpack.c.l.s4 1983009808
    %v4026 = vunpack.c.0.s8 %v4025
    %v4027 = vlaneseq
    %v4028 = vshrl.u32 %v4027, 7
    %v4029 = vsub.s32 %v4026, %v4028
    %v4030 = vrot.slane %v4016, %v4029
    %v4031 = vcombine.high %v4023, %v4023
    %v4032 = vcombine.high %v4030, %v4030
    %v4033 = vcombine.high %v3993, %v3993
    %v4035 = vunpack.c.l.s4 1983009808
    %v4036 = vunpack.c.0.s8 %v4035
    %v4037 = vlaneseq
    %v4038 = vshrl.u32 %v4037, 7
    %v4039 = vsub.s32 %v4036, %v4038
    %v4040 = vrot.slane %v3993, %v4039
    %v4042 = vunpack.c.l.s4 1983009808
    %v4043 = vunpack.c.0.s8 %v4042
    %v4044 = vlaneseq
    %v4045 = vshrl.u32 %v4044, 7
    %v4046 = vsub.s32 %v4043, %v4045
    %v4047 = vrot.slane %v4033, %v4046
    %v4048 = vcombine.high %v4040, %v4040
    %v4049 = vcombine.high %v4047, %v4047
    %v4050 = vcombine.high %v3994, %v3994
    %v4052 = vunpack.c.l.s4 1983009808
    %v4053 = vunpack.c.0.s8 %v4052
    %v4054 = vlaneseq
    %v4055 = vshrl.u32 %v4054, 7
    %v4056 = vsub.s32 %v4053, %v4055
    %v4057 = vrot.slane %v3994, %v4056
    %v4059 = vunpack.c.l.s4 1983009808
    %v4060 = vunpack.c.0.s8 %v4059
    %v4061 = vlaneseq
    %v4062 = vshrl.u32 %v4061, 7
    %v4063 = vsub.s32 %v4060, %v4062
    %v4064 = vrot.slane %v4050, %v4063
    %v4065 = vcombine.high %v4057, %v4057
    %v4066 = vcombine.high %v4064, %v4064
    %vm4083 = vcmask 517120
    %v4084 = vsel %vm4083, %v4006, -inf
    %v4085 = vrot.slane %v4084, 4
    %v4086 = vmax.f32 %v4084, %v4085
    %v4087 = vrot.slane %v4086, 2
    %v4088 = vmax.f32 %v4086, %v4087
    %v4089 = vrot.slane %v4088, 1
    %v4090 = vmax.f32 %v4088, %v4089
    %v4091 = vsel %vm4083, %v4014, -inf
    %v4092 = vrot.slane %v4091, 4
    %v4093 = vmax.f32 %v4091, %v4092
    %v4094 = vrot.slane %v4093, 2
    %v4095 = vmax.f32 %v4093, %v4094
    %v4096 = vrot.slane %v4095, 1
    %v4097 = vmax.f32 %v4095, %v4096
    %v4098 = vsel %vm4083, %v4013, -inf
    %v4099 = vrot.slane %v4098, 4
    %v4100 = vmax.f32 %v4098, %v4099
    %v4101 = vrot.slane %v4100, 2
    %v4102 = vmax.f32 %v4100, %v4101
    %v4103 = vrot.slane %v4102, 1
    %v4104 = vmax.f32 %v4102, %v4103
    %v4105 = vsel %vm4083, %v4015, -inf
    %v4106 = vrot.slane %v4105, 4
    %v4107 = vmax.f32 %v4105, %v4106
    %v4108 = vrot.slane %v4107, 2
    %v4109 = vmax.f32 %v4107, %v4108
    %v4110 = vrot.slane %v4109, 1
    %v4111 = vmax.f32 %v4109, %v4110
    %v4112 = vsel %vm4083, %v4023, -inf
    %v4113 = vrot.slane %v4112, 4
    %v4114 = vmax.f32 %v4112, %v4113
    %v4115 = vrot.slane %v4114, 2
    %v4116 = vmax.f32 %v4114, %v4115
    %v4117 = vrot.slane %v4116, 1
    %v4118 = vmax.f32 %v4116, %v4117
    %v4119 = vsel %vm4083, %v4031, -inf
    %v4120 = vrot.slane %v4119, 4
    %v4121 = vmax.f32 %v4119, %v4120
    %v4122 = vrot.slane %v4121, 2
    %v4123 = vmax.f32 %v4121, %v4122
    %v4124 = vrot.slane %v4123, 1
    %v4125 = vmax.f32 %v4123, %v4124
    %v4126 = vsel %vm4083, %v4030, -inf
    %v4127 = vrot.slane %v4126, 4
    %v4128 = vmax.f32 %v4126, %v4127
    %v4129 = vrot.slane %v4128, 2
    %v4130 = vmax.f32 %v4128, %v4129
    %v4131 = vrot.slane %v4130, 1
    %v4132 = vmax.f32 %v4130, %v4131
    %v4133 = vsel %vm4083, %v4032, -inf
    %v4134 = vrot.slane %v4133, 4
    %v4135 = vmax.f32 %v4133, %v4134
    %v4136 = vrot.slane %v4135, 2
    %v4137 = vmax.f32 %v4135, %v4136
    %v4138 = vrot.slane %v4137, 1
    %v4139 = vmax.f32 %v4137, %v4138
    %v4140 = vsel %vm4083, %v4040, -inf
    %v4141 = vrot.slane %v4140, 4
    %v4142 = vmax.f32 %v4140, %v4141
    %v4143 = vrot.slane %v4142, 2
    %v4144 = vmax.f32 %v4142, %v4143
    %v4145 = vrot.slane %v4144, 1
    %v4146 = vmax.f32 %v4144, %v4145
    %v4147 = vsel %vm4083, %v4048, -inf
    %v4148 = vrot.slane %v4147, 4
    %v4149 = vmax.f32 %v4147, %v4148
    %v4150 = vrot.slane %v4149, 2
    %v4151 = vmax.f32 %v4149, %v4150
    %v4152 = vrot.slane %v4151, 1
    %v4153 = vmax.f32 %v4151, %v4152
    %v4154 = vsel %vm4083, %v4047, -inf
    %v4155 = vrot.slane %v4154, 4
    %v4156 = vmax.f32 %v4154, %v4155
    %v4157 = vrot.slane %v4156, 2
    %v4158 = vmax.f32 %v4156, %v4157
    %v4159 = vrot.slane %v4158, 1
    %v4160 = vmax.f32 %v4158, %v4159
    %v4161 = vsel %vm4083, %v4049, -inf
    %v4162 = vrot.slane %v4161, 4
    %v4163 = vmax.f32 %v4161, %v4162
    %v4164 = vrot.slane %v4163, 2
    %v4165 = vmax.f32 %v4163, %v4164
    %v4166 = vrot.slane %v4165, 1
    %v4167 = vmax.f32 %v4165, %v4166
    %v4168 = vsel %vm4083, %v4057, -inf
    %v4169 = vrot.slane %v4168, 4
    %v4170 = vmax.f32 %v4168, %v4169
    %v4171 = vrot.slane %v4170, 2
    %v4172 = vmax.f32 %v4170, %v4171
    %v4173 = vrot.slane %v4172, 1
    %v4174 = vmax.f32 %v4172, %v4173
    %v4175 = vsel %vm4083, %v4065, -inf
    %v4176 = vrot.slane %v4175, 4
    %v4177 = vmax.f32 %v4175, %v4176
    %v4178 = vrot.slane %v4177, 2
    %v4179 = vmax.f32 %v4177, %v4178
    %v4180 = vrot.slane %v4179, 1
    %v4181 = vmax.f32 %v4179, %v4180
    %v4182 = vsel %vm4083, %v4064, -inf
    %v4183 = vrot.slane %v4182, 4
    %v4184 = vmax.f32 %v4182, %v4183
    %v4185 = vrot.slane %v4184, 2
    %v4186 = vmax.f32 %v4184, %v4185
    %v4187 = vrot.slane %v4186, 1
    %v4188 = vmax.f32 %v4186, %v4187
    %v4189 = vsel %vm4083, %v4066, -inf
    %v4190 = vrot.slane %v4189, 4
    %v4191 = vmax.f32 %v4189, %v4190
    %v4192 = vrot.slane %v4191, 2
    %v4193 = vmax.f32 %v4191, %v4192
    %v4194 = vrot.slane %v4193, 1
    %v4195 = vmax.f32 %v4193, %v4194
    %v4212 = vsel %vm2485, %v4097, %v4090
    %v4213 = vsel %vm2485, %v4111, %v4104
    %v4214 = vsel %vm2485, %v4125, %v4118
    %v4215 = vsel %vm2485, %v4139, %v4132
    %v4216 = vsel %vm2485, %v4153, %v4146
    %v4217 = vsel %vm2485, %v4167, %v4160
    %v4218 = vsel %vm2485, %v4181, %v4174
    %v4219 = vsel %vm2485, %v4195, %v4188
    %v4220 = vrot.slane %v4212, 7
    %v4221 = vrot.slane %v4213, 7
    %v4222 = vrot.slane %v4214, 7
    %v4223 = vrot.slane %v4215, 7
    %v4224 = vrot.slane %v4216, 7
    %v4225 = vrot.slane %v4217, 7
    %v4226 = vrot.slane %v4218, 7
    %v4227 = vrot.slane %v4219, 7
    %v4236 = vsel %vm2566, 0.0, %v4220
    %v4237 = vsel %vm2566, 0.0, %v4221
    %v4238 = vsel %vm2566, 0.0, %v4222
    %v4239 = vsel %vm2566, 0.0, %v4223
    %v4240 = vsel %vm2566, 0.0, %v4224
    %v4241 = vsel %vm2566, 0.0, %v4225
    %v4242 = vsel %vm2566, 0.0, %v4226
    %v4243 = vsel %vm2566, 0.0, %v4227
    %vm4244 = vcmask 1042432
    %v4245 = vsel %vm4244, %v2567, 0.0
    %v4246 = vsel %vm4244, %v4236, 0.0
    %v4247 = vsel %vm4244, %v4237, 0.0
    %v4248 = vsel %vm4244, %v4238, 0.0
    %v4249 = vsel %vm4244, %v4239, 0.0
    %v4250 = vsel %vm4244, %v4240, 0.0
    %v4251 = vsel %vm4244, %v4241, 0.0
    %v4252 = vsel %vm4244, %v4242, 0.0
    %v4253 = vsel %vm4244, %v4243, 0.0
    %v4261 = vrot.slane %v4245, 1
    %v4262 = vrot.slane %v4246, 1
    %v4263 = vrot.slane %v4247, 1
    %v4264 = vrot.slane %v4248, 1
    %v4265 = vrot.slane %v4250, 1
    %v4266 = vrot.slane %v4251, 1
    %v4267 = vrot.slane %v4252, 1
    %4268 = vrot.lane.b32.xlu0 %v4261, 64
    %v4269 = vpop.permute.xlu0 %4268
    %4270 = vrot.lane.b32.xlu0 %v4262, 64
    %v4271 = vpop.permute.xlu0 %4270
    %4272 = vrot.lane.b32.xlu0 %v4263, 64
    %v4273 = vpop.permute.xlu0 %4272
    %4274 = vrot.lane.b32.xlu0 %v4264, 64
    %v4275 = vpop.permute.xlu0 %4274
    %4276 = vrot.lane.b32.xlu0 %v4265, 64
    %v4277 = vpop.permute.xlu0 %4276
    %4278 = vrot.lane.b32.xlu0 %v4266, 64
    %v4279 = vpop.permute.xlu0 %4278
    %4280 = vrot.lane.b32.xlu0 %v4267, 64
    %v4281 = vpop.permute.xlu0 %4280
    %v4289 = vrot.slane %v4245, 2
    %v4290 = vrot.slane %v4246, 2
    %v4291 = vrot.slane %v4247, 2
    %v4292 = vrot.slane %v4248, 2
    %v4293 = vrot.slane %v4250, 2
    %v4294 = vrot.slane %v4251, 2
    %v4295 = vrot.slane %v4252, 2
    %4305 = vrot.lane.b32.xlu0 %v4246, 64
    %v4306 = vpop.permute.xlu0 %4305
    %4307 = vrot.lane.b32.xlu0 %v4247, 64
    %v4308 = vpop.permute.xlu0 %4307
    %4309 = vrot.lane.b32.xlu0 %v4248, 64
    %v4310 = vpop.permute.xlu0 %4309
    %4311 = vrot.lane.b32.xlu0 %v4249, 64
    %v4312 = vpop.permute.xlu0 %4311
    %4313 = vrot.lane.b32.xlu0 %v4250, 64
    %v4314 = vpop.permute.xlu0 %4313
    %4315 = vrot.lane.b32.xlu0 %v4251, 64
    %v4316 = vpop.permute.xlu0 %4315
    %4317 = vrot.lane.b32.xlu0 %v4252, 64
    %v4318 = vpop.permute.xlu0 %4317
    %4319 = vrot.lane.b32.xlu0 %v4253, 64
    %v4320 = vpop.permute.xlu0 %4319
    %v4329 = vrot.slane %v4249, 1
    %v4330 = vrot.slane %v4253, 1
    %v4339 = vrot.slane %v4249, 2
    %v4340 = vrot.slane %v4253, 2
    %4341 = vrot.lane.b32.xlu0 %v4290, 64
    %v4342 = vpop.permute.xlu0 %4341
    %4343 = vrot.lane.b32.xlu0 %v4291, 64
    %v4344 = vpop.permute.xlu0 %4343
    %4345 = vrot.lane.b32.xlu0 %v4292, 64
    %v4346 = vpop.permute.xlu0 %4345
    %4347 = vrot.lane.b32.xlu0 %v4339, 64
    %v4348 = vpop.permute.xlu0 %4347
    %4349 = vrot.lane.b32.xlu0 %v4293, 64
    %v4350 = vpop.permute.xlu0 %4349
    %4351 = vrot.lane.b32.xlu0 %v4294, 64
    %v4352 = vpop.permute.xlu0 %4351
    %4353 = vrot.lane.b32.xlu0 %v4295, 64
    %v4354 = vpop.permute.xlu0 %4353
    %4355 = vrot.lane.b32.xlu0 %v4340, 64
    %v4356 = vpop.permute.xlu0 %4355
    %4365 = vrot.lane.b32.xlu0 %v4329, 64
    %v4366 = vpop.permute.xlu0 %4365
    %4367 = vrot.lane.b32.xlu0 %v4330, 64
    %v4368 = vpop.permute.xlu0 %4367
    %v4371 = vsel %vm2835, %v4245, %v4269
    %v4372 = vsel %vm2835, %v4246, %v4271
    %v4373 = vsel %vm2835, %v4247, %v4273
    %v4374 = vsel %vm2835, %v4248, %v4275
    %v4375 = vsel %vm2835, %v4250, %v4277
    %v4376 = vsel %vm2835, %v4251, %v4279
    %v4377 = vsel %vm2835, %v4252, %v4281
    %v4378 = vsel %vm2835, %v4289, %v4306
    %v4379 = vsel %vm2835, %v4290, %v4308
    %v4380 = vsel %vm2835, %v4291, %v4310
    %v4381 = vsel %vm2835, %v4292, %v4312
    %v4382 = vsel %vm2835, %v4289, %v4314
    %v4383 = vsel %vm2835, %v4293, %v4316
    %v4384 = vsel %vm2835, %v4294, %v4318
    %v4385 = vsel %vm2835, %v4295, %v4320
    %v4386 = vsel %vm2835, %v4262, %v4342
    %v4387 = vsel %vm2835, %v4263, %v4344
    %v4388 = vsel %vm2835, %v4264, %v4346
    %v4389 = vsel %vm2835, %v4329, %v4348
    %v4390 = vsel %vm2835, %v4265, %v4350
    %v4391 = vsel %vm2835, %v4266, %v4352
    %v4392 = vsel %vm2835, %v4267, %v4354
    %v4393 = vsel %vm2835, %v4330, %v4356
    %v4394 = vsel %vm2835, %v4249, %v4366
    %v4395 = vsel %vm2835, %v4253, %v4368
    %v4421 = vcombine.low %v4371, %v4378
    %v4422 = vcombine.low %v4386, %v4373
    %v4424 = vunpack.c.l.s4 1983009808
    %v4425 = vunpack.c.0.s8 %v4424
    %v4426 = vlaneseq
    %v4427 = vshrl.u32 %v4426, 7
    %v4428 = vsub.s32 %v4425, %v4427
    %v4429 = vrot.slane %v4421, %v4428
    %v4431 = vunpack.c.l.s4 1983009808
    %v4432 = vunpack.c.0.s8 %v4431
    %v4433 = vlaneseq
    %v4434 = vshrl.u32 %v4433, 7
    %v4435 = vsub.s32 %v4432, %v4434
    %v4436 = vrot.slane %v4422, %v4435
    %v4437 = vcombine.low %v4429, %v4436
    %v4439 = vunpack.c.l.s4 1983009808
    %v4440 = vunpack.c.0.s8 %v4439
    %v4441 = vlaneseq
    %v4442 = vshrl.u32 %v4441, 7
    %v4443 = vsub.s32 %v4440, %v4442
    %v4444 = vrot.slane %v4291, %v4443
    %v4445 = vcombine.low %v4372, %v4379
    %v4446 = vcombine.low %v4387, %v4374
    %v4448 = vunpack.c.l.s4 1983009808
    %v4449 = vunpack.c.0.s8 %v4448
    %v4450 = vlaneseq
    %v4451 = vshrl.u32 %v4450, 7
    %v4452 = vsub.s32 %v4449, %v4451
    %v4453 = vrot.slane %v4445, %v4452
    %v4455 = vunpack.c.l.s4 1983009808
    %v4456 = vunpack.c.0.s8 %v4455
    %v4457 = vlaneseq
    %v4458 = vshrl.u32 %v4457, 7
    %v4459 = vsub.s32 %v4456, %v4458
    %v4460 = vrot.slane %v4446, %v4459
    %v4461 = vcombine.low %v4453, %v4460
    %v4463 = vunpack.c.l.s4 1983009808
    %v4464 = vunpack.c.0.s8 %v4463
    %v4465 = vlaneseq
    %v4466 = vshrl.u32 %v4465, 7
    %v4467 = vsub.s32 %v4464, %v4466
    %v4468 = vrot.slane %v4292, %v4467
    %v4469 = vcombine.low %v4373, %v4380
    %v4470 = vcombine.low %v4388, %v4394
    %v4472 = vunpack.c.l.s4 1983009808
    %v4473 = vunpack.c.0.s8 %v4472
    %v4474 = vlaneseq
    %v4475 = vshrl.u32 %v4474, 7
    %v4476 = vsub.s32 %v4473, %v4475
    %v4477 = vrot.slane %v4469, %v4476
    %v4479 = vunpack.c.l.s4 1983009808
    %v4480 = vunpack.c.0.s8 %v4479
    %v4481 = vlaneseq
    %v4482 = vshrl.u32 %v4481, 7
    %v4483 = vsub.s32 %v4480, %v4482
    %v4484 = vrot.slane %v4470, %v4483
    %v4485 = vcombine.low %v4477, %v4484
    %v4487 = vunpack.c.l.s4 1983009808
    %v4488 = vunpack.c.0.s8 %v4487
    %v4489 = vlaneseq
    %v4490 = vshrl.u32 %v4489, 7
    %v4491 = vsub.s32 %v4488, %v4490
    %v4492 = vrot.slane %v4339, %v4491
    %v4493 = vcombine.low %v4374, %v4381
    %v4494 = vcombine.low %v4389, %v4371
    %v4496 = vunpack.c.l.s4 1983009808
    %v4497 = vunpack.c.0.s8 %v4496
    %v4498 = vlaneseq
    %v4499 = vshrl.u32 %v4498, 7
    %v4500 = vsub.s32 %v4497, %v4499
    %v4501 = vrot.slane %v4493, %v4500
    %v4503 = vunpack.c.l.s4 1983009808
    %v4504 = vunpack.c.0.s8 %v4503
    %v4505 = vlaneseq
    %v4506 = vshrl.u32 %v4505, 7
    %v4507 = vsub.s32 %v4504, %v4506
    %v4508 = vrot.slane %v4494, %v4507
    %v4509 = vcombine.low %v4501, %v4508
    %v4511 = vunpack.c.l.s4 1983009808
    %v4512 = vunpack.c.0.s8 %v4511
    %v4513 = vlaneseq
    %v4514 = vshrl.u32 %v4513, 7
    %v4515 = vsub.s32 %v4512, %v4514
    %v4516 = vrot.slane %v4289, %v4515
    %v4517 = vcombine.low %v4371, %v4382
    %v4518 = vcombine.low %v4390, %v4376
    %v4520 = vunpack.c.l.s4 1983009808
    %v4521 = vunpack.c.0.s8 %v4520
    %v4522 = vlaneseq
    %v4523 = vshrl.u32 %v4522, 7
    %v4524 = vsub.s32 %v4521, %v4523
    %v4525 = vrot.slane %v4517, %v4524
    %v4527 = vunpack.c.l.s4 1983009808
    %v4528 = vunpack.c.0.s8 %v4527
    %v4529 = vlaneseq
    %v4530 = vshrl.u32 %v4529, 7
    %v4531 = vsub.s32 %v4528, %v4530
    %v4532 = vrot.slane %v4518, %v4531
    %v4533 = vcombine.low %v4525, %v4532
    %v4535 = vunpack.c.l.s4 1983009808
    %v4536 = vunpack.c.0.s8 %v4535
    %v4537 = vlaneseq
    %v4538 = vshrl.u32 %v4537, 7
    %v4539 = vsub.s32 %v4536, %v4538
    %v4540 = vrot.slane %v4294, %v4539
    %v4541 = vcombine.low %v4375, %v4383
    %v4542 = vcombine.low %v4391, %v4377
    %v4544 = vunpack.c.l.s4 1983009808
    %v4545 = vunpack.c.0.s8 %v4544
    %v4546 = vlaneseq
    %v4547 = vshrl.u32 %v4546, 7
    %v4548 = vsub.s32 %v4545, %v4547
    %v4549 = vrot.slane %v4541, %v4548
    %v4551 = vunpack.c.l.s4 1983009808
    %v4552 = vunpack.c.0.s8 %v4551
    %v4553 = vlaneseq
    %v4554 = vshrl.u32 %v4553, 7
    %v4555 = vsub.s32 %v4552, %v4554
    %v4556 = vrot.slane %v4542, %v4555
    %v4557 = vcombine.low %v4549, %v4556
    %v4559 = vunpack.c.l.s4 1983009808
    %v4560 = vunpack.c.0.s8 %v4559
    %v4561 = vlaneseq
    %v4562 = vshrl.u32 %v4561, 7
    %v4563 = vsub.s32 %v4560, %v4562
    %v4564 = vrot.slane %v4295, %v4563
    %v4565 = vcombine.low %v4376, %v4384
    %v4566 = vcombine.low %v4392, %v4395
    %v4568 = vunpack.c.l.s4 1983009808
    %v4569 = vunpack.c.0.s8 %v4568
    %v4570 = vlaneseq
    %v4571 = vshrl.u32 %v4570, 7
    %v4572 = vsub.s32 %v4569, %v4571
    %v4573 = vrot.slane %v4565, %v4572
    %v4575 = vunpack.c.l.s4 1983009808
    %v4576 = vunpack.c.0.s8 %v4575
    %v4577 = vlaneseq
    %v4578 = vshrl.u32 %v4577, 7
    %v4579 = vsub.s32 %v4576, %v4578
    %v4580 = vrot.slane %v4566, %v4579
    %v4581 = vcombine.low %v4573, %v4580
    %v4583 = vunpack.c.l.s4 1983009808
    %v4584 = vunpack.c.0.s8 %v4583
    %v4585 = vlaneseq
    %v4586 = vshrl.u32 %v4585, 7
    %v4587 = vsub.s32 %v4584, %v4586
    %v4588 = vrot.slane %v4340, %v4587
    %v4589 = vcombine.low %v4377, %v4385
    %v4590 = vcombine.low %v4393, %v4371
    %v4592 = vunpack.c.l.s4 1983009808
    %v4593 = vunpack.c.0.s8 %v4592
    %v4594 = vlaneseq
    %v4595 = vshrl.u32 %v4594, 7
    %v4596 = vsub.s32 %v4593, %v4595
    %v4597 = vrot.slane %v4589, %v4596
    %v4599 = vunpack.c.l.s4 1983009808
    %v4600 = vunpack.c.0.s8 %v4599
    %v4601 = vlaneseq
    %v4602 = vshrl.u32 %v4601, 7
    %v4603 = vsub.s32 %v4600, %v4602
    %v4604 = vrot.slane %v4590, %v4603
    %v4605 = vcombine.low %v4597, %v4604
    %v4606 = vld [vmem:[#allocation14] sm:$0xff]
    %v4607 = vld [vmem:[#allocation14 + $0x8] sm:$0xff]
    %v4608 = vld [vmem:[#allocation14 + $0x10] sm:$0xff]
    %v4609 = vld [vmem:[#allocation14 + $0x18] sm:$0xff]
    %v4610 = vld [vmem:[#allocation14 + $0x20] sm:$0xff]
    %v4611 = vld [vmem:[#allocation14 + $0x28] sm:$0xff]
    %v4612 = vld [vmem:[#allocation14 + $0x30] sm:$0xff]
    %v4613 = vld [vmem:[#allocation14 + $0x38] sm:$0xff]
    %v4614 = vld [vmem:[#allocation14 + $0x40] sm:$0xff]
    %v4615 = vld [vmem:[#allocation14 + $0x48] sm:$0xff]
    %v4616 = vld [vmem:[#allocation14 + $0x50] sm:$0xff]
    %v4617 = vld [vmem:[#allocation14 + $0x58] sm:$0xff]
    %v4618 = vld [vmem:[#allocation14 + $0x60] sm:$0xff]
    %v4619 = vld [vmem:[#allocation14 + $0x68] sm:$0xff]
    %v4620 = vld [vmem:[#allocation14 + $0x70] sm:$0xff]
    %v4621 = vld [vmem:[#allocation14 + $0x78] sm:$0xff]
    %v4622 = vld [vmem:[#allocation14 + $0x80] sm:$0xff]
    %v4623 = vld [vmem:[#allocation14 + $0x88] sm:$0xff]
    %v4624 = vld [vmem:[#allocation14 + $0x90] sm:$0xff]
    %v4625 = vld [vmem:[#allocation14 + $0x98] sm:$0xff]
    %v4626 = vld [vmem:[#allocation14 + $0xa0] sm:$0xff]
    %v4627 = vld [vmem:[#allocation14 + $0xa8] sm:$0xff]
    %v4628 = vld [vmem:[#allocation14 + $0xb0] sm:$0xff]
    %v4629 = vld [vmem:[#allocation14 + $0xb8] sm:$0xff]
    %v4630 = vld [vmem:[#allocation14 + $0xc0] sm:$0xff]
    %v4631 = vld [vmem:[#allocation14 + $0xc8] sm:$0xff]
    %v4632 = vld [vmem:[#allocation14 + $0xd0] sm:$0xff]
    %v4633 = vld [vmem:[#allocation14 + $0xd8] sm:$0xff]
    %v4634 = vld [vmem:[#allocation14 + $0xe0] sm:$0xff]
    %v4635 = vld [vmem:[#allocation14 + $0xe8] sm:$0xff]
    %v4636 = vld [vmem:[#allocation14 + $0xf0] sm:$0xff]
    %v4637 = vld [vmem:[#allocation14 + $0xf8] sm:$0xff]
    %v4638 = vld [vmem:[#allocation14 + $0x100] sm:$0xff]
    %v4639 = vld [vmem:[#allocation14 + $0x108] sm:$0xff]
    %v4640 = vld [vmem:[#allocation14 + $0x110] sm:$0xff]
    %v4641 = vld [vmem:[#allocation14 + $0x118] sm:$0xff]
    %v4642 = vld [vmem:[#allocation14 + $0x120] sm:$0xff]
    %v4643 = vld [vmem:[#allocation14 + $0x128] sm:$0xff]
    %v4644 = vld [vmem:[#allocation14 + $0x130] sm:$0xff]
    %v4645 = vld [vmem:[#allocation14 + $0x138] sm:$0xff]
    %v4646 = vld [vmem:[#allocation14 + $0x140] sm:$0xff]
    %v4647 = vld [vmem:[#allocation14 + $0x148] sm:$0xff]
    %v4648 = vld [vmem:[#allocation14 + $0x150] sm:$0xff]
    %v4649 = vld [vmem:[#allocation14 + $0x158] sm:$0xff]
    %v4650 = vld [vmem:[#allocation14 + $0x160] sm:$0xff]
    %v4651 = vld [vmem:[#allocation14 + $0x168] sm:$0xff]
    %v4652 = vld [vmem:[#allocation14 + $0x170] sm:$0xff]
    %v4653 = vld [vmem:[#allocation14 + $0x178] sm:$0xff]
    %v4654 = vld [vmem:[#allocation14 + $0x180] sm:$0xff]
    %v4655 = vld [vmem:[#allocation14 + $0x188] sm:$0xff]
    %v4656 = vld [vmem:[#allocation14 + $0x190] sm:$0xff]
    %v4657 = vld [vmem:[#allocation14 + $0x198] sm:$0xff]
    %v4658 = vld [vmem:[#allocation14 + $0x1a0] sm:$0xff]
    %v4659 = vld [vmem:[#allocation14 + $0x1a8] sm:$0xff]
    %v4660 = vld [vmem:[#allocation14 + $0x1b0] sm:$0xff]
    %v4661 = vld [vmem:[#allocation14 + $0x1b8] sm:$0xff]
    %v4662 = vld [vmem:[#allocation14 + $0x1c0] sm:$0xff]
    %v4663 = vld [vmem:[#allocation14 + $0x1c8] sm:$0xff]
    %v4664 = vld [vmem:[#allocation14 + $0x1d0] sm:$0xff]
    %v4665 = vld [vmem:[#allocation14 + $0x1d8] sm:$0xff]
    %v4666 = vld [vmem:[#allocation14 + $0x1e0] sm:$0xff]
    %v4667 = vld [vmem:[#allocation14 + $0x1e8] sm:$0xff]
    %v4668 = vld [vmem:[#allocation14 + $0x1f0] sm:$0xff]
    %v4669 = vld [vmem:[#allocation14 + $0x1f8] sm:$0xff]
    %v4670 = vld [vmem:[#allocation14 + $0x200] sm:$0xff]
    %v4671 = vld [vmem:[#allocation14 + $0x208] sm:$0xff]
    %v4672 = vld [vmem:[#allocation14 + $0x210] sm:$0xff]
    %v4673 = vld [vmem:[#allocation14 + $0x218] sm:$0xff]
    %v4674 = vld [vmem:[#allocation14 + $0x220] sm:$0xff]
    %v4675 = vld [vmem:[#allocation14 + $0x228] sm:$0xff]
    %v4676 = vld [vmem:[#allocation14 + $0x230] sm:$0xff]
    %v4677 = vld [vmem:[#allocation14 + $0x238] sm:$0xff]
    %v4678 = vld [vmem:[#allocation16] sm:$0x1]
    %v4680 = vlaneseq
    %v4681 = vshrl.u32 %v4680, 7
    %v4682 = vsub.s32 0, %v4681
    %v4683 = vrot.slane %v4678, %v4682
    %v4685 = vcombine.low %v4437, %v4461
    %v4686 = vcombine.high %v4437, %v4461
    %v4687 = vcombine.low %v4485, %v4509
    %v4688 = vcombine.high %v4485, %v4509
    %v4690 = vunpack.c.l.s4 1983009808
    %v4691 = vunpack.c.0.s8 %v4690
    %v4692 = vlaneseq
    %v4693 = vshrl.u32 %v4692, 7
    %v4694 = vsub.s32 %v4691, %v4693
    %v4695 = vrot.slane %v4685, %v4694
    %v4697 = vunpack.c.l.s4 1983009808
    %v4698 = vunpack.c.0.s8 %v4697
    %v4699 = vlaneseq
    %v4700 = vshrl.u32 %v4699, 7
    %v4701 = vsub.s32 %v4698, %v4700
    %v4702 = vrot.slane %v4686, %v4701
    %v4704 = vunpack.c.l.s4 1983009808
    %v4705 = vunpack.c.0.s8 %v4704
    %v4706 = vlaneseq
    %v4707 = vshrl.u32 %v4706, 7
    %v4708 = vsub.s32 %v4705, %v4707
    %v4709 = vrot.slane %v4687, %v4708
    %v4711 = vunpack.c.l.s4 1983009808
    %v4712 = vunpack.c.0.s8 %v4711
    %v4713 = vlaneseq
    %v4714 = vshrl.u32 %v4713, 7
    %v4715 = vsub.s32 %v4712, %v4714
    %v4716 = vrot.slane %v4688, %v4715
    %v4717 = vcombine.low %v4695, %v4709
    %v4718 = vcombine.high %v4695, %v4709
    %v4719 = vcombine.low %v4702, %v4716
    %v4720 = vcombine.high %v4702, %v4716
    %v4721 = vcombine.low %v4444, %v4468
    %v4722 = vcombine.low %v4492, %v4516
    %v4724 = vunpack.c.l.s4 1983009808
    %v4725 = vunpack.c.0.s8 %v4724
    %v4726 = vlaneseq
    %v4727 = vshrl.u32 %v4726, 7
    %v4728 = vsub.s32 %v4725, %v4727
    %v4729 = vrot.slane %v4721, %v4728
    %v4731 = vunpack.c.l.s4 1983009808
    %v4732 = vunpack.c.0.s8 %v4731
    %v4733 = vlaneseq
    %v4734 = vshrl.u32 %v4733, 7
    %v4735 = vsub.s32 %v4732, %v4734
    %v4736 = vrot.slane %v4722, %v4735
    %v4737 = vcombine.low %v4729, %v4736
    %v4738 = vcombine.low %v4533, %v4557
    %v4739 = vcombine.high %v4533, %v4557
    %v4740 = vcombine.low %v4581, %v4605
    %v4741 = vcombine.high %v4581, %v4605
    %v4743 = vunpack.c.l.s4 1983009808
    %v4744 = vunpack.c.0.s8 %v4743
    %v4745 = vlaneseq
    %v4746 = vshrl.u32 %v4745, 7
    %v4747 = vsub.s32 %v4744, %v4746
    %v4748 = vrot.slane %v4738, %v4747
    %v4750 = vunpack.c.l.s4 1983009808
    %v4751 = vunpack.c.0.s8 %v4750
    %v4752 = vlaneseq
    %v4753 = vshrl.u32 %v4752, 7
    %v4754 = vsub.s32 %v4751, %v4753
    %v4755 = vrot.slane %v4739, %v4754
    %v4757 = vunpack.c.l.s4 1983009808
    %v4758 = vunpack.c.0.s8 %v4757
    %v4759 = vlaneseq
    %v4760 = vshrl.u32 %v4759, 7
    %v4761 = vsub.s32 %v4758, %v4760
    %v4762 = vrot.slane %v4740, %v4761
    %v4764 = vunpack.c.l.s4 1983009808
    %v4765 = vunpack.c.0.s8 %v4764
    %v4766 = vlaneseq
    %v4767 = vshrl.u32 %v4766, 7
    %v4768 = vsub.s32 %v4765, %v4767
    %v4769 = vrot.slane %v4741, %v4768
    %v4770 = vcombine.low %v4748, %v4762
    %v4771 = vcombine.high %v4748, %v4762
    %v4772 = vcombine.low %v4755, %v4769
    %v4773 = vcombine.high %v4755, %v4769
    %v4774 = vcombine.low %v4540, %v4564
    %v4775 = vcombine.low %v4588, %v4516
    %v4777 = vunpack.c.l.s4 1983009808
    %v4778 = vunpack.c.0.s8 %v4777
    %v4779 = vlaneseq
    %v4780 = vshrl.u32 %v4779, 7
    %v4781 = vsub.s32 %v4778, %v4780
    %v4782 = vrot.slane %v4774, %v4781
    %v4784 = vunpack.c.l.s4 1983009808
    %v4785 = vunpack.c.0.s8 %v4784
    %v4786 = vlaneseq
    %v4787 = vshrl.u32 %v4786, 7
    %v4788 = vsub.s32 %v4785, %v4787
    %v4789 = vrot.slane %v4775, %v4788
    %v4790 = vcombine.low %v4782, %v4789
    %v4799 = vsel %vm2835, %v4737, 0
    %v4801 = vsel %vm2835, %v4790, 0
    %4803 = vmatprep.subr.mxu0 0.0
    %4804 = vmatpush1.msra.mxu0 %v4606
    %4805 = vmatprep.subr.mxu0 0.0
    %4806 = vmatpush1.msra.mxu0 %v4607
    %4807 = vmatprep.subr.mxu0 0.0
    %4808 = vmatpush1.msra.mxu0 %v4608
    %4809 = vmatprep.subr.mxu0 0.0
    %4810 = vmatpush1.msra.mxu0 %v4609
    %4811 = vmatprep.subr.mxu0 0.0
    %4812 = vmatpush1.msra.mxu0 %v4610
    %4813 = vmatprep.subr.mxu0 0.0
    %4814 = vmatpush1.msra.mxu0 %v4611
    %4815 = vmatprep.subr.mxu0 0.0
    %4816 = vmatpush1.msra.mxu0 %v4612
    %4817 = vmatprep.subr.mxu0 0.0
    %4818 = vmatpush1.msra.mxu0 %v4613
    %4819 = vmatprep.subr.mxu0 0.0
    %4820 = vmatpush1.msra.mxu0 %v4614
    %4821 = vmatprep.subr.mxu0 0.0
    %4822 = vmatpush1.msra.mxu0 %v4615
    %4823 = vmatprep.subr.mxu0 0.0
    %4824 = vmatpush1.msra.mxu0 %v4616
    %4825 = vmatprep.subr.mxu0 0.0
    %4826 = vmatpush1.msra.mxu0 %v4617
    %4827 = vmatprep.subr.mxu0 0.0
    %4828 = vmatpush1.msra.mxu0 %v4618
    %4829 = vmatprep.subr.mxu0 0.0
    %4830 = vmatpush1.msra.mxu0 %v4619
    %4831 = vmatprep.subr.mxu0 0.0
    %4832 = vmatpush1.msra.mxu0 %v4620
    %4833 = vmatprep.subr.mxu0 0.0
    %4834 = vmatpush1.msra.mxu0 %v4621
    %4835 = vmatprep.subr.mxu0 0.0
    %4836 = vmatpush1.msra.mxu0 %v4622
    %4837 = vmatprep.subr.mxu0 0.0
    %4838 = vmatpush1.msra.mxu0 %v4623
    %4839 = vmatprep.subr.mxu0 0.0
    %4840 = vmatpush1.msra.mxu0 %v4624
    %4841 = vmatprep.subr.mxu0 0.0
    %4842 = vmatpush1.msra.mxu0 %v4625
    %4843 = vmatprep.subr.mxu0 0.0
    %4844 = vmatpush1.msra.mxu0 %v4626
    %4845 = vmatprep.subr.mxu0 0.0
    %4846 = vmatpush1.msra.mxu0 %v4627
    %4847 = vmatprep.subr.mxu0 0.0
    %4848 = vmatpush1.msra.mxu0 %v4628
    %4849 = vmatprep.subr.mxu0 0.0
    %4850 = vmatpush1.msra.mxu0 %v4629
    %4851 = vmatprep.subr.mxu0 0.0
    %4852 = vmatpush1.msra.mxu0 %v4630
    %4853 = vmatprep.subr.mxu0 0.0
    %4854 = vmatpush1.msra.mxu0 %v4631
    %4855 = vmatprep.subr.mxu0 0.0
    %4856 = vmatpush1.msra.mxu0 %v4632
    %4857 = vmatprep.subr.mxu0 0.0
    %4858 = vmatpush1.msra.mxu0 %v4633
    %4859 = vmatprep.subr.mxu0 0.0
    %4860 = vmatpush1.msra.mxu0 %v4634
    %4861 = vmatprep.subr.mxu0 0.0
    %4862 = vmatpush1.msra.mxu0 %v4635
    %4863 = vmatprep.subr.mxu0 0.0
    %4864 = vmatpush1.msra.mxu0 %v4636
    %4865 = vmatprep.subr.mxu0 0.0
    %4866 = vmatpush1.msra.mxu0 %v4637
    %4867 = vmatprep.mubr.f32.mxu0 %v4718
    %4868 = vmatmul.mubr.f32.gmra.mrb[0].mxu0 %v4717
    %v4869 = vpop.f32.mrb[0].mxu0
    %v4870 = vadd.f32 %v4683, %v4869
    %v4871 = vpop.f32.mrb[0].mxu0
    %4872 = vmatprep.mubr.f32.mxu0 %v4771
    %4873 = vmatmul.mubr.f32.gmra.mrb[0].mxu0 %v4770
    %v4874 = vpop.f32.mrb[0].mxu0
    %v4875 = vadd.f32 %v4683, %v4874
    %v4876 = vpop.f32.mrb[0].mxu0
    %4877 = vdwg.mxu0
    %4878 = vmatprep.subr.mxu0 0.0
    %4879 = vmatpush1.msra.mxu0 %v4638
    %4880 = vmatprep.subr.mxu0 0.0
    %4881 = vmatpush1.msra.mxu0 %v4639
    %4882 = vmatprep.subr.mxu0 0.0
    %4883 = vmatpush1.msra.mxu0 %v4640
    %4884 = vmatprep.subr.mxu0 0.0
    %4885 = vmatpush1.msra.mxu0 %v4641
    %4886 = vmatprep.subr.mxu0 0.0
    %4887 = vmatpush1.msra.mxu0 %v4642
    %4888 = vmatprep.subr.mxu0 0.0
    %4889 = vmatpush1.msra.mxu0 %v4643
    %4890 = vmatprep.subr.mxu0 0.0
    %4891 = vmatpush1.msra.mxu0 %v4644
    %4892 = vmatprep.subr.mxu0 0.0
    %4893 = vmatpush1.msra.mxu0 %v4645
    %4894 = vmatprep.subr.mxu0 0.0
    %4895 = vmatpush1.msra.mxu0 %v4646
    %4896 = vmatprep.subr.mxu0 0.0
    %4897 = vmatpush1.msra.mxu0 %v4647
    %4898 = vmatprep.subr.mxu0 0.0
    %4899 = vmatpush1.msra.mxu0 %v4648
    %4900 = vmatprep.subr.mxu0 0.0
    %4901 = vmatpush1.msra.mxu0 %v4649
    %4902 = vmatprep.subr.mxu0 0.0
    %4903 = vmatpush1.msra.mxu0 %v4650
    %4904 = vmatprep.subr.mxu0 0.0
    %4905 = vmatpush1.msra.mxu0 %v4651
    %4906 = vmatprep.subr.mxu0 0.0
    %4907 = vmatpush1.msra.mxu0 %v4652
    %4908 = vmatprep.subr.mxu0 0.0
    %4909 = vmatpush1.msra.mxu0 %v4653
    %4910 = vmatprep.subr.mxu0 0.0
    %4911 = vmatpush1.msra.mxu0 %v4654
    %4912 = vmatprep.subr.mxu0 0.0
    %4913 = vmatpush1.msra.mxu0 %v4655
    %4914 = vmatprep.subr.mxu0 0.0
    %4915 = vmatpush1.msra.mxu0 %v4656
    %4916 = vmatprep.subr.mxu0 0.0
    %4917 = vmatpush1.msra.mxu0 %v4657
    %4918 = vmatprep.subr.mxu0 0.0
    %4919 = vmatpush1.msra.mxu0 %v4658
    %4920 = vmatprep.subr.mxu0 0.0
    %4921 = vmatpush1.msra.mxu0 %v4659
    %4922 = vmatprep.subr.mxu0 0.0
    %4923 = vmatpush1.msra.mxu0 %v4660
    %4924 = vmatprep.subr.mxu0 0.0
    %4925 = vmatpush1.msra.mxu0 %v4661
    %4926 = vmatprep.subr.mxu0 0.0
    %4927 = vmatpush1.msra.mxu0 %v4662
    %4928 = vmatprep.subr.mxu0 0.0
    %4929 = vmatpush1.msra.mxu0 %v4663
    %4930 = vmatprep.subr.mxu0 0.0
    %4931 = vmatpush1.msra.mxu0 %v4664
    %4932 = vmatprep.subr.mxu0 0.0
    %4933 = vmatpush1.msra.mxu0 %v4665
    %4934 = vmatprep.subr.mxu0 0.0
    %4935 = vmatpush1.msra.mxu0 %v4666
    %4936 = vmatprep.subr.mxu0 0.0
    %4937 = vmatpush1.msra.mxu0 %v4667
    %4938 = vmatprep.subr.mxu0 0.0
    %4939 = vmatpush1.msra.mxu0 %v4668
    %4940 = vmatprep.subr.mxu0 0.0
    %4941 = vmatpush1.msra.mxu0 %v4669
    %4942 = vmatprep.mubr.f32.mxu0 %v4720
    %4943 = vmatmul.mubr.f32.gmra.mrb[0].mxu0 %v4719
    %v4944 = vpop.f32.mrb[0].mxu0
    %v4945 = vadd.f32 %v4870, %v4944
    %v4946 = vpop.f32.mrb[0].mxu0
    %4947 = vmatprep.mubr.f32.mxu0 %v4773
    %4948 = vmatmul.mubr.f32.gmra.mrb[0].mxu0 %v4772
    %v4949 = vpop.f32.mrb[0].mxu0
    %v4950 = vadd.f32 %v4875, %v4949
    %v4951 = vpop.f32.mrb[0].mxu0
    %4952 = vdwg.mxu0
    %4953 = vmatprep.subr.mxu0 0.0
    %4954 = vmatpush1.msra.mxu0 %v4670
    %4955 = vmatprep.subr.mxu0 0.0
    %4956 = vmatpush1.msra.mxu0 %v4671
    %4957 = vmatprep.subr.mxu0 0.0
    %4958 = vmatpush1.msra.mxu0 %v4672
    %4959 = vmatprep.subr.mxu0 0.0
    %4960 = vmatpush1.msra.mxu0 %v4673
    %4961 = vmatprep.subr.mxu0 0.0
    %4962 = vmatpush1.msra.mxu0 %v4674
    %4963 = vmatprep.subr.mxu0 0.0
    %4964 = vmatpush1.msra.mxu0 %v4675
    %4965 = vmatprep.subr.mxu0 0.0
    %4966 = vmatpush1.msra.mxu0 %v4676
    %4967 = vmatprep.subr.mxu0 0.0
    %4968 = vmatpush1.msra.mxu0 %v4677
    %4969 = vmatprep.subr.mxu0 0.0
    %4970 = vmatpush1.msra.mxu0 0.0
    %4971 = vmatprep.subr.mxu0 0.0
    %4972 = vmatpush1.msra.mxu0 0.0
    %4973 = vmatprep.subr.mxu0 0.0
    %4974 = vmatpush1.msra.mxu0 0.0
    %4975 = vmatprep.subr.mxu0 0.0
    %4976 = vmatpush1.msra.mxu0 0.0
    %4977 = vmatprep.subr.mxu0 0.0
    %4978 = vmatpush1.msra.mxu0 0.0
    %4979 = vmatprep.subr.mxu0 0.0
    %4980 = vmatpush1.msra.mxu0 0.0
    %4981 = vmatprep.subr.mxu0 0.0
    %4982 = vmatpush1.msra.mxu0 0.0
    %4983 = vmatprep.subr.mxu0 0.0
    %4984 = vmatpush1.msra.mxu0 0.0
    %4985 = vmatprep.subr.mxu0 0.0
    %4986 = vmatpush1.msra.mxu0 0.0
    %4987 = vmatprep.subr.mxu0 0.0
    %4988 = vmatpush1.msra.mxu0 0.0
    %4989 = vmatprep.subr.mxu0 0.0
    %4990 = vmatpush1.msra.mxu0 0.0
    %4991 = vmatprep.subr.mxu0 0.0
    %4992 = vmatpush1.msra.mxu0 0.0
    %4993 = vmatprep.subr.mxu0 0.0
    %4994 = vmatpush1.msra.mxu0 0.0
    %4995 = vmatprep.subr.mxu0 0.0
    %4996 = vmatpush1.msra.mxu0 0.0
    %4997 = vmatprep.subr.mxu0 0.0
    %4998 = vmatpush1.msra.mxu0 0.0
    %4999 = vmatprep.subr.mxu0 0.0
    %5000 = vmatpush1.msra.mxu0 0.0
    %5001 = vmatprep.subr.mxu0 0.0
    %5002 = vmatpush1.msra.mxu0 0.0
    %5003 = vmatprep.subr.mxu0 0.0
    %5004 = vmatpush1.msra.mxu0 0.0
    %5005 = vmatprep.subr.mxu0 0.0
    %5006 = vmatpush1.msra.mxu0 0.0
    %5007 = vmatprep.subr.mxu0 0.0
    %5008 = vmatpush1.msra.mxu0 0.0
    %5009 = vmatprep.subr.mxu0 0.0
    %5010 = vmatpush1.msra.mxu0 0.0
    %5011 = vmatprep.subr.mxu0 0.0
    %5012 = vmatpush1.msra.mxu0 0.0
    %5013 = vmatprep.subr.mxu0 0.0
    %5014 = vmatpush1.msra.mxu0 0.0
    %5015 = vmatprep.subr.mxu0 0.0
    %5016 = vmatpush1.msra.mxu0 0.0
    %5017 = vmatprep.mubr.f32.mxu0 0.0
    %5018 = vmatmul.mubr.f32.gmra.mrb[0].mxu0 %v4799
    %v5019 = vpop.f32.mrb[0].mxu0
    %v5020 = vadd.f32 %v4945, %v5019
    %v5021 = vpop.f32.mrb[0].mxu0
    %5022 = vmatprep.mubr.f32.mxu0 0.0
    %5023 = vmatmul.mubr.f32.gmra.mrb[0].mxu0 %v4801
    %v5024 = vpop.f32.mrb[0].mxu0
    %v5025 = vadd.f32 %v4950, %v5024
    %v5026 = vpop.f32.mrb[0].mxu0
    %5027 = vdwg.mxu0
    %v5028 = vmax.f32 %v5020, 0.0
    %v5029 = vmax.f32 %v5025, 0.0
    %v5032 = vcombine.high %v5028, %v5028
    %v5034 = vunpack.c.l.s4 1983009808
    %v5035 = vunpack.c.0.s8 %v5034
    %v5036 = vlaneseq
    %v5037 = vshrl.u32 %v5036, 7
    %v5038 = vsub.s32 %v5035, %v5037
    %v5039 = vrot.slane %v5028, %v5038
    %v5041 = vunpack.c.l.s4 1983009808
    %v5042 = vunpack.c.0.s8 %v5041
    %v5043 = vlaneseq
    %v5044 = vshrl.u32 %v5043, 7
    %v5045 = vsub.s32 %v5042, %v5044
    %v5046 = vrot.slane %v5032, %v5045
    %v5047 = vcombine.high %v5039, %v5039
    %v5048 = vcombine.high %v5046, %v5046
    %v5049 = vcombine.high %v5029, %v5029
    %v5051 = vunpack.c.l.s4 1983009808
    %v5052 = vunpack.c.0.s8 %v5051
    %v5053 = vlaneseq
    %v5054 = vshrl.u32 %v5053, 7
    %v5055 = vsub.s32 %v5052, %v5054
    %v5056 = vrot.slane %v5029, %v5055
    %v5058 = vunpack.c.l.s4 1983009808
    %v5059 = vunpack.c.0.s8 %v5058
    %v5060 = vlaneseq
    %v5061 = vshrl.u32 %v5060, 7
    %v5062 = vsub.s32 %v5059, %v5061
    %v5063 = vrot.slane %v5049, %v5062
    %v5064 = vcombine.high %v5056, %v5056
    %v5065 = vcombine.high %v5063, %v5063
    %v5074 = vsel %vm273, %v5039, -inf
    %v5075 = vrot.slane %v5074, 4
    %v5076 = vmax.f32 %v5074, %v5075
    %v5077 = vrot.slane %v5076, 2
    %v5078 = vmax.f32 %v5076, %v5077
    %v5079 = vrot.slane %v5078, 1
    %v5080 = vmax.f32 %v5078, %v5079
    %v5081 = vsel %vm273, %v5047, -inf
    %v5082 = vrot.slane %v5081, 4
    %v5083 = vmax.f32 %v5081, %v5082
    %v5084 = vrot.slane %v5083, 2
    %v5085 = vmax.f32 %v5083, %v5084
    %v5086 = vrot.slane %v5085, 1
    %v5087 = vmax.f32 %v5085, %v5086
    %v5088 = vsel %vm273, %v5046, -inf
    %v5089 = vrot.slane %v5088, 4
    %v5090 = vmax.f32 %v5088, %v5089
    %v5091 = vrot.slane %v5090, 2
    %v5092 = vmax.f32 %v5090, %v5091
    %v5093 = vrot.slane %v5092, 1
    %v5094 = vmax.f32 %v5092, %v5093
    %v5095 = vsel %vm273, %v5048, -inf
    %v5096 = vrot.slane %v5095, 4
    %v5097 = vmax.f32 %v5095, %v5096
    %v5098 = vrot.slane %v5097, 2
    %v5099 = vmax.f32 %v5097, %v5098
    %v5100 = vrot.slane %v5099, 1
    %v5101 = vmax.f32 %v5099, %v5100
    %v5102 = vsel %vm273, %v5056, -inf
    %v5103 = vrot.slane %v5102, 4
    %v5104 = vmax.f32 %v5102, %v5103
    %v5105 = vrot.slane %v5104, 2
    %v5106 = vmax.f32 %v5104, %v5105
    %v5107 = vrot.slane %v5106, 1
    %v5108 = vmax.f32 %v5106, %v5107
    %v5109 = vsel %vm273, %v5064, -inf
    %v5110 = vrot.slane %v5109, 4
    %v5111 = vmax.f32 %v5109, %v5110
    %v5112 = vrot.slane %v5111, 2
    %v5113 = vmax.f32 %v5111, %v5112
    %v5114 = vrot.slane %v5113, 1
    %v5115 = vmax.f32 %v5113, %v5114
    %v5116 = vsel %vm273, %v5063, -inf
    %v5117 = vrot.slane %v5116, 4
    %v5118 = vmax.f32 %v5116, %v5117
    %v5119 = vrot.slane %v5118, 2
    %v5120 = vmax.f32 %v5118, %v5119
    %v5121 = vrot.slane %v5120, 1
    %v5122 = vmax.f32 %v5120, %v5121
    %v5123 = vsel %vm273, %v5065, -inf
    %v5124 = vrot.slane %v5123, 4
    %v5125 = vmax.f32 %v5123, %v5124
    %v5126 = vrot.slane %v5125, 2
    %v5127 = vmax.f32 %v5125, %v5126
    %v5128 = vrot.slane %v5127, 1
    %v5129 = vmax.f32 %v5127, %v5128
    %v5130 = vld [vmem:[#allocation17] sm:$0xff]
    %v5131 = vld [vmem:[#allocation17 + $0x8] sm:$0xff]
    %v5132 = vld [vmem:[#allocation17 + $0x10] sm:$0xff]
    %v5133 = vld [vmem:[#allocation17 + $0x18] sm:$0xff]
    %v5134 = vld [vmem:[#allocation17 + $0x20] sm:$0xff]
    %v5135 = vld [vmem:[#allocation17 + $0x28] sm:$0xff]
    %v5136 = vld [vmem:[#allocation17 + $0x30] sm:$0xff]
    %v5137 = vld [vmem:[#allocation17 + $0x38] sm:$0xff]
    %v5138 = vld [vmem:[#allocation17 + $0x40] sm:$0xff]
    %v5139 = vld [vmem:[#allocation17 + $0x48] sm:$0xff]
    %v5140 = vld [vmem:[#allocation17 + $0x50] sm:$0xff]
    %v5141 = vld [vmem:[#allocation17 + $0x58] sm:$0xff]
    %v5142 = vld [vmem:[#allocation17 + $0x60] sm:$0xff]
    %v5143 = vld [vmem:[#allocation17 + $0x68] sm:$0xff]
    %v5144 = vld [vmem:[#allocation17 + $0x70] sm:$0xff]
    %v5145 = vld [vmem:[#allocation17 + $0x78] sm:$0xff]
    %v5146 = vld [vmem:[#allocation17 + $0x80] sm:$0xff]
    %v5147 = vld [vmem:[#allocation17 + $0x88] sm:$0xff]
    %v5148 = vld [vmem:[#allocation17 + $0x90] sm:$0xff]
    %v5149 = vld [vmem:[#allocation17 + $0x98] sm:$0xff]
    %v5150 = vld [vmem:[#allocation17 + $0xa0] sm:$0xff]
    %v5151 = vld [vmem:[#allocation17 + $0xa8] sm:$0xff]
    %v5152 = vld [vmem:[#allocation17 + $0xb0] sm:$0xff]
    %v5153 = vld [vmem:[#allocation17 + $0xb8] sm:$0xff]
    %v5154 = vld [vmem:[#allocation17 + $0xc0] sm:$0xff]
    %v5155 = vld [vmem:[#allocation17 + $0xc8] sm:$0xff]
    %v5156 = vld [vmem:[#allocation17 + $0xd0] sm:$0xff]
    %v5157 = vld [vmem:[#allocation17 + $0xd8] sm:$0xff]
    %v5158 = vld [vmem:[#allocation17 + $0xe0] sm:$0xff]
    %v5159 = vld [vmem:[#allocation17 + $0xe8] sm:$0xff]
    %v5160 = vld [vmem:[#allocation17 + $0xf0] sm:$0xff]
    %v5161 = vld [vmem:[#allocation17 + $0xf8] sm:$0xff]
    %v5162 = vld [vmem:[#allocation17 + $0x100] sm:$0xff]
    %v5163 = vld [vmem:[#allocation17 + $0x108] sm:$0xff]
    %v5164 = vld [vmem:[#allocation17 + $0x110] sm:$0xff]
    %v5165 = vld [vmem:[#allocation17 + $0x118] sm:$0xff]
    %v5166 = vld [vmem:[#allocation17 + $0x120] sm:$0xff]
    %v5167 = vld [vmem:[#allocation17 + $0x128] sm:$0xff]
    %v5168 = vld [vmem:[#allocation17 + $0x130] sm:$0xff]
    %v5169 = vld [vmem:[#allocation17 + $0x138] sm:$0xff]
    %v5170 = vld [vmem:[#allocation17 + $0x140] sm:$0xff]
    %v5171 = vld [vmem:[#allocation17 + $0x148] sm:$0xff]
    %v5172 = vld [vmem:[#allocation17 + $0x150] sm:$0xff]
    %v5173 = vld [vmem:[#allocation17 + $0x158] sm:$0xff]
    %v5174 = vld [vmem:[#allocation17 + $0x160] sm:$0xff]
    %v5175 = vld [vmem:[#allocation17 + $0x168] sm:$0xff]
    %v5176 = vld [vmem:[#allocation17 + $0x170] sm:$0xff]
    %v5177 = vld [vmem:[#allocation17 + $0x178] sm:$0xff]
    %v5178 = vld [vmem:[#allocation17 + $0x180] sm:$0xff]
    %v5179 = vld [vmem:[#allocation17 + $0x188] sm:$0xff]
    %v5180 = vld [vmem:[#allocation17 + $0x190] sm:$0xff]
    %v5181 = vld [vmem:[#allocation17 + $0x198] sm:$0xff]
    %v5182 = vld [vmem:[#allocation17 + $0x1a0] sm:$0xff]
    %v5183 = vld [vmem:[#allocation17 + $0x1a8] sm:$0xff]
    %v5184 = vld [vmem:[#allocation17 + $0x1b0] sm:$0xff]
    %v5185 = vld [vmem:[#allocation17 + $0x1b8] sm:$0xff]
    %v5186 = vld [vmem:[#allocation17 + $0x1c0] sm:$0xff]
    %v5187 = vld [vmem:[#allocation17 + $0x1c8] sm:$0xff]
    %v5188 = vld [vmem:[#allocation17 + $0x1d0] sm:$0xff]
    %v5189 = vld [vmem:[#allocation17 + $0x1d8] sm:$0xff]
    %v5190 = vld [vmem:[#allocation17 + $0x1e0] sm:$0xff]
    %v5191 = vld [vmem:[#allocation17 + $0x1e8] sm:$0xff]
    %v5192 = vld [vmem:[#allocation17 + $0x1f0] sm:$0xff]
    %v5193 = vld [vmem:[#allocation17 + $0x1f8] sm:$0xff]
    %s5194 = scalar_lea.vmem [#allocation17], 512
    %v5195 = vld [vmem:[%s5194] sm:$0xff]
    %v5196 = vld [vmem:[%s5194 + $0x8] sm:$0xff]
    %v5197 = vld [vmem:[%s5194 + $0x10] sm:$0xff]
    %v5198 = vld [vmem:[%s5194 + $0x18] sm:$0xff]
    %v5199 = vld [vmem:[%s5194 + $0x20] sm:$0xff]
    %v5200 = vld [vmem:[%s5194 + $0x28] sm:$0xff]
    %v5201 = vld [vmem:[%s5194 + $0x30] sm:$0xff]
    %v5202 = vld [vmem:[%s5194 + $0x38] sm:$0xff]
    %v5203 = vld [vmem:[%s5194 + $0x40] sm:$0xff]
    %v5204 = vld [vmem:[%s5194 + $0x48] sm:$0xff]
    %v5205 = vld [vmem:[%s5194 + $0x50] sm:$0xff]
    %v5206 = vld [vmem:[%s5194 + $0x58] sm:$0xff]
    %v5207 = vld [vmem:[%s5194 + $0x60] sm:$0xff]
    %v5208 = vld [vmem:[%s5194 + $0x68] sm:$0xff]
    %v5209 = vld [vmem:[%s5194 + $0x70] sm:$0xff]
    %v5210 = vld [vmem:[%s5194 + $0x78] sm:$0xff]
    %v5211 = vld [vmem:[%s5194 + $0x80] sm:$0xff]
    %v5212 = vld [vmem:[%s5194 + $0x88] sm:$0xff]
    %v5213 = vld [vmem:[%s5194 + $0x90] sm:$0xff]
    %v5214 = vld [vmem:[%s5194 + $0x98] sm:$0xff]
    %v5215 = vld [vmem:[%s5194 + $0xa0] sm:$0xff]
    %v5216 = vld [vmem:[%s5194 + $0xa8] sm:$0xff]
    %v5217 = vld [vmem:[%s5194 + $0xb0] sm:$0xff]
    %v5218 = vld [vmem:[%s5194 + $0xb8] sm:$0xff]
    %v5219 = vld [vmem:[%s5194 + $0xc0] sm:$0xff]
    %v5220 = vld [vmem:[%s5194 + $0xc8] sm:$0xff]
    %v5221 = vld [vmem:[%s5194 + $0xd0] sm:$0xff]
    %v5222 = vld [vmem:[%s5194 + $0xd8] sm:$0xff]
    %v5223 = vld [vmem:[%s5194 + $0xe0] sm:$0xff]
    %v5224 = vld [vmem:[%s5194 + $0xe8] sm:$0xff]
    %v5225 = vld [vmem:[%s5194 + $0xf0] sm:$0xff]
    %v5226 = vld [vmem:[%s5194 + $0xf8] sm:$0xff]
    %v5227 = vld [vmem:[%s5194 + $0x100] sm:$0xff]
    %v5228 = vld [vmem:[%s5194 + $0x108] sm:$0xff]
    %v5229 = vld [vmem:[%s5194 + $0x110] sm:$0xff]
    %v5230 = vld [vmem:[%s5194 + $0x118] sm:$0xff]
    %v5231 = vld [vmem:[%s5194 + $0x120] sm:$0xff]
    %v5232 = vld [vmem:[%s5194 + $0x128] sm:$0xff]
    %v5233 = vld [vmem:[%s5194 + $0x130] sm:$0xff]
    %v5234 = vld [vmem:[%s5194 + $0x138] sm:$0xff]
    %v5235 = vld [vmem:[%s5194 + $0x140] sm:$0xff]
    %v5236 = vld [vmem:[%s5194 + $0x148] sm:$0xff]
    %v5237 = vld [vmem:[%s5194 + $0x150] sm:$0xff]
    %v5238 = vld [vmem:[%s5194 + $0x158] sm:$0xff]
    %v5239 = vld [vmem:[%s5194 + $0x160] sm:$0xff]
    %v5240 = vld [vmem:[%s5194 + $0x168] sm:$0xff]
    %v5241 = vld [vmem:[%s5194 + $0x170] sm:$0xff]
    %v5242 = vld [vmem:[%s5194 + $0x178] sm:$0xff]
    %v5243 = vld [vmem:[%s5194 + $0x180] sm:$0xff]
    %v5244 = vld [vmem:[%s5194 + $0x188] sm:$0xff]
    %v5245 = vld [vmem:[%s5194 + $0x190] sm:$0xff]
    %v5246 = vld [vmem:[%s5194 + $0x198] sm:$0xff]
    %v5247 = vld [vmem:[%s5194 + $0x1a0] sm:$0xff]
    %v5248 = vld [vmem:[%s5194 + $0x1a8] sm:$0xff]
    %v5249 = vld [vmem:[%s5194 + $0x1b0] sm:$0xff]
    %v5250 = vld [vmem:[%s5194 + $0x1b8] sm:$0xff]
    %v5251 = vld [vmem:[%s5194 + $0x1c0] sm:$0xff]
    %v5252 = vld [vmem:[%s5194 + $0x1c8] sm:$0xff]
    %v5253 = vld [vmem:[%s5194 + $0x1d0] sm:$0xff]
    %v5254 = vld [vmem:[%s5194 + $0x1d8] sm:$0xff]
    %v5255 = vld [vmem:[%s5194 + $0x1e0] sm:$0xff]
    %v5256 = vld [vmem:[%s5194 + $0x1e8] sm:$0xff]
    %v5257 = vld [vmem:[%s5194 + $0x1f0] sm:$0xff]
    %v5258 = vld [vmem:[%s5194 + $0x1f8] sm:$0xff]
    %v5261 = vsel %vm2485, %v5115, %v5087
    %5263 = vmatprep.subr.mxu0 %v5196
    %5264 = vmatpush1.msra.mxu0 %v5195
    %5265 = vmatprep.subr.mxu0 %v5200
    %5266 = vmatpush1.msra.mxu0 %v5199
    %5267 = vmatprep.subr.mxu0 %v5204
    %5268 = vmatpush1.msra.mxu0 %v5203
    %5269 = vmatprep.subr.mxu0 %v5208
    %5270 = vmatpush1.msra.mxu0 %v5207
    %5271 = vmatprep.subr.mxu0 %v5212
    %5272 = vmatpush1.msra.mxu0 %v5211
    %5273 = vmatprep.subr.mxu0 %v5216
    %5274 = vmatpush1.msra.mxu0 %v5215
    %5275 = vmatprep.subr.mxu0 %v5220
    %5276 = vmatpush1.msra.mxu0 %v5219
    %5277 = vmatprep.subr.mxu0 %v5224
    %5278 = vmatpush1.msra.mxu0 %v5223
    %5279 = vmatprep.subr.mxu0 %v5228
    %5280 = vmatpush1.msra.mxu0 %v5227
    %5281 = vmatprep.subr.mxu0 %v5232
    %5282 = vmatpush1.msra.mxu0 %v5231
    %5283 = vmatprep.subr.mxu0 %v5236
    %5284 = vmatpush1.msra.mxu0 %v5235
    %5285 = vmatprep.subr.mxu0 %v5240
    %5286 = vmatpush1.msra.mxu0 %v5239
    %5287 = vmatprep.subr.mxu0 %v5244
    %5288 = vmatpush1.msra.mxu0 %v5243
    %5289 = vmatprep.subr.mxu0 %v5248
    %5290 = vmatpush1.msra.mxu0 %v5247
    %5291 = vmatprep.subr.mxu0 %v5252
    %5292 = vmatpush1.msra.mxu0 %v5251
    %5293 = vmatprep.subr.mxu0 %v5256
    %5294 = vmatpush1.msra.mxu0 %v5255
    %5295 = vmatprep.subr.mxu0 0.0
    %5296 = vmatpush1.msra.mxu0 0.0
    %5297 = vmatprep.subr.mxu0 0.0
    %5298 = vmatpush1.msra.mxu0 0.0
    %5299 = vmatprep.subr.mxu0 0.0
    %5300 = vmatpush1.msra.mxu0 0.0
    %5301 = vmatprep.subr.mxu0 0.0
    %5302 = vmatpush1.msra.mxu0 0.0
    %5303 = vmatprep.subr.mxu0 0.0
    %5304 = vmatpush1.msra.mxu0 0.0
    %5305 = vmatprep.subr.mxu0 0.0
    %5306 = vmatpush1.msra.mxu0 0.0
    %5307 = vmatprep.subr.mxu0 0.0
    %5308 = vmatpush1.msra.mxu0 0.0
    %5309 = vmatprep.subr.mxu0 0.0
    %5310 = vmatpush1.msra.mxu0 0.0
    %5311 = vmatprep.subr.mxu0 0.0
    %5312 = vmatpush1.msra.mxu0 0.0
    %5313 = vmatprep.subr.mxu0 0.0
    %5314 = vmatpush1.msra.mxu0 0.0
    %5315 = vmatprep.subr.mxu0 0.0
    %5316 = vmatpush1.msra.mxu0 0.0
    %5317 = vmatprep.subr.mxu0 0.0
    %5318 = vmatpush1.msra.mxu0 0.0
    %5319 = vmatprep.subr.mxu0 0.0
    %5320 = vmatpush1.msra.mxu0 0.0
    %5321 = vmatprep.subr.mxu0 0.0
    %5322 = vmatpush1.msra.mxu0 0.0
    %5323 = vmatprep.subr.mxu0 0.0
    %5324 = vmatpush1.msra.mxu0 0.0
    %5325 = vmatprep.subr.mxu0 0.0
    %5326 = vmatpush1.msra.mxu0 0.0
    %5327 = vmatprep.mubr.f32.mxu0 0.0
    %5328 = vmatmul.mubr.f32.gmra.mrb[0].mxu0 %v5261
    %v5329 = vpop.f32.mrb[0].mxu0
    %v5330 = vadd.f32 0.0, %v5329
    %v5331 = vpop.f32.mrb[0].mxu0
    %v5332 = vadd.f32 0.0, %v5331
    %5333 = vdwg.mxu0
    %5334 = vmatprep.subr.mxu0 %v5198
    %5335 = vmatpush1.msra.mxu0 %v5197
    %5336 = vmatprep.subr.mxu0 %v5202
    %5337 = vmatpush1.msra.mxu0 %v5201
    %5338 = vmatprep.subr.mxu0 %v5206
    %5339 = vmatpush1.msra.mxu0 %v5205
    %5340 = vmatprep.subr.mxu0 %v5210
    %5341 = vmatpush1.msra.mxu0 %v5209
    %5342 = vmatprep.subr.mxu0 %v5214
    %5343 = vmatpush1.msra.mxu0 %v5213
    %5344 = vmatprep.subr.mxu0 %v5218
    %5345 = vmatpush1.msra.mxu0 %v5217
    %5346 = vmatprep.subr.mxu0 %v5222
    %5347 = vmatpush1.msra.mxu0 %v5221
    %5348 = vmatprep.subr.mxu0 %v5226
    %5349 = vmatpush1.msra.mxu0 %v5225
    %5350 = vmatprep.subr.mxu0 %v5230
    %5351 = vmatpush1.msra.mxu0 %v5229
    %5352 = vmatprep.subr.mxu0 %v5234
    %5353 = vmatpush1.msra.mxu0 %v5233
    %5354 = vmatprep.subr.mxu0 %v5238
    %5355 = vmatpush1.msra.mxu0 %v5237
    %5356 = vmatprep.subr.mxu0 %v5242
    %5357 = vmatpush1.msra.mxu0 %v5241
    %5358 = vmatprep.subr.mxu0 %v5246
    %5359 = vmatpush1.msra.mxu0 %v5245
    %5360 = vmatprep.subr.mxu0 %v5250
    %5361 = vmatpush1.msra.mxu0 %v5249
    %5362 = vmatprep.subr.mxu0 %v5254
    %5363 = vmatpush1.msra.mxu0 %v5253
    %5364 = vmatprep.subr.mxu0 %v5258
    %5365 = vmatpush1.msra.mxu0 %v5257
    %5366 = vmatprep.subr.mxu0 0.0
    %5367 = vmatpush1.msra.mxu0 0.0
    %5368 = vmatprep.subr.mxu0 0.0
    %5369 = vmatpush1.msra.mxu0 0.0
    %5370 = vmatprep.subr.mxu0 0.0
    %5371 = vmatpush1.msra.mxu0 0.0
    %5372 = vmatprep.subr.mxu0 0.0
    %5373 = vmatpush1.msra.mxu0 0.0
    %5374 = vmatprep.subr.mxu0 0.0
    %5375 = vmatpush1.msra.mxu0 0.0
    %5376 = vmatprep.subr.mxu0 0.0
    %5377 = vmatpush1.msra.mxu0 0.0
    %5378 = vmatprep.subr.mxu0 0.0
    %5379 = vmatpush1.msra.mxu0 0.0
    %5380 = vmatprep.subr.mxu0 0.0
    %5381 = vmatpush1.msra.mxu0 0.0
    %5382 = vmatprep.subr.mxu0 0.0
    %5383 = vmatpush1.msra.mxu0 0.0
    %5384 = vmatprep.subr.mxu0 0.0
    %5385 = vmatpush1.msra.mxu0 0.0
    %5386 = vmatprep.subr.mxu0 0.0
    %5387 = vmatpush1.msra.mxu0 0.0
    %5388 = vmatprep.subr.mxu0 0.0
    %5389 = vmatpush1.msra.mxu0 0.0
    %5390 = vmatprep.subr.mxu0 0.0
    %5391 = vmatpush1.msra.mxu0 0.0
    %5392 = vmatprep.subr.mxu0 0.0
    %5393 = vmatpush1.msra.mxu0 0.0
    %5394 = vmatprep.subr.mxu0 0.0
    %5395 = vmatpush1.msra.mxu0 0.0
    %5396 = vmatprep.subr.mxu0 0.0
    %5397 = vmatpush1.msra.mxu0 0.0
    %5398 = vmatprep.mubr.f32.mxu0 0.0
    %5399 = vmatmul.mubr.f32.gmra.mrb[0].mxu0 %v5261
    %v5400 = vpop.f32.mrb[0].mxu0
    %v5401 = vadd.f32 0.0, %v5400
    %v5402 = vpop.f32.mrb[0].mxu0
    %v5403 = vadd.f32 0.0, %v5402
    %5404 = vdwg.mxu0
    %v5407 = vsel %vm2485, %v5108, %v5080
    %5409 = vmatprep.subr.mxu0 %v5131
    %5410 = vmatpush1.msra.mxu0 %v5130
    %5411 = vmatprep.subr.mxu0 %v5135
    %5412 = vmatpush1.msra.mxu0 %v5134
    %5413 = vmatprep.subr.mxu0 %v5139
    %5414 = vmatpush1.msra.mxu0 %v5138
    %5415 = vmatprep.subr.mxu0 %v5143
    %5416 = vmatpush1.msra.mxu0 %v5142
    %5417 = vmatprep.subr.mxu0 %v5147
    %5418 = vmatpush1.msra.mxu0 %v5146
    %5419 = vmatprep.subr.mxu0 %v5151
    %5420 = vmatpush1.msra.mxu0 %v5150
    %5421 = vmatprep.subr.mxu0 %v5155
    %5422 = vmatpush1.msra.mxu0 %v5154
    %5423 = vmatprep.subr.mxu0 %v5159
    %5424 = vmatpush1.msra.mxu0 %v5158
    %5425 = vmatprep.subr.mxu0 %v5163
    %5426 = vmatpush1.msra.mxu0 %v5162
    %5427 = vmatprep.subr.mxu0 %v5167
    %5428 = vmatpush1.msra.mxu0 %v5166
    %5429 = vmatprep.subr.mxu0 %v5171
    %5430 = vmatpush1.msra.mxu0 %v5170
    %5431 = vmatprep.subr.mxu0 %v5175
    %5432 = vmatpush1.msra.mxu0 %v5174
    %5433 = vmatprep.subr.mxu0 %v5179
    %5434 = vmatpush1.msra.mxu0 %v5178
    %5435 = vmatprep.subr.mxu0 %v5183
    %5436 = vmatpush1.msra.mxu0 %v5182
    %5437 = vmatprep.subr.mxu0 %v5187
    %5438 = vmatpush1.msra.mxu0 %v5186
    %5439 = vmatprep.subr.mxu0 %v5191
    %5440 = vmatpush1.msra.mxu0 %v5190
    %5441 = vmatprep.subr.mxu0 0.0
    %5442 = vmatpush1.msra.mxu0 0.0
    %5443 = vmatprep.subr.mxu0 0.0
    %5444 = vmatpush1.msra.mxu0 0.0
    %5445 = vmatprep.subr.mxu0 0.0
    %5446 = vmatpush1.msra.mxu0 0.0
    %5447 = vmatprep.subr.mxu0 0.0
    %5448 = vmatpush1.msra.mxu0 0.0
    %5449 = vmatprep.subr.mxu0 0.0
    %5450 = vmatpush1.msra.mxu0 0.0
    %5451 = vmatprep.subr.mxu0 0.0
    %5452 = vmatpush1.msra.mxu0 0.0
    %5453 = vmatprep.subr.mxu0 0.0
    %5454 = vmatpush1.msra.mxu0 0.0
    %5455 = vmatprep.subr.mxu0 0.0
    %5456 = vmatpush1.msra.mxu0 0.0
    %5457 = vmatprep.subr.mxu0 0.0
    %5458 = vmatpush1.msra.mxu0 0.0
    %5459 = vmatprep.subr.mxu0 0.0
    %5460 = vmatpush1.msra.mxu0 0.0
    %5461 = vmatprep.subr.mxu0 0.0
    %5462 = vmatpush1.msra.mxu0 0.0
    %5463 = vmatprep.subr.mxu0 0.0
    %5464 = vmatpush1.msra.mxu0 0.0
    %5465 = vmatprep.subr.mxu0 0.0
    %5466 = vmatpush1.msra.mxu0 0.0
    %5467 = vmatprep.subr.mxu0 0.0
    %5468 = vmatpush1.msra.mxu0 0.0
    %5469 = vmatprep.subr.mxu0 0.0
    %5470 = vmatpush1.msra.mxu0 0.0
    %5471 = vmatprep.subr.mxu0 0.0
    %5472 = vmatpush1.msra.mxu0 0.0
    %5473 = vmatprep.mubr.f32.mxu0 0.0
    %5474 = vmatmul.mubr.f32.gmra.mrb[0].mxu0 %v5407
    %v5475 = vpop.f32.mrb[0].mxu0
    %v5476 = vadd.f32 %v5330, %v5475
    %v5477 = vpop.f32.mrb[0].mxu0
    %v5478 = vadd.f32 %v5332, %v5477
    %5479 = vdwg.mxu0
    %5480 = vmatprep.subr.mxu0 %v5133
    %5481 = vmatpush1.msra.mxu0 %v5132
    %5482 = vmatprep.subr.mxu0 %v5137
    %5483 = vmatpush1.msra.mxu0 %v5136
    %5484 = vmatprep.subr.mxu0 %v5141
    %5485 = vmatpush1.msra.mxu0 %v5140
    %5486 = vmatprep.subr.mxu0 %v5145
    %5487 = vmatpush1.msra.mxu0 %v5144
    %5488 = vmatprep.subr.mxu0 %v5149
    %5489 = vmatpush1.msra.mxu0 %v5148
    %5490 = vmatprep.subr.mxu0 %v5153
    %5491 = vmatpush1.msra.mxu0 %v5152
    %5492 = vmatprep.subr.mxu0 %v5157
    %5493 = vmatpush1.msra.mxu0 %v5156
    %5494 = vmatprep.subr.mxu0 %v5161
    %5495 = vmatpush1.msra.mxu0 %v5160
    %5496 = vmatprep.subr.mxu0 %v5165
    %5497 = vmatpush1.msra.mxu0 %v5164
    %5498 = vmatprep.subr.mxu0 %v5169
    %5499 = vmatpush1.msra.mxu0 %v5168
    %5500 = vmatprep.subr.mxu0 %v5173
    %5501 = vmatpush1.msra.mxu0 %v5172
    %5502 = vmatprep.subr.mxu0 %v5177
    %5503 = vmatpush1.msra.mxu0 %v5176
    %5504 = vmatprep.subr.mxu0 %v5181
    %5505 = vmatpush1.msra.mxu0 %v5180
    %5506 = vmatprep.subr.mxu0 %v5185
    %5507 = vmatpush1.msra.mxu0 %v5184
    %5508 = vmatprep.subr.mxu0 %v5189
    %5509 = vmatpush1.msra.mxu0 %v5188
    %5510 = vmatprep.subr.mxu0 %v5193
    %5511 = vmatpush1.msra.mxu0 %v5192
    %5512 = vmatprep.subr.mxu0 0.0
    %5513 = vmatpush1.msra.mxu0 0.0
    %5514 = vmatprep.subr.mxu0 0.0
    %5515 = vmatpush1.msra.mxu0 0.0
    %5516 = vmatprep.subr.mxu0 0.0
    %5517 = vmatpush1.msra.mxu0 0.0
    %5518 = vmatprep.subr.mxu0 0.0
    %5519 = vmatpush1.msra.mxu0 0.0
    %5520 = vmatprep.subr.mxu0 0.0
    %5521 = vmatpush1.msra.mxu0 0.0
    %5522 = vmatprep.subr.mxu0 0.0
    %5523 = vmatpush1.msra.mxu0 0.0
    %5524 = vmatprep.subr.mxu0 0.0
    %5525 = vmatpush1.msra.mxu0 0.0
    %5526 = vmatprep.subr.mxu0 0.0
    %5527 = vmatpush1.msra.mxu0 0.0
    %5528 = vmatprep.subr.mxu0 0.0
    %5529 = vmatpush1.msra.mxu0 0.0
    %5530 = vmatprep.subr.mxu0 0.0
    %5531 = vmatpush1.msra.mxu0 0.0
    %5532 = vmatprep.subr.mxu0 0.0
    %5533 = vmatpush1.msra.mxu0 0.0
    %5534 = vmatprep.subr.mxu0 0.0
    %5535 = vmatpush1.msra.mxu0 0.0
    %5536 = vmatprep.subr.mxu0 0.0
    %5537 = vmatpush1.msra.mxu0 0.0
    %5538 = vmatprep.subr.mxu0 0.0
    %5539 = vmatpush1.msra.mxu0 0.0
    %5540 = vmatprep.subr.mxu0 0.0
    %5541 = vmatpush1.msra.mxu0 0.0
    %5542 = vmatprep.subr.mxu0 0.0
    %5543 = vmatpush1.msra.mxu0 0.0
    %5544 = vmatprep.mubr.f32.mxu0 0.0
    %5545 = vmatmul.mubr.f32.gmra.mrb[0].mxu0 %v5407
    %v5546 = vpop.f32.mrb[0].mxu0
    %v5547 = vadd.f32 %v5401, %v5546
    %v5548 = vpop.f32.mrb[0].mxu0
    %v5549 = vadd.f32 %v5403, %v5548
    %5550 = vdwg.mxu0
    %s5551 = scalar_lea.vmem [#allocation17], 1024
    %v5552 = vld [vmem:[%s5551] sm:$0xff]
    %v5553 = vld [vmem:[%s5551 + $0x8] sm:$0xff]
    %v5554 = vld [vmem:[%s5551 + $0x10] sm:$0xff]
    %v5555 = vld [vmem:[%s5551 + $0x18] sm:$0xff]
    %v5556 = vld [vmem:[%s5551 + $0x20] sm:$0xff]
    %v5557 = vld [vmem:[%s5551 + $0x28] sm:$0xff]
    %v5558 = vld [vmem:[%s5551 + $0x30] sm:$0xff]
    %v5559 = vld [vmem:[%s5551 + $0x38] sm:$0xff]
    %v5560 = vld [vmem:[%s5551 + $0x40] sm:$0xff]
    %v5561 = vld [vmem:[%s5551 + $0x48] sm:$0xff]
    %v5562 = vld [vmem:[%s5551 + $0x50] sm:$0xff]
    %v5563 = vld [vmem:[%s5551 + $0x58] sm:$0xff]
    %v5564 = vld [vmem:[%s5551 + $0x60] sm:$0xff]
    %v5565 = vld [vmem:[%s5551 + $0x68] sm:$0xff]
    %v5566 = vld [vmem:[%s5551 + $0x70] sm:$0xff]
    %v5567 = vld [vmem:[%s5551 + $0x78] sm:$0xff]
    %v5568 = vld [vmem:[%s5551 + $0x80] sm:$0xff]
    %v5569 = vld [vmem:[%s5551 + $0x88] sm:$0xff]
    %v5570 = vld [vmem:[%s5551 + $0x90] sm:$0xff]
    %v5571 = vld [vmem:[%s5551 + $0x98] sm:$0xff]
    %v5572 = vld [vmem:[%s5551 + $0xa0] sm:$0xff]
    %v5573 = vld [vmem:[%s5551 + $0xa8] sm:$0xff]
    %v5574 = vld [vmem:[%s5551 + $0xb0] sm:$0xff]
    %v5575 = vld [vmem:[%s5551 + $0xb8] sm:$0xff]
    %v5576 = vld [vmem:[%s5551 + $0xc0] sm:$0xff]
    %v5577 = vld [vmem:[%s5551 + $0xc8] sm:$0xff]
    %v5578 = vld [vmem:[%s5551 + $0xd0] sm:$0xff]
    %v5579 = vld [vmem:[%s5551 + $0xd8] sm:$0xff]
    %v5580 = vld [vmem:[%s5551 + $0xe0] sm:$0xff]
    %v5581 = vld [vmem:[%s5551 + $0xe8] sm:$0xff]
    %v5582 = vld [vmem:[%s5551 + $0xf0] sm:$0xff]
    %v5583 = vld [vmem:[%s5551 + $0xf8] sm:$0xff]
    %v5584 = vld [vmem:[%s5551 + $0x100] sm:$0xff]
    %v5585 = vld [vmem:[%s5551 + $0x108] sm:$0xff]
    %v5586 = vld [vmem:[%s5551 + $0x110] sm:$0xff]
    %v5587 = vld [vmem:[%s5551 + $0x118] sm:$0xff]
    %v5588 = vld [vmem:[%s5551 + $0x120] sm:$0xff]
    %v5589 = vld [vmem:[%s5551 + $0x128] sm:$0xff]
    %v5590 = vld [vmem:[%s5551 + $0x130] sm:$0xff]
    %v5591 = vld [vmem:[%s5551 + $0x138] sm:$0xff]
    %v5592 = vld [vmem:[%s5551 + $0x140] sm:$0xff]
    %v5593 = vld [vmem:[%s5551 + $0x148] sm:$0xff]
    %v5594 = vld [vmem:[%s5551 + $0x150] sm:$0xff]
    %v5595 = vld [vmem:[%s5551 + $0x158] sm:$0xff]
    %v5596 = vld [vmem:[%s5551 + $0x160] sm:$0xff]
    %v5597 = vld [vmem:[%s5551 + $0x168] sm:$0xff]
    %v5598 = vld [vmem:[%s5551 + $0x170] sm:$0xff]
    %v5599 = vld [vmem:[%s5551 + $0x178] sm:$0xff]
    %v5600 = vld [vmem:[%s5551 + $0x180] sm:$0xff]
    %v5601 = vld [vmem:[%s5551 + $0x188] sm:$0xff]
    %v5602 = vld [vmem:[%s5551 + $0x190] sm:$0xff]
    %v5603 = vld [vmem:[%s5551 + $0x198] sm:$0xff]
    %v5604 = vld [vmem:[%s5551 + $0x1a0] sm:$0xff]
    %v5605 = vld [vmem:[%s5551 + $0x1a8] sm:$0xff]
    %v5606 = vld [vmem:[%s5551 + $0x1b0] sm:$0xff]
    %v5607 = vld [vmem:[%s5551 + $0x1b8] sm:$0xff]
    %v5608 = vld [vmem:[%s5551 + $0x1c0] sm:$0xff]
    %v5609 = vld [vmem:[%s5551 + $0x1c8] sm:$0xff]
    %v5610 = vld [vmem:[%s5551 + $0x1d0] sm:$0xff]
    %v5611 = vld [vmem:[%s5551 + $0x1d8] sm:$0xff]
    %v5612 = vld [vmem:[%s5551 + $0x1e0] sm:$0xff]
    %v5613 = vld [vmem:[%s5551 + $0x1e8] sm:$0xff]
    %v5614 = vld [vmem:[%s5551 + $0x1f0] sm:$0xff]
    %v5615 = vld [vmem:[%s5551 + $0x1f8] sm:$0xff]
    %v5618 = vsel %vm2485, %v5122, %v5094
    %5620 = vmatprep.subr.mxu0 %v5553
    %5621 = vmatpush1.msra.mxu0 %v5552
    %5622 = vmatprep.subr.mxu0 %v5557
    %5623 = vmatpush1.msra.mxu0 %v5556
    %5624 = vmatprep.subr.mxu0 %v5561
    %5625 = vmatpush1.msra.mxu0 %v5560
    %5626 = vmatprep.subr.mxu0 %v5565
    %5627 = vmatpush1.msra.mxu0 %v5564
    %5628 = vmatprep.subr.mxu0 %v5569
    %5629 = vmatpush1.msra.mxu0 %v5568
    %5630 = vmatprep.subr.mxu0 %v5573
    %5631 = vmatpush1.msra.mxu0 %v5572
    %5632 = vmatprep.subr.mxu0 %v5577
    %5633 = vmatpush1.msra.mxu0 %v5576
    %5634 = vmatprep.subr.mxu0 %v5581
    %5635 = vmatpush1.msra.mxu0 %v5580
    %5636 = vmatprep.subr.mxu0 %v5585
    %5637 = vmatpush1.msra.mxu0 %v5584
    %5638 = vmatprep.subr.mxu0 %v5589
    %5639 = vmatpush1.msra.mxu0 %v5588
    %5640 = vmatprep.subr.mxu0 %v5593
    %5641 = vmatpush1.msra.mxu0 %v5592
    %5642 = vmatprep.subr.mxu0 %v5597
    %5643 = vmatpush1.msra.mxu0 %v5596
    %5644 = vmatprep.subr.mxu0 %v5601
    %5645 = vmatpush1.msra.mxu0 %v5600
    %5646 = vmatprep.subr.mxu0 %v5605
    %5647 = vmatpush1.msra.mxu0 %v5604
    %5648 = vmatprep.subr.mxu0 %v5609
    %5649 = vmatpush1.msra.mxu0 %v5608
    %5650 = vmatprep.subr.mxu0 %v5613
    %5651 = vmatpush1.msra.mxu0 %v5612
    %5652 = vmatprep.subr.mxu0 0.0
    %5653 = vmatpush1.msra.mxu0 0.0
    %5654 = vmatprep.subr.mxu0 0.0
    %5655 = vmatpush1.msra.mxu0 0.0
    %5656 = vmatprep.subr.mxu0 0.0
    %5657 = vmatpush1.msra.mxu0 0.0
    %5658 = vmatprep.subr.mxu0 0.0
    %5659 = vmatpush1.msra.mxu0 0.0
    %5660 = vmatprep.subr.mxu0 0.0
    %5661 = vmatpush1.msra.mxu0 0.0
    %5662 = vmatprep.subr.mxu0 0.0
    %5663 = vmatpush1.msra.mxu0 0.0
    %5664 = vmatprep.subr.mxu0 0.0
    %5665 = vmatpush1.msra.mxu0 0.0
    %5666 = vmatprep.subr.mxu0 0.0
    %5667 = vmatpush1.msra.mxu0 0.0
    %5668 = vmatprep.subr.mxu0 0.0
    %5669 = vmatpush1.msra.mxu0 0.0
    %5670 = vmatprep.subr.mxu0 0.0
    %5671 = vmatpush1.msra.mxu0 0.0
    %5672 = vmatprep.subr.mxu0 0.0
    %5673 = vmatpush1.msra.mxu0 0.0
    %5674 = vmatprep.subr.mxu0 0.0
    %5675 = vmatpush1.msra.mxu0 0.0
    %5676 = vmatprep.subr.mxu0 0.0
    %5677 = vmatpush1.msra.mxu0 0.0
    %5678 = vmatprep.subr.mxu0 0.0
    %5679 = vmatpush1.msra.mxu0 0.0
    %5680 = vmatprep.subr.mxu0 0.0
    %5681 = vmatpush1.msra.mxu0 0.0
    %5682 = vmatprep.subr.mxu0 0.0
    %5683 = vmatpush1.msra.mxu0 0.0
    %5684 = vmatprep.mubr.f32.mxu0 0.0
    %5685 = vmatmul.mubr.f32.gmra.mrb[0].mxu0 %v5618
    %v5686 = vpop.f32.mrb[0].mxu0
    %v5687 = vadd.f32 0.0, %v5686
    %v5688 = vpop.f32.mrb[0].mxu0
    %v5689 = vadd.f32 0.0, %v5688
    %5690 = vdwg.mxu0
    %5691 = vmatprep.subr.mxu0 %v5555
    %5692 = vmatpush1.msra.mxu0 %v5554
    %5693 = vmatprep.subr.mxu0 %v5559
    %5694 = vmatpush1.msra.mxu0 %v5558
    %5695 = vmatprep.subr.mxu0 %v5563
    %5696 = vmatpush1.msra.mxu0 %v5562
    %5697 = vmatprep.subr.mxu0 %v5567
    %5698 = vmatpush1.msra.mxu0 %v5566
    %5699 = vmatprep.subr.mxu0 %v5571
    %5700 = vmatpush1.msra.mxu0 %v5570
    %5701 = vmatprep.subr.mxu0 %v5575
    %5702 = vmatpush1.msra.mxu0 %v5574
    %5703 = vmatprep.subr.mxu0 %v5579
    %5704 = vmatpush1.msra.mxu0 %v5578
    %5705 = vmatprep.subr.mxu0 %v5583
    %5706 = vmatpush1.msra.mxu0 %v5582
    %5707 = vmatprep.subr.mxu0 %v5587
    %5708 = vmatpush1.msra.mxu0 %v5586
    %5709 = vmatprep.subr.mxu0 %v5591
    %5710 = vmatpush1.msra.mxu0 %v5590
    %5711 = vmatprep.subr.mxu0 %v5595
    %5712 = vmatpush1.msra.mxu0 %v5594
    %5713 = vmatprep.subr.mxu0 %v5599
    %5714 = vmatpush1.msra.mxu0 %v5598
    %5715 = vmatprep.subr.mxu0 %v5603
    %5716 = vmatpush1.msra.mxu0 %v5602
    %5717 = vmatprep.subr.mxu0 %v5607
    %5718 = vmatpush1.msra.mxu0 %v5606
    %5719 = vmatprep.subr.mxu0 %v5611
    %5720 = vmatpush1.msra.mxu0 %v5610
    %5721 = vmatprep.subr.mxu0 %v5615
    %5722 = vmatpush1.msra.mxu0 %v5614
    %5723 = vmatprep.subr.mxu0 0.0
    %5724 = vmatpush1.msra.mxu0 0.0
    %5725 = vmatprep.subr.mxu0 0.0
    %5726 = vmatpush1.msra.mxu0 0.0
    %5727 = vmatprep.subr.mxu0 0.0
    %5728 = vmatpush1.msra.mxu0 0.0
    %5729 = vmatprep.subr.mxu0 0.0
    %5730 = vmatpush1.msra.mxu0 0.0
    %5731 = vmatprep.subr.mxu0 0.0
    %5732 = vmatpush1.msra.mxu0 0.0
    %5733 = vmatprep.subr.mxu0 0.0
    %5734 = vmatpush1.msra.mxu0 0.0
    %5735 = vmatprep.subr.mxu0 0.0
    %5736 = vmatpush1.msra.mxu0 0.0
    %5737 = vmatprep.subr.mxu0 0.0
    %5738 = vmatpush1.msra.mxu0 0.0
    %5739 = vmatprep.subr.mxu0 0.0
    %5740 = vmatpush1.msra.mxu0 0.0
    %5741 = vmatprep.subr.mxu0 0.0
    %5742 = vmatpush1.msra.mxu0 0.0
    %5743 = vmatprep.subr.mxu0 0.0
    %5744 = vmatpush1.msra.mxu0 0.0
    %5745 = vmatprep.subr.mxu0 0.0
    %5746 = vmatpush1.msra.mxu0 0.0
    %5747 = vmatprep.subr.mxu0 0.0
    %5748 = vmatpush1.msra.mxu0 0.0
    %5749 = vmatprep.subr.mxu0 0.0
    %5750 = vmatpush1.msra.mxu0 0.0
    %5751 = vmatprep.subr.mxu0 0.0
    %5752 = vmatpush1.msra.mxu0 0.0
    %5753 = vmatprep.subr.mxu0 0.0
    %5754 = vmatpush1.msra.mxu0 0.0
    %5755 = vmatprep.mubr.f32.mxu0 0.0
    %5756 = vmatmul.mubr.f32.gmra.mrb[0].mxu0 %v5618
    %v5757 = vpop.f32.mrb[0].mxu0
    %v5758 = vadd.f32 0.0, %v5757
    %v5759 = vpop.f32.mrb[0].mxu0
    %v5760 = vadd.f32 0.0, %v5759
    %5761 = vdwg.mxu0
    %v5762 = vadd.f32 %v5476, %v5687
    %v5763 = vadd.f32 %v5478, %v5689
    %v5764 = vadd.f32 %v5547, %v5758
    %v5765 = vadd.f32 %v5549, %v5760
    %s5766 = scalar_lea.vmem [#allocation17], 1536
    %v5767 = vld [vmem:[%s5766] sm:$0xff]
    %v5768 = vld [vmem:[%s5766 + $0x8] sm:$0xff]
    %v5769 = vld [vmem:[%s5766 + $0x10] sm:$0xff]
    %v5770 = vld [vmem:[%s5766 + $0x18] sm:$0xff]
    %v5771 = vld [vmem:[%s5766 + $0x20] sm:$0xff]
    %v5772 = vld [vmem:[%s5766 + $0x28] sm:$0xff]
    %v5773 = vld [vmem:[%s5766 + $0x30] sm:$0xff]
    %v5774 = vld [vmem:[%s5766 + $0x38] sm:$0xff]
    %v5775 = vld [vmem:[%s5766 + $0x40] sm:$0xff]
    %v5776 = vld [vmem:[%s5766 + $0x48] sm:$0xff]
    %v5777 = vld [vmem:[%s5766 + $0x50] sm:$0xff]
    %v5778 = vld [vmem:[%s5766 + $0x58] sm:$0xff]
    %v5779 = vld [vmem:[%s5766 + $0x60] sm:$0xff]
    %v5780 = vld [vmem:[%s5766 + $0x68] sm:$0xff]
    %v5781 = vld [vmem:[%s5766 + $0x70] sm:$0xff]
    %v5782 = vld [vmem:[%s5766 + $0x78] sm:$0xff]
    %v5783 = vld [vmem:[%s5766 + $0x80] sm:$0xff]
    %v5784 = vld [vmem:[%s5766 + $0x88] sm:$0xff]
    %v5785 = vld [vmem:[%s5766 + $0x90] sm:$0xff]
    %v5786 = vld [vmem:[%s5766 + $0x98] sm:$0xff]
    %v5787 = vld [vmem:[%s5766 + $0xa0] sm:$0xff]
    %v5788 = vld [vmem:[%s5766 + $0xa8] sm:$0xff]
    %v5789 = vld [vmem:[%s5766 + $0xb0] sm:$0xff]
    %v5790 = vld [vmem:[%s5766 + $0xb8] sm:$0xff]
    %v5791 = vld [vmem:[%s5766 + $0xc0] sm:$0xff]
    %v5792 = vld [vmem:[%s5766 + $0xc8] sm:$0xff]
    %v5793 = vld [vmem:[%s5766 + $0xd0] sm:$0xff]
    %v5794 = vld [vmem:[%s5766 + $0xd8] sm:$0xff]
    %v5795 = vld [vmem:[%s5766 + $0xe0] sm:$0xff]
    %v5796 = vld [vmem:[%s5766 + $0xe8] sm:$0xff]
    %v5797 = vld [vmem:[%s5766 + $0xf0] sm:$0xff]
    %v5798 = vld [vmem:[%s5766 + $0xf8] sm:$0xff]
    %v5799 = vld [vmem:[%s5766 + $0x100] sm:$0xff]
    %v5800 = vld [vmem:[%s5766 + $0x108] sm:$0xff]
    %v5801 = vld [vmem:[%s5766 + $0x110] sm:$0xff]
    %v5802 = vld [vmem:[%s5766 + $0x118] sm:$0xff]
    %v5803 = vld [vmem:[%s5766 + $0x120] sm:$0xff]
    %v5804 = vld [vmem:[%s5766 + $0x128] sm:$0xff]
    %v5805 = vld [vmem:[%s5766 + $0x130] sm:$0xff]
    %v5806 = vld [vmem:[%s5766 + $0x138] sm:$0xff]
    %v5807 = vld [vmem:[%s5766 + $0x140] sm:$0xff]
    %v5808 = vld [vmem:[%s5766 + $0x148] sm:$0xff]
    %v5809 = vld [vmem:[%s5766 + $0x150] sm:$0xff]
    %v5810 = vld [vmem:[%s5766 + $0x158] sm:$0xff]
    %v5811 = vld [vmem:[%s5766 + $0x160] sm:$0xff]
    %v5812 = vld [vmem:[%s5766 + $0x168] sm:$0xff]
    %v5813 = vld [vmem:[%s5766 + $0x170] sm:$0xff]
    %v5814 = vld [vmem:[%s5766 + $0x178] sm:$0xff]
    %v5815 = vld [vmem:[%s5766 + $0x180] sm:$0xff]
    %v5816 = vld [vmem:[%s5766 + $0x188] sm:$0xff]
    %v5817 = vld [vmem:[%s5766 + $0x190] sm:$0xff]
    %v5818 = vld [vmem:[%s5766 + $0x198] sm:$0xff]
    %v5819 = vld [vmem:[%s5766 + $0x1a0] sm:$0xff]
    %v5820 = vld [vmem:[%s5766 + $0x1a8] sm:$0xff]
    %v5821 = vld [vmem:[%s5766 + $0x1b0] sm:$0xff]
    %v5822 = vld [vmem:[%s5766 + $0x1b8] sm:$0xff]
    %v5823 = vld [vmem:[%s5766 + $0x1c0] sm:$0xff]
    %v5824 = vld [vmem:[%s5766 + $0x1c8] sm:$0xff]
    %v5825 = vld [vmem:[%s5766 + $0x1d0] sm:$0xff]
    %v5826 = vld [vmem:[%s5766 + $0x1d8] sm:$0xff]
    %v5827 = vld [vmem:[%s5766 + $0x1e0] sm:$0xff]
    %v5828 = vld [vmem:[%s5766 + $0x1e8] sm:$0xff]
    %v5829 = vld [vmem:[%s5766 + $0x1f0] sm:$0xff]
    %v5830 = vld [vmem:[%s5766 + $0x1f8] sm:$0xff]
    %v5833 = vsel %vm2485, %v5129, %v5101
    %5835 = vmatprep.subr.mxu0 %v5768
    %5836 = vmatpush1.msra.mxu0 %v5767
    %5837 = vmatprep.subr.mxu0 %v5772
    %5838 = vmatpush1.msra.mxu0 %v5771
    %5839 = vmatprep.subr.mxu0 %v5776
    %5840 = vmatpush1.msra.mxu0 %v5775
    %5841 = vmatprep.subr.mxu0 %v5780
    %5842 = vmatpush1.msra.mxu0 %v5779
    %5843 = vmatprep.subr.mxu0 %v5784
    %5844 = vmatpush1.msra.mxu0 %v5783
    %5845 = vmatprep.subr.mxu0 %v5788
    %5846 = vmatpush1.msra.mxu0 %v5787
    %5847 = vmatprep.subr.mxu0 %v5792
    %5848 = vmatpush1.msra.mxu0 %v5791
    %5849 = vmatprep.subr.mxu0 %v5796
    %5850 = vmatpush1.msra.mxu0 %v5795
    %5851 = vmatprep.subr.mxu0 %v5800
    %5852 = vmatpush1.msra.mxu0 %v5799
    %5853 = vmatprep.subr.mxu0 %v5804
    %5854 = vmatpush1.msra.mxu0 %v5803
    %5855 = vmatprep.subr.mxu0 %v5808
    %5856 = vmatpush1.msra.mxu0 %v5807
    %5857 = vmatprep.subr.mxu0 %v5812
    %5858 = vmatpush1.msra.mxu0 %v5811
    %5859 = vmatprep.subr.mxu0 %v5816
    %5860 = vmatpush1.msra.mxu0 %v5815
    %5861 = vmatprep.subr.mxu0 %v5820
    %5862 = vmatpush1.msra.mxu0 %v5819
    %5863 = vmatprep.subr.mxu0 %v5824
    %5864 = vmatpush1.msra.mxu0 %v5823
    %5865 = vmatprep.subr.mxu0 %v5828
    %5866 = vmatpush1.msra.mxu0 %v5827
    %5867 = vmatprep.subr.mxu0 0.0
    %5868 = vmatpush1.msra.mxu0 0.0
    %5869 = vmatprep.subr.mxu0 0.0
    %5870 = vmatpush1.msra.mxu0 0.0
    %5871 = vmatprep.subr.mxu0 0.0
    %5872 = vmatpush1.msra.mxu0 0.0
    %5873 = vmatprep.subr.mxu0 0.0
    %5874 = vmatpush1.msra.mxu0 0.0
    %5875 = vmatprep.subr.mxu0 0.0
    %5876 = vmatpush1.msra.mxu0 0.0
    %5877 = vmatprep.subr.mxu0 0.0
    %5878 = vmatpush1.msra.mxu0 0.0
    %5879 = vmatprep.subr.mxu0 0.0
    %5880 = vmatpush1.msra.mxu0 0.0
    %5881 = vmatprep.subr.mxu0 0.0
    %5882 = vmatpush1.msra.mxu0 0.0
    %5883 = vmatprep.subr.mxu0 0.0
    %5884 = vmatpush1.msra.mxu0 0.0
    %5885 = vmatprep.subr.mxu0 0.0
    %5886 = vmatpush1.msra.mxu0 0.0
    %5887 = vmatprep.subr.mxu0 0.0
    %5888 = vmatpush1.msra.mxu0 0.0
    %5889 = vmatprep.subr.mxu0 0.0
    %5890 = vmatpush1.msra.mxu0 0.0
    %5891 = vmatprep.subr.mxu0 0.0
    %5892 = vmatpush1.msra.mxu0 0.0
    %5893 = vmatprep.subr.mxu0 0.0
    %5894 = vmatpush1.msra.mxu0 0.0
    %5895 = vmatprep.subr.mxu0 0.0
    %5896 = vmatpush1.msra.mxu0 0.0
    %5897 = vmatprep.subr.mxu0 0.0
    %5898 = vmatpush1.msra.mxu0 0.0
    %5899 = vmatprep.mubr.f32.mxu0 0.0
    %5900 = vmatmul.mubr.f32.gmra.mrb[0].mxu0 %v5833
    %v5901 = vpop.f32.mrb[0].mxu0
    %v5902 = vadd.f32 0.0, %v5901
    %v5903 = vpop.f32.mrb[0].mxu0
    %v5904 = vadd.f32 0.0, %v5903
    %5905 = vdwg.mxu0
    %5906 = vmatprep.subr.mxu0 %v5770
    %5907 = vmatpush1.msra.mxu0 %v5769
    %5908 = vmatprep.subr.mxu0 %v5774
    %5909 = vmatpush1.msra.mxu0 %v5773
    %5910 = vmatprep.subr.mxu0 %v5778
    %5911 = vmatpush1.msra.mxu0 %v5777
    %5912 = vmatprep.subr.mxu0 %v5782
    %5913 = vmatpush1.msra.mxu0 %v5781
    %5914 = vmatprep.subr.mxu0 %v5786
    %5915 = vmatpush1.msra.mxu0 %v5785
    %5916 = vmatprep.subr.mxu0 %v5790
    %5917 = vmatpush1.msra.mxu0 %v5789
    %5918 = vmatprep.subr.mxu0 %v5794
    %5919 = vmatpush1.msra.mxu0 %v5793
    %5920 = vmatprep.subr.mxu0 %v5798
    %5921 = vmatpush1.msra.mxu0 %v5797
    %5922 = vmatprep.subr.mxu0 %v5802
    %5923 = vmatpush1.msra.mxu0 %v5801
    %5924 = vmatprep.subr.mxu0 %v5806
    %5925 = vmatpush1.msra.mxu0 %v5805
    %5926 = vmatprep.subr.mxu0 %v5810
    %5927 = vmatpush1.msra.mxu0 %v5809
    %5928 = vmatprep.subr.mxu0 %v5814
    %5929 = vmatpush1.msra.mxu0 %v5813
    %5930 = vmatprep.subr.mxu0 %v5818
    %5931 = vmatpush1.msra.mxu0 %v5817
    %5932 = vmatprep.subr.mxu0 %v5822
    %5933 = vmatpush1.msra.mxu0 %v5821
    %5934 = vmatprep.subr.mxu0 %v5826
    %5935 = vmatpush1.msra.mxu0 %v5825
    %5936 = vmatprep.subr.mxu0 %v5830
    %5937 = vmatpush1.msra.mxu0 %v5829
    %5938 = vmatprep.subr.mxu0 0.0
    %5939 = vmatpush1.msra.mxu0 0.0
    %5940 = vmatprep.subr.mxu0 0.0
    %5941 = vmatpush1.msra.mxu0 0.0
    %5942 = vmatprep.subr.mxu0 0.0
    %5943 = vmatpush1.msra.mxu0 0.0
    %5944 = vmatprep.subr.mxu0 0.0
    %5945 = vmatpush1.msra.mxu0 0.0
    %5946 = vmatprep.subr.mxu0 0.0
    %5947 = vmatpush1.msra.mxu0 0.0
    %5948 = vmatprep.subr.mxu0 0.0
    %5949 = vmatpush1.msra.mxu0 0.0
    %5950 = vmatprep.subr.mxu0 0.0
    %5951 = vmatpush1.msra.mxu0 0.0
    %5952 = vmatprep.subr.mxu0 0.0
    %5953 = vmatpush1.msra.mxu0 0.0
    %5954 = vmatprep.subr.mxu0 0.0
    %5955 = vmatpush1.msra.mxu0 0.0
    %5956 = vmatprep.subr.mxu0 0.0
    %5957 = vmatpush1.msra.mxu0 0.0
    %5958 = vmatprep.subr.mxu0 0.0
    %5959 = vmatpush1.msra.mxu0 0.0
    %5960 = vmatprep.subr.mxu0 0.0
    %5961 = vmatpush1.msra.mxu0 0.0
    %5962 = vmatprep.subr.mxu0 0.0
    %5963 = vmatpush1.msra.mxu0 0.0
    %5964 = vmatprep.subr.mxu0 0.0
    %5965 = vmatpush1.msra.mxu0 0.0
    %5966 = vmatprep.subr.mxu0 0.0
    %5967 = vmatpush1.msra.mxu0 0.0
    %5968 = vmatprep.subr.mxu0 0.0
    %5969 = vmatpush1.msra.mxu0 0.0
    %5970 = vmatprep.mubr.f32.mxu0 0.0
    %5971 = vmatmul.mubr.f32.gmra.mrb[0].mxu0 %v5833
    %v5972 = vpop.f32.mrb[0].mxu0
    %v5973 = vadd.f32 0.0, %v5972
    %v5974 = vpop.f32.mrb[0].mxu0
    %v5975 = vadd.f32 0.0, %v5974
    %5976 = vdwg.mxu0
    %v5977 = vadd.f32 %v5762, %v5902
    %v5978 = vadd.f32 %v5763, %v5904
    %v5979 = vadd.f32 %v5764, %v5973
    %v5980 = vadd.f32 %v5765, %v5975
    %v5981 = vld [vmem:[#allocation19] sm:$0xf]
    %v5983 = vlaneseq
    %v5984 = vshrl.u32 %v5983, 7
    %v5985 = vsub.s32 0, %v5984
    %v5986 = vrot.slane %v5981, %v5985
    %v5987 = vlaneseq
    %v5988 = vshrl.u32 %v5987, 7
    %v5989 = vsub.s32 1, %v5988
    %v5990 = vrot.slane %v5981, %v5989
    %v5991 = vlaneseq
    %v5992 = vshrl.u32 %v5991, 7
    %v5993 = vsub.s32 2, %v5992
    %v5994 = vrot.slane %v5981, %v5993
    %v5995 = vlaneseq
    %v5996 = vshrl.u32 %v5995, 7
    %v5997 = vsub.s32 3, %v5996
    %v5998 = vrot.slane %v5981, %v5997
    %v6003 = vadd.f32 %v5977, %v5986
    %v6004 = vadd.f32 %v5978, %v5990
    %v6005 = vadd.f32 %v5979, %v5994
    %v6006 = vadd.f32 %v5980, %v5998
    %v6007 = vmax.f32 %v6003, 0.0
    %v6008 = vmax.f32 %v6004, 0.0
    %v6009 = vmax.f32 %v6005, 0.0
    %v6010 = vmax.f32 %v6006, 0.0
    %v6011 = vld [vmem:[#allocation20] sm:$0xff]
    %v6012 = vld [vmem:[#allocation20 + $0x8] sm:$0xff]
    %v6013 = vld [vmem:[#allocation20 + $0x10] sm:$0xff]
    %v6014 = vld [vmem:[#allocation20 + $0x18] sm:$0xff]
    %v6015 = vld [vmem:[#allocation20 + $0x20] sm:$0xff]
    %v6016 = vld [vmem:[#allocation20 + $0x28] sm:$0xff]
    %v6017 = vld [vmem:[#allocation20 + $0x30] sm:$0xff]
    %v6018 = vld [vmem:[#allocation20 + $0x38] sm:$0xff]
    %v6019 = vld [vmem:[#allocation20 + $0x40] sm:$0xff]
    %v6020 = vld [vmem:[#allocation20 + $0x48] sm:$0xff]
    %v6021 = vld [vmem:[#allocation20 + $0x50] sm:$0xff]
    %v6022 = vld [vmem:[#allocation20 + $0x58] sm:$0xff]
    %v6023 = vld [vmem:[#allocation20 + $0x60] sm:$0xff]
    %v6024 = vld [vmem:[#allocation20 + $0x68] sm:$0xff]
    %v6025 = vld [vmem:[#allocation20 + $0x70] sm:$0xff]
    %v6026 = vld [vmem:[#allocation20 + $0x78] sm:$0xff]
    %v6027 = vld [vmem:[#allocation20 + $0x80] sm:$0xff]
    %v6028 = vld [vmem:[#allocation20 + $0x88] sm:$0xff]
    %v6029 = vld [vmem:[#allocation20 + $0x90] sm:$0xff]
    %v6030 = vld [vmem:[#allocation20 + $0x98] sm:$0xff]
    %v6031 = vld [vmem:[#allocation20 + $0xa0] sm:$0xff]
    %v6032 = vld [vmem:[#allocation20 + $0xa8] sm:$0xff]
    %v6033 = vld [vmem:[#allocation20 + $0xb0] sm:$0xff]
    %v6034 = vld [vmem:[#allocation20 + $0xb8] sm:$0xff]
    %v6035 = vld [vmem:[#allocation20 + $0xc0] sm:$0xff]
    %v6036 = vld [vmem:[#allocation20 + $0xc8] sm:$0xff]
    %v6037 = vld [vmem:[#allocation20 + $0xd0] sm:$0xff]
    %v6038 = vld [vmem:[#allocation20 + $0xd8] sm:$0xff]
    %v6039 = vld [vmem:[#allocation20 + $0xe0] sm:$0xff]
    %v6040 = vld [vmem:[#allocation20 + $0xe8] sm:$0xff]
    %v6041 = vld [vmem:[#allocation20 + $0xf0] sm:$0xff]
    %v6042 = vld [vmem:[#allocation20 + $0xf8] sm:$0xff]
    %v6043 = vld [vmem:[#allocation20 + $0x100] sm:$0xff]
    %v6044 = vld [vmem:[#allocation20 + $0x108] sm:$0xff]
    %v6045 = vld [vmem:[#allocation20 + $0x110] sm:$0xff]
    %v6046 = vld [vmem:[#allocation20 + $0x118] sm:$0xff]
    %v6047 = vld [vmem:[#allocation20 + $0x120] sm:$0xff]
    %v6048 = vld [vmem:[#allocation20 + $0x128] sm:$0xff]
    %v6049 = vld [vmem:[#allocation20 + $0x130] sm:$0xff]
    %v6050 = vld [vmem:[#allocation20 + $0x138] sm:$0xff]
    %v6051 = vld [vmem:[#allocation20 + $0x140] sm:$0xff]
    %v6052 = vld [vmem:[#allocation20 + $0x148] sm:$0xff]
    %v6053 = vld [vmem:[#allocation20 + $0x150] sm:$0xff]
    %v6054 = vld [vmem:[#allocation20 + $0x158] sm:$0xff]
    %v6055 = vld [vmem:[#allocation20 + $0x160] sm:$0xff]
    %v6056 = vld [vmem:[#allocation20 + $0x168] sm:$0xff]
    %v6057 = vld [vmem:[#allocation20 + $0x170] sm:$0xff]
    %v6058 = vld [vmem:[#allocation20 + $0x178] sm:$0xff]
    %v6059 = vld [vmem:[#allocation20 + $0x180] sm:$0xff]
    %v6060 = vld [vmem:[#allocation20 + $0x188] sm:$0xff]
    %v6061 = vld [vmem:[#allocation20 + $0x190] sm:$0xff]
    %v6062 = vld [vmem:[#allocation20 + $0x198] sm:$0xff]
    %v6063 = vld [vmem:[#allocation20 + $0x1a0] sm:$0xff]
    %v6064 = vld [vmem:[#allocation20 + $0x1a8] sm:$0xff]
    %v6065 = vld [vmem:[#allocation20 + $0x1b0] sm:$0xff]
    %v6066 = vld [vmem:[#allocation20 + $0x1b8] sm:$0xff]
    %v6067 = vld [vmem:[#allocation20 + $0x1c0] sm:$0xff]
    %v6068 = vld [vmem:[#allocation20 + $0x1c8] sm:$0xff]
    %v6069 = vld [vmem:[#allocation20 + $0x1d0] sm:$0xff]
    %v6070 = vld [vmem:[#allocation20 + $0x1d8] sm:$0xff]
    %v6071 = vld [vmem:[#allocation20 + $0x1e0] sm:$0xff]
    %v6072 = vld [vmem:[#allocation20 + $0x1e8] sm:$0xff]
    %v6073 = vld [vmem:[#allocation20 + $0x1f0] sm:$0xff]
    %v6074 = vld [vmem:[#allocation20 + $0x1f8] sm:$0xff]
    %v6075 = vld [vmem:[#allocation22] sm:$0x1]
    %v6077 = vlaneseq
    %v6078 = vshrl.u32 %v6077, 7
    %v6079 = vsub.s32 0, %v6078
    %v6080 = vrot.slane %v6075, %v6079
    %6082 = vmatprep.subr.mxu0 0.0
    %6083 = vmatpush1.msra.mxu0 %v6011
    %6084 = vmatprep.subr.mxu0 0.0
    %6085 = vmatpush1.msra.mxu0 %v6012
    %6086 = vmatprep.subr.mxu0 0.0
    %6087 = vmatpush1.msra.mxu0 %v6013
    %6088 = vmatprep.subr.mxu0 0.0
    %6089 = vmatpush1.msra.mxu0 %v6014
    %6090 = vmatprep.subr.mxu0 0.0
    %6091 = vmatpush1.msra.mxu0 %v6015
    %6092 = vmatprep.subr.mxu0 0.0
    %6093 = vmatpush1.msra.mxu0 %v6016
    %6094 = vmatprep.subr.mxu0 0.0
    %6095 = vmatpush1.msra.mxu0 %v6017
    %6096 = vmatprep.subr.mxu0 0.0
    %6097 = vmatpush1.msra.mxu0 %v6018
    %6098 = vmatprep.subr.mxu0 0.0
    %6099 = vmatpush1.msra.mxu0 %v6019
    %6100 = vmatprep.subr.mxu0 0.0
    %6101 = vmatpush1.msra.mxu0 %v6020
    %6102 = vmatprep.subr.mxu0 0.0
    %6103 = vmatpush1.msra.mxu0 %v6021
    %6104 = vmatprep.subr.mxu0 0.0
    %6105 = vmatpush1.msra.mxu0 %v6022
    %6106 = vmatprep.subr.mxu0 0.0
    %6107 = vmatpush1.msra.mxu0 %v6023
    %6108 = vmatprep.subr.mxu0 0.0
    %6109 = vmatpush1.msra.mxu0 %v6024
    %6110 = vmatprep.subr.mxu0 0.0
    %6111 = vmatpush1.msra.mxu0 %v6025
    %6112 = vmatprep.subr.mxu0 0.0
    %6113 = vmatpush1.msra.mxu0 %v6026
    %6114 = vmatprep.subr.mxu0 0.0
    %6115 = vmatpush1.msra.mxu0 %v6027
    %6116 = vmatprep.subr.mxu0 0.0
    %6117 = vmatpush1.msra.mxu0 %v6028
    %6118 = vmatprep.subr.mxu0 0.0
    %6119 = vmatpush1.msra.mxu0 %v6029
    %6120 = vmatprep.subr.mxu0 0.0
    %6121 = vmatpush1.msra.mxu0 %v6030
    %6122 = vmatprep.subr.mxu0 0.0
    %6123 = vmatpush1.msra.mxu0 %v6031
    %6124 = vmatprep.subr.mxu0 0.0
    %6125 = vmatpush1.msra.mxu0 %v6032
    %6126 = vmatprep.subr.mxu0 0.0
    %6127 = vmatpush1.msra.mxu0 %v6033
    %6128 = vmatprep.subr.mxu0 0.0
    %6129 = vmatpush1.msra.mxu0 %v6034
    %6130 = vmatprep.subr.mxu0 0.0
    %6131 = vmatpush1.msra.mxu0 %v6035
    %6132 = vmatprep.subr.mxu0 0.0
    %6133 = vmatpush1.msra.mxu0 %v6036
    %6134 = vmatprep.subr.mxu0 0.0
    %6135 = vmatpush1.msra.mxu0 %v6037
    %6136 = vmatprep.subr.mxu0 0.0
    %6137 = vmatpush1.msra.mxu0 %v6038
    %6138 = vmatprep.subr.mxu0 0.0
    %6139 = vmatpush1.msra.mxu0 %v6039
    %6140 = vmatprep.subr.mxu0 0.0
    %6141 = vmatpush1.msra.mxu0 %v6040
    %6142 = vmatprep.subr.mxu0 0.0
    %6143 = vmatpush1.msra.mxu0 %v6041
    %6144 = vmatprep.subr.mxu0 0.0
    %6145 = vmatpush1.msra.mxu0 %v6042
    %6146 = vmatprep.mubr.f32.mxu0 %v6008
    %6147 = vmatmul.mubr.f32.gmra.mrb[0].mxu0 %v6007
    %v6148 = vpop.f32.mrb[0].mxu0
    %v6149 = vadd.f32 %v6080, %v6148
    %v6150 = vpop.f32.mrb[0].mxu0
    %6151 = vdwg.mxu0
    %6152 = vmatprep.subr.mxu0 0.0
    %6153 = vmatpush1.msra.mxu0 %v6043
    %6154 = vmatprep.subr.mxu0 0.0
    %6155 = vmatpush1.msra.mxu0 %v6044
    %6156 = vmatprep.subr.mxu0 0.0
    %6157 = vmatpush1.msra.mxu0 %v6045
    %6158 = vmatprep.subr.mxu0 0.0
    %6159 = vmatpush1.msra.mxu0 %v6046
    %6160 = vmatprep.subr.mxu0 0.0
    %6161 = vmatpush1.msra.mxu0 %v6047
    %6162 = vmatprep.subr.mxu0 0.0
    %6163 = vmatpush1.msra.mxu0 %v6048
    %6164 = vmatprep.subr.mxu0 0.0
    %6165 = vmatpush1.msra.mxu0 %v6049
    %6166 = vmatprep.subr.mxu0 0.0
    %6167 = vmatpush1.msra.mxu0 %v6050
    %6168 = vmatprep.subr.mxu0 0.0
    %6169 = vmatpush1.msra.mxu0 %v6051
    %6170 = vmatprep.subr.mxu0 0.0
    %6171 = vmatpush1.msra.mxu0 %v6052
    %6172 = vmatprep.subr.mxu0 0.0
    %6173 = vmatpush1.msra.mxu0 %v6053
    %6174 = vmatprep.subr.mxu0 0.0
    %6175 = vmatpush1.msra.mxu0 %v6054
    %6176 = vmatprep.subr.mxu0 0.0
    %6177 = vmatpush1.msra.mxu0 %v6055
    %6178 = vmatprep.subr.mxu0 0.0
    %6179 = vmatpush1.msra.mxu0 %v6056
    %6180 = vmatprep.subr.mxu0 0.0
    %6181 = vmatpush1.msra.mxu0 %v6057
    %6182 = vmatprep.subr.mxu0 0.0
    %6183 = vmatpush1.msra.mxu0 %v6058
    %6184 = vmatprep.subr.mxu0 0.0
    %6185 = vmatpush1.msra.mxu0 %v6059
    %6186 = vmatprep.subr.mxu0 0.0
    %6187 = vmatpush1.msra.mxu0 %v6060
    %6188 = vmatprep.subr.mxu0 0.0
    %6189 = vmatpush1.msra.mxu0 %v6061
    %6190 = vmatprep.subr.mxu0 0.0
    %6191 = vmatpush1.msra.mxu0 %v6062
    %6192 = vmatprep.subr.mxu0 0.0
    %6193 = vmatpush1.msra.mxu0 %v6063
    %6194 = vmatprep.subr.mxu0 0.0
    %6195 = vmatpush1.msra.mxu0 %v6064
    %6196 = vmatprep.subr.mxu0 0.0
    %6197 = vmatpush1.msra.mxu0 %v6065
    %6198 = vmatprep.subr.mxu0 0.0
    %6199 = vmatpush1.msra.mxu0 %v6066
    %6200 = vmatprep.subr.mxu0 0.0
    %6201 = vmatpush1.msra.mxu0 %v6067
    %6202 = vmatprep.subr.mxu0 0.0
    %6203 = vmatpush1.msra.mxu0 %v6068
    %6204 = vmatprep.subr.mxu0 0.0
    %6205 = vmatpush1.msra.mxu0 %v6069
    %6206 = vmatprep.subr.mxu0 0.0
    %6207 = vmatpush1.msra.mxu0 %v6070
    %6208 = vmatprep.subr.mxu0 0.0
    %6209 = vmatpush1.msra.mxu0 %v6071
    %6210 = vmatprep.subr.mxu0 0.0
    %6211 = vmatpush1.msra.mxu0 %v6072
    %6212 = vmatprep.subr.mxu0 0.0
    %6213 = vmatpush1.msra.mxu0 %v6073
    %6214 = vmatprep.subr.mxu0 0.0
    %6215 = vmatpush1.msra.mxu0 %v6074
    %6216 = vmatprep.mubr.f32.mxu0 %v6010
    %6217 = vmatmul.mubr.f32.gmra.mrb[0].mxu0 %v6009
    %v6218 = vpop.f32.mrb[0].mxu0
    %v6219 = vadd.f32 %v6149, %v6218
    %v6220 = vpop.f32.mrb[0].mxu0
    %6221 = vdwg.mxu0
    %v6222 = vmax.f32 %v6219, 0.0
    %v6223 = vld [vmem:[#allocation23] sm:$0xff]
    %v6224 = vld [vmem:[#allocation23 + $0x8] sm:$0xff]
    %v6225 = vld [vmem:[#allocation23 + $0x10] sm:$0xff]
    %v6226 = vld [vmem:[#allocation23 + $0x18] sm:$0xff]
    %v6227 = vld [vmem:[#allocation23 + $0x20] sm:$0xff]
    %v6228 = vld [vmem:[#allocation23 + $0x28] sm:$0xff]
    %v6229 = vld [vmem:[#allocation23 + $0x30] sm:$0xff]
    %v6230 = vld [vmem:[#allocation23 + $0x38] sm:$0xff]
    %v6231 = vld [vmem:[#allocation23 + $0x40] sm:$0xff]
    %v6232 = vld [vmem:[#allocation23 + $0x48] sm:$0xff]
    %v6233 = vld [vmem:[#allocation23 + $0x50] sm:$0xff]
    %v6234 = vld [vmem:[#allocation23 + $0x58] sm:$0xff]
    %v6235 = vld [vmem:[#allocation23 + $0x60] sm:$0xf]
    %v6236 = vld [vmem:[#allocation25] sm:$0x1]
    %v6238 = vlaneseq
    %v6239 = vshrl.u32 %v6238, 7
    %v6240 = vsub.s32 0, %v6239
    %v6241 = vrot.slane %v6236, %v6240
    %vm6243 = vcmask 818176
    %v6245 = vsel %vm6243, %v6222, 0
    %v6248 = vsel %vm590, %v6235, 0
    %6250 = vmatprep.subr.mxu0 0.0
    %6251 = vmatpush1.msra.mxu0 %v6223
    %6252 = vmatprep.subr.mxu0 0.0
    %6253 = vmatpush1.msra.mxu0 %v6224
    %6254 = vmatprep.subr.mxu0 0.0
    %6255 = vmatpush1.msra.mxu0 %v6225
    %6256 = vmatprep.subr.mxu0 0.0
    %6257 = vmatpush1.msra.mxu0 %v6226
    %6258 = vmatprep.subr.mxu0 0.0
    %6259 = vmatpush1.msra.mxu0 %v6227
    %6260 = vmatprep.subr.mxu0 0.0
    %6261 = vmatpush1.msra.mxu0 %v6228
    %6262 = vmatprep.subr.mxu0 0.0
    %6263 = vmatpush1.msra.mxu0 %v6229
    %6264 = vmatprep.subr.mxu0 0.0
    %6265 = vmatpush1.msra.mxu0 %v6230
    %6266 = vmatprep.subr.mxu0 0.0
    %6267 = vmatpush1.msra.mxu0 %v6231
    %6268 = vmatprep.subr.mxu0 0.0
    %6269 = vmatpush1.msra.mxu0 %v6232
    %6270 = vmatprep.subr.mxu0 0.0
    %6271 = vmatpush1.msra.mxu0 %v6233
    %6272 = vmatprep.subr.mxu0 0.0
    %6273 = vmatpush1.msra.mxu0 %v6234
    %6274 = vmatprep.subr.mxu0 0.0
    %6275 = vmatpush1.msra.mxu0 %v6248
    %6276 = vmatprep.subr.mxu0 0.0
    %6277 = vmatpush1.msra.mxu0 0.0
    %6278 = vmatprep.subr.mxu0 0.0
    %6279 = vmatpush1.msra.mxu0 0.0
    %6280 = vmatprep.subr.mxu0 0.0
    %6281 = vmatpush1.msra.mxu0 0.0
    %6282 = vmatprep.subr.mxu0 0.0
    %6283 = vmatpush1.msra.mxu0 0.0
    %6284 = vmatprep.subr.mxu0 0.0
    %6285 = vmatpush1.msra.mxu0 0.0
    %6286 = vmatprep.subr.mxu0 0.0
    %6287 = vmatpush1.msra.mxu0 0.0
    %6288 = vmatprep.subr.mxu0 0.0
    %6289 = vmatpush1.msra.mxu0 0.0
    %6290 = vmatprep.subr.mxu0 0.0
    %6291 = vmatpush1.msra.mxu0 0.0
    %6292 = vmatprep.subr.mxu0 0.0
    %6293 = vmatpush1.msra.mxu0 0.0
    %6294 = vmatprep.subr.mxu0 0.0
    %6295 = vmatpush1.msra.mxu0 0.0
    %6296 = vmatprep.subr.mxu0 0.0
    %6297 = vmatpush1.msra.mxu0 0.0
    %6298 = vmatprep.subr.mxu0 0.0
    %6299 = vmatpush1.msra.mxu0 0.0
    %6300 = vmatprep.subr.mxu0 0.0
    %6301 = vmatpush1.msra.mxu0 0.0
    %6302 = vmatprep.subr.mxu0 0.0
    %6303 = vmatpush1.msra.mxu0 0.0
    %6304 = vmatprep.subr.mxu0 0.0
    %6305 = vmatpush1.msra.mxu0 0.0
    %6306 = vmatprep.subr.mxu0 0.0
    %6307 = vmatpush1.msra.mxu0 0.0
    %6308 = vmatprep.subr.mxu0 0.0
    %6309 = vmatpush1.msra.mxu0 0.0
    %6310 = vmatprep.subr.mxu0 0.0
    %6311 = vmatpush1.msra.mxu0 0.0
    %6312 = vmatprep.subr.mxu0 0.0
    %6313 = vmatpush1.msra.mxu0 0.0
    %6314 = vmatprep.mubr.f32.mxu0 0.0
    %6315 = vmatmul.mubr.f32.gmra.mrb[0].mxu0 %v6245
    %v6316 = vpop.f32.mrb[0].mxu0
    %v6317 = vadd.f32 %v6241, %v6316
    %v6318 = vpop.f32.mrb[0].mxu0
    %6319 = vdwg.mxu0
    %vm6320 = vcmask 74752
    %v6321 = vsel %vm6320, %v6317, -inf
    %6322 = vmax.xlane.f32.xlu0 %v6321
    %v6323 = vpop.xlane.xlu0 %6322
    %v6324 = vsub.f32 %v6317, %v6323
    %v6325 = vmul.f32 %v6324, 1.442695
    %v6326 = vpow.pop %v6325
    %v6327 = vsel %vm6320, %v6326, 0.0
    %6328 = vadd.xlane.f32.xlu0 %v6327
    %v6329 = vpop.xlane.xlu0 %6328
    %v6330 = vrcp.pop %v6329
    %v6331 = vmul.f32 %v6326, %v6330
    %6332 = vst.msk [vmem:[#allocation26] sm:$0x3] %vm6320, %v6331
    // Predicated region
    $region122: #{cnn_forward.1} parent=1 // pred_check
      _
    $region123: #{cnn_forward.1} parent=1 // pred_check_branch
      %6334 = sbr.rel (0) target = $region125
    $region124: #{cnn_forward.1} parent=1 // pred_region
      %s6336 = ssub.s32 32, 32
      %6337 = vsyncadd [#allocation4], %s6336
      %s6339 = sshll.u32 [#allocation26], 4
      %s6340 = int_to_ptr.vmem [resolvable:$true] %s6339
      %6342 = dma.vmem_to_hbm [thread:$0]  %s6340, 32, %s15, [#allocation4]
    $region125: #{cnn_forward.1} parent=1 // pred_fallthru
      _
    // Predicated region
    $region126: #{cnn_forward.1} parent=1 // pred_check
      _
    $region127: #{cnn_forward.1} parent=1 // pred_check_branch
      %6344 = sbr.rel (0) target = $region129
    $region128: #{cnn_forward.1} parent=1 // pred_region
      %6345 = dma.done [#allocation4], 32
    $region129: #{cnn_forward.1} parent=1 // pred_fallthru
      _
    %6346 = vsyncpa [#allocation3], 1
    %6347 = vsyncpa [#allocation6], 1
    %6348 = vsyncpa [#allocation9], 1
    %6349 = vsyncpa [#allocation12], 1
    %6350 = vsyncpa [#allocation15], 1
    %6351 = vsyncpa [#allocation18], 1
    %6352 = vsyncpa [#allocation21], 1
    %6353 = vsyncpa [#allocation24], 1
    %6354 = vsyncpa [#allocation4], 1

</llo_original>
